<compile_context>
chip_gen: v7x
topology: tpu7x:2x2x1
jax: 0.10.0
libtpu: 0.0.40
codegen_flags: <defaults>
</compile_context>

<pallas_src>
import functools
import numpy as np
import jax
import jax.numpy as jnp
from jax.experimental import pallas as pl
from jax.experimental.pallas import tpu as pltpu

LANE = 128          # TPU lane width (last-dim tiling unit)
SCORE_PAD = 128     # padded lane width of the attention-score output
NEG_BIG = -1e30     # only used by the plain-JAX reference
SLOPE = 0.2         # LeakyReLU negative slope
VMEM_LIMIT = 48 * 1024 * 1024   # explicit scoped-VMEM budget (fits v7x 64 MiB)


def _round_up(x, m):
    return (x + m - 1) // m * m


def _choose_tile(n128):
    """Dst/src tile: as large as reasonable, but keep >=2 dst tiles (v7x has
    two TensorCores) whenever that still allows a >=512 tile."""
    t = min(1024, n128)
    half = (n128 // 2) // LANE * LANE
    if half >= 512:
        t = min(t, half)
    return t


# --------------------------- Pallas kernels -------------------------------- #
def _gat_proj_kernel(x_ref, w_ref, a_ref, ones_ref, h_ref, s_ref):
    # Shared linear transform of a tile of nodes (MXU):  h = x @ W   [Tm, Wp]
    h = jnp.dot(x_ref[...], w_ref[...], preferred_element_type=jnp.float32)
    # All heads' attention-vector dots in ONE matmul:
    #   scores[:, hh]     = h_hh @ att_dst_hh
    #   scores[:, H + hh] = h_hh @ att_src_hh
    s_ref[...] = jnp.dot(h, a_ref[...], preferred_element_type=jnp.float32)
    # Plant the per-head ones columns (softmax denominator comes from the MXU
    # in pass 2) and store h in bf16 to halve its HBM traffic.
    h_ref[...] = (h + ones_ref[...]).astype(jnp.bfloat16)


def _gat_attn_kernel(blk_ref, adj_ref, hsrc_ref, sc_ref, asrcT_ref, hmask_ref,
                     scale_ref, shift_ref, o_ref, acc_sc, *, heads, hf):
    """Masked neighbour softmax + aggregation for one dst tile (no online max:
    GAT logits are rank-1, so a precomputed per-row upper bound is exact-safe)."""
    i = pl.program_id(0)
    k = pl.program_id(1)
    nk = pl.num_programs(1)

    @pl.when(k == 0)
    def _init():
        acc_sc[...] = jnp.zeros_like(acc_sc)

    @pl.when(blk_ref[i * nk + k] > 0)          # skip (dst, src) blocks with no edge
    def _accumulate():
        adjf = adj_ref[...].astype(jnp.float32)          # [Tq, Tk] shared over heads
        h_t = hsrc_ref[...]                              # [Tk, Wp] bf16
        upd = None
        for hh in range(heads):                          # static unroll
            a_d = sc_ref[:, hh:hh + 1]                                   # [Tq, 1]
            m_r = sc_ref[:, 2 * heads + hh:2 * heads + hh + 1]           # [Tq, 1]
            a_s = asrcT_ref[hh:hh + 1, :]                                # [1, Tk]
            e = a_d + a_s                                # additive logits
            e = jnp.maximum(e, SLOPE * e)                # LeakyReLU(0.2)
            # mask by multiply after exp (bf16-safe, no fully-masked hazard)
            p = (jnp.exp(e - m_r) * adjf).astype(jnp.bfloat16)
            # head mask keeps the per-head dot inside its own column block
            rhs = h_t if heads == 1 else h_t * hmask_ref[hh:hh + 1, :]
            d = jnp.dot(p, rhs, preferred_element_type=jnp.float32)
            upd = d if upd is None else upd + d
        acc_sc[...] += upd

    @pl.when(k == nk - 1)
    def _finalize():
        acc = acc_sc[...]
        # Per-head softmax denominators sit in the planted ones lanes of acc;
        # broadcast each across its head's columns (padding lanes divide by 1).
        div = hmask_ref[heads:heads + 1, :].astype(jnp.float32)
        for hh in range(heads):
            div = div + (acc[:, hf + hh:hf + hh + 1]
                         * hmask_ref[hh:hh + 1, :].astype(jnp.float32))
        div = jnp.maximum(div, 1e-30)
        r = pl.reciprocal(div, approx=True)              # EUP slot
        r = r * (2.0 - div * r)                          # 1 Newton step -> f32 acc.
        out = acc * r
        out = out * scale_ref[...] + shift_ref[...]      # bias + BatchNorm(eval) folded
        out = jnp.maximum(out, SLOPE * out)              # LeakyReLU(0.2)
        o_ref[...] = out
        # Dropout(p=0.5) in eval mode == identity.


# ------------------------------ layer wrapper ------------------------------ #
def gat_layer(x, adj, blk, params, *, heads, out_dim, wp, tq, tk):
    """Fused GATConv + BatchNorm(eval) + LeakyReLU + Dropout(eval) layer."""
    w, amat, onesrow, hmask, scale, shift = params
    n, cin = x.shape
    hf = heads * out_dim

    # ---- pass 1: node projection + batched attention-vector dots ----
    tm = tq
    h, scores = pl.pallas_call(
        _gat_proj_kernel,
        out_shape=(jax.ShapeDtypeStruct((n, wp), jnp.bfloat16),
                   jax.ShapeDtypeStruct((n, SCORE_PAD), jnp.float32)),
        grid_spec=pltpu.PrefetchScalarGridSpec(
            num_scalar_prefetch=0,
            grid=(n // tm,),
            in_specs=[pl.BlockSpec((tm, cin), lambda i: (i, 0)),
                      pl.BlockSpec((cin, wp), lambda i: (0, 0)),
                      pl.BlockSpec((wp, SCORE_PAD), lambda i: (0, 0)),
                      pl.BlockSpec((1, wp), lambda i: (0, 0))],
            out_specs=[pl.BlockSpec((tm, wp), lambda i: (i, 0)),
                       pl.BlockSpec((tm, SCORE_PAD), lambda i: (i, 0))]),
        compiler_params=pltpu.CompilerParams(
            dimension_semantics=("parallel",),
            vmem_limit_bytes=VMEM_LIMIT),
    )(x, w, amat, onesrow)

    # Rank-1 logit upper bound per dst row (replaces the online-softmax max):
    #   m_row[i,h] = leaky(a_dst[i,h] + max_j a_src[j,h]) >= max over neighbours.
    a_dst = scores[:, :heads]
    a_src = scores[:, heads:2 * heads]
    m_row = a_dst + jnp.max(a_src, axis=0, keepdims=True)
    m_row = jnp.maximum(m_row, SLOPE * m_row)
    # Keep pass-2 score inputs lane-dense: pack m_row into spare score lanes.
    sc_aug = scores.at[:, 2 * heads:3 * heads].set(m_row)     # [N, 128]
    a_srcT = jnp.transpose(a_src)                             # [H, N]

    # ---- pass 2: tiled masked attention + fused BN/activation ----
    kern = functools.partial(_gat_attn_kernel, heads=heads, hf=hf)
    return pl.pallas_call(
        kern,
        out_shape=jax.ShapeDtypeStruct((n, wp), jnp.float32),
        grid_spec=pltpu.PrefetchScalarGridSpec(
            num_scalar_prefetch=1,                       # block-nonempty table
            grid=(n // tq, n // tk),
            in_specs=[pl.BlockSpec((tq, tk), lambda i, k, b: (i, k)),          # adj int8
                      pl.BlockSpec((tk, wp), lambda i, k, b: (k, 0)),          # h src (bf16)
                      pl.BlockSpec((tq, SCORE_PAD), lambda i, k, b: (i, 0)),   # dst scores+m_row
                      pl.BlockSpec((heads, tk), lambda i, k, b: (0, k)),       # a_src^T
                      pl.BlockSpec((heads + 1, wp), lambda i, k, b: (0, 0)),   # head masks
                      pl.BlockSpec((1, wp), lambda i, k, b: (0, 0)),           # BN scale
                      pl.BlockSpec((1, wp), lambda i, k, b: (0, 0))],          # BN shift(+bias)
            out_specs=pl.BlockSpec((tq, wp), lambda i, k, b: (i, 0)),
            scratch_shapes=[pltpu.VMEM((tq, wp), jnp.float32)]),               # accumulator
        compiler_params=pltpu.CompilerParams(
            dimension_semantics=("parallel", "arbitrary"),
            vmem_limit_bytes=VMEM_LIMIT),
    )(blk, adj, h, sc_aug, a_srcT, hmask, scale, shift)


# ------------------------------ model wrapper ------------------------------ #
class GATPallas:
    def __init__(self, input_dim, hidden_dim, num_layers, heads=1, key=None):
        if key is None:
            key = jax.random.PRNGKey(0)
        cfgs = [(input_dim, hidden_dim, heads, True)]
        for _ in range(num_layers - 2):
            cfgs.append((hidden_dim * heads, hidden_dim, heads, True))
        cfgs.append((hidden_dim * heads, hidden_dim, 1, False))

        eps = 1e-5
        self.layers = []       # padded, dense-packed params for the kernels
        self.layers_ref = []   # un-padded params for the plain-JAX reference

        in_real = input_dim
        in_pad = _round_up(input_dim, LANE)
        for (in_dim, out_dim, h, concat) in cfgs:
            assert in_dim == in_real
            if (not concat) and h > 1:
                # TODO(synk): concat=False with heads>1 (head averaging) is not
                # supported by the dense-packed layout; the GRACE GAT only uses
                # concat=False on its final single-head layer.
                raise NotImplementedError("concat=False with heads>1 not supported")
            assert 3 * h <= SCORE_PAD

            key, k1, k2, k3 = jax.random.split(key, 4)
            w = np.asarray(jax.random.normal(k1, (in_dim, h * out_dim),
                                             jnp.float32)) * np.float32(1.0 / np.sqrt(in_dim))
            att_src = np.asarray(jax.random.normal(k2, (h, out_dim), jnp.float32)) * np.float32(0.1)
            att_dst = np.asarray(jax.random.normal(k3, (h, out_dim), jnp.float32)) * np.float32(0.1)

            hf = h * out_dim
            out_real = hf if concat else out_dim
            bias = np.zeros((out_real,), np.float32)
            # BatchNorm eval with running mean=0, var=1, gamma=1, beta=0
            bn_scale = np.full((out_real,), 1.0 / np.sqrt(1.0 + eps), np.float32)
            bn_shift = np.zeros((out_real,), np.float32)

            # densely packed lane layout: heads side by side + H ones lanes
            wp = _round_up(hf, LANE)
            if wp - hf < h:
                wp += LANE

            w_pad = np.zeros((in_pad, wp), np.float32)
            w_pad[:in_dim, :hf] = w
            a_pad = np.zeros((wp, SCORE_PAD), np.float32)
            onesrow = np.zeros((1, wp), np.float32)
            hmask = np.zeros((h + 1, wp), np.float32)
            for hh in range(h):
                a_pad[hh * out_dim:(hh + 1) * out_dim, hh] = att_dst[hh]       # dst logits
                a_pad[hh * out_dim:(hh + 1) * out_dim, h + hh] = att_src[hh]   # src logits
                onesrow[0, hf + hh] = 1.0                     # per-head ones column
                hmask[hh, hh * out_dim:(hh + 1) * out_dim] = 1.0
                hmask[hh, hf + hh] = 1.0
            hmask[h, :] = 1.0 - hmask[:h].sum(axis=0)         # divisor base (pad lanes -> 1)

            # GATConv bias folded into the BatchNorm affine: y = x*s + (b*s + t)
            scale_pad = np.zeros((1, wp), np.float32)
            shift_pad = np.zeros((1, wp), np.float32)
            scale_pad[0, :out_real] = bn_scale
            shift_pad[0, :out_real] = bias * bn_scale + bn_shift

            self.layers.append(((jnp.asarray(w_pad), jnp.asarray(a_pad),
                                 jnp.asarray(onesrow),
                                 jnp.asarray(hmask, jnp.bfloat16),
                                 jnp.asarray(scale_pad), jnp.asarray(shift_pad)),
                                h, out_dim, wp))
            self.layers_ref.append(((jnp.asarray(w), jnp.asarray(att_src),
                                     jnp.asarray(att_dst), jnp.asarray(bias),
                                     jnp.asarray(bn_scale), jnp.asarray(bn_shift)),
                                    h, concat))
            in_real = out_real
            in_pad = wp

        self.final_width = in_real
        self._jit_forward = jax.jit(self._forward_impl)

    # ------------------------------ forward -------------------------------- #
    def _forward_impl(self, x, edge_index):
        n, c = x.shape
        n128 = _round_up(n, LANE)
        t = _choose_tile(n128)
        n_pad = _round_up(n128, t)       # pad N to a tile multiple (tiles never shrink)
        tq = tk = t
        nq, nk = n_pad // tq, n_pad // tk
        c_pad = _round_up(c, LANE)

        # dense adjacency mask (src -> dst) built directly as int8; self-loops on
        # every (padded) node keep each softmax row non-empty and finite.
        adj = jnp.zeros((n_pad, n_pad), jnp.int8)
        adj = adj.at[edge_index[1], edge_index[0]].set(1)
        idx = jnp.arange(n_pad)
        adj = adj.at[idx, idx].set(1)
        # per-(dst tile, src tile) non-empty flags (scalar-prefetched block skip)
        blk = (jnp.max(adj.reshape(nq, tq, nk, tk), axis=(1, 3)) > 0)
        blk = blk.reshape(-1).astype(jnp.int32)

        z = jnp.zeros((n_pad, c_pad), jnp.float32).at[:n, :c].set(x)
        for (params, h, f, wp) in self.layers:
            z = gat_layer(z, adj, blk, params, heads=h, out_dim=f, wp=wp, tq=tq, tk=tk)
        return z[:n, :self.final_width]

    def forward(self, x, edge_index, edge_weight=None):
        # edge_weight ignored: GATConv without edge_dim does not use edge_attr.
        return self._jit_forward(x, edge_index)

    # plain-JAX reference (same dense formulation, un-padded, f32)
    def reference(self, x, edge_index, edge_weight=None):
        n = x.shape[0]
        adj = jnp.zeros((n, n), jnp.float32)
        adj = adj.at[edge_index[1], edge_index[0]].set(1.0)
        idx = jnp.arange(n)
        adj = adj.at[idx, idx].set(1.0)
        z = x
        for (params, h, concat) in self.layers_ref:
            w, att_src, att_dst, bias, bns, bnt = params
            f = w.shape[1] // h
            hmat = z @ w
            outs = []
            for hh in range(h):
                h_h = hmat[:, hh * f:(hh + 1) * f]
                a_s = h_h @ att_src[hh]
                a_d = h_h @ att_dst[hh]
                e = a_d[:, None] + a_s[None, :]
                e = jnp.where(e > 0, e, SLOPE * e)
                e = jnp.where(adj > 0, e, NEG_BIG)
                p = jnp.exp(e - e.max(axis=1, keepdims=True))
                alpha = p / p.sum(axis=1, keepdims=True)
                outs.append(alpha @ h_h)
            o = jnp.concatenate(outs, -1) if concat else sum(outs) / float(h)
            o = o + bias
            o = o * bns + bnt
            z = jnp.where(o > 0, o, SLOPE * o)
        return z


# ----------------------------------- main ----------------------------------- #
if __name__ == "__main__":
    key = jax.random.PRNGKey(0)
    kx, kp = jax.random.split(key)

    N, input_dim, hidden_dim, num_layers, heads = 16, 8, 16, 3, 2
    model = GATPallas(input_dim, hidden_dim, num_layers, heads=heads, key=kp)

    x = jax.random.normal(kx, (N, input_dim), jnp.float32)
    # deterministic ring graph (both directions), no duplicate edges
    ring = np.arange(N)
    edge_index = jnp.asarray(
        np.stack([np.concatenate([ring, (ring + 1) % N]),
                  np.concatenate([(ring + 1) % N, ring])]), dtype=jnp.int32)

    z = model.forward(x, edge_index, edge_weight=None)
    z = jax.block_until_ready(z)
    assert z.shape == (N, hidden_dim)

    z_ref = model.reference(x, edge_index)
    # bf16 attention weights / values bound the error at ~1e-2 relative across
    # the 3 layers (accumulation stays f32); 2e-2 is a comfortable margin.
    np.testing.assert_allclose(np.asarray(z), np.asarray(z_ref),
                               rtol=2e-2, atol=2e-2)
    print("KERNEL_OK")
</pallas_src>

<mosaic_0001>
module attributes {stable_mosaic.version = 11 : i64} {
  func.func @_gat_proj_kernel(%arg0: i32, %arg1: memref<128x128xf32, #tpu.memory_space<vmem>>, %arg2: memref<128x128xf32, #tpu.memory_space<vmem>>, %arg3: memref<128x128xf32, #tpu.memory_space<vmem>>, %arg4: memref<1x128xf32, #tpu.memory_space<vmem>>, %arg5: memref<128x128xbf16, #tpu.memory_space<vmem>>, %arg6: memref<128x128xf32, #tpu.memory_space<vmem>>) attributes {dimension_semantics = [#tpu.dimension_semantics<parallel>], iteration_bounds = array<i64: 1>, scalar_prefetch = 0 : i64, scratch_operands = 0 : i64, tpu.core_type = #tpu.core_type<tc>, window_params = [{transform_indices = @transform_0, window_bounds = array<i64: 128, 128>}, {pipeline_mode = #tpu.pipeline_mode<synchronous>, transform_indices = @transform_1, window_bounds = array<i64: 128, 128>}, {pipeline_mode = #tpu.pipeline_mode<synchronous>, transform_indices = @transform_2, window_bounds = array<i64: 128, 128>}, {pipeline_mode = #tpu.pipeline_mode<synchronous>, transform_indices = @transform_3, window_bounds = array<i64: 1, 128>}, {transform_indices = @transform_4, window_bounds = array<i64: 128, 128>}, {transform_indices = @transform_5, window_bounds = array<i64: 128, 128>}]} {
    %c0 = arith.constant 0 : index
    %c0_0 = arith.constant 0 : index
    %0 = vector.load %arg1[%c0, %c0_0] : memref<128x128xf32, #tpu.memory_space<vmem>>, vector<128x128xf32>
    %c0_1 = arith.constant 0 : index
    %c0_2 = arith.constant 0 : index
    %1 = vector.load %arg2[%c0_1, %c0_2] : memref<128x128xf32, #tpu.memory_space<vmem>>, vector<128x128xf32>
    %cst = arith.constant dense<0.000000e+00> : vector<128x128xf32>
    %2 = tpu.matmul %0, %1, %cst {dimension_numbers = #tpu.dot_dimension_numbers<[1], [0], [0], [1], [0, 0, 1, 1], [], []>} : vector<128x128xf32>, vector<128x128xf32>, vector<128x128xf32> -> vector<128x128xf32>
    %c0_3 = arith.constant 0 : index
    %c0_4 = arith.constant 0 : index
    %3 = vector.load %arg3[%c0_3, %c0_4] : memref<128x128xf32, #tpu.memory_space<vmem>>, vector<128x128xf32>
    %cst_5 = arith.constant dense<0.000000e+00> : vector<128x128xf32>
    %4 = tpu.matmul %2, %3, %cst_5 {dimension_numbers = #tpu.dot_dimension_numbers<[1], [0], [0], [1], [0, 0, 1, 1], [], []>} : vector<128x128xf32>, vector<128x128xf32>, vector<128x128xf32> -> vector<128x128xf32>
    %c0_6 = arith.constant 0 : index
    %c0_7 = arith.constant 0 : index
    %5 = vector.load %arg6[%c0_6, %c0_7] : memref<128x128xf32, #tpu.memory_space<vmem>>, vector<128x128xf32>
    tpu.vector_store %arg6[%c0_6, %c0_7], %4 {strides = array<i32>} : memref<128x128xf32, #tpu.memory_space<vmem>>, vector<128x128xf32>,
    %c0_8 = arith.constant 0 : index
    %c0_9 = arith.constant 0 : index
    %6 = vector.load %arg4[%c0_8, %c0_9] : memref<1x128xf32, #tpu.memory_space<vmem>>, vector<1x128xf32>
    %7 = vector.broadcast %6 : vector<1x128xf32> to vector<128x128xf32>
    %8 = arith.addf %2, %7 : vector<128x128xf32>
    %9 = arith.truncf %8 : vector<128x128xf32> to vector<128x128xbf16>
    %c0_10 = arith.constant 0 : index
    %c0_11 = arith.constant 0 : index
    %10 = vector.load %arg5[%c0_10, %c0_11] : memref<128x128xbf16, #tpu.memory_space<vmem>>, vector<128x128xbf16>
    tpu.vector_store %arg5[%c0_10, %c0_11], %9 {strides = array<i32>} : memref<128x128xbf16, #tpu.memory_space<vmem>>, vector<128x128xbf16>,
    return
  }
  func.func @transform_0(%arg0: i32) -> (i32, i32) {
    %c0_i32 = arith.constant 0 : i32
    %c0_i32_0 = arith.constant 0 : i32
    return %arg0, %c0_i32 : i32, i32
  }
  func.func @transform_1(%arg0: i32) -> (i32, i32) {
    %c0_i32 = arith.constant 0 : i32
    %c0_i32_0 = arith.constant 0 : i32
    %c0_i32_1 = arith.constant 0 : i32
    return %c0_i32, %c0_i32_0 : i32, i32
  }
  func.func @transform_2(%arg0: i32) -> (i32, i32) {
    %c0_i32 = arith.constant 0 : i32
    %c0_i32_0 = arith.constant 0 : i32
    %c0_i32_1 = arith.constant 0 : i32
    return %c0_i32, %c0_i32_0 : i32, i32
  }
  func.func @transform_3(%arg0: i32) -> (i32, i32) {
    %c0_i32 = arith.constant 0 : i32
    %c0_i32_0 = arith.constant 0 : i32
    %c0_i32_1 = arith.constant 0 : i32
    return %c0_i32, %c0_i32_0 : i32, i32
  }
  func.func @transform_4(%arg0: i32) -> (i32, i32) {
    %c0_i32 = arith.constant 0 : i32
    %c0_i32_0 = arith.constant 0 : i32
    return %arg0, %c0_i32 : i32, i32
  }
  func.func @transform_5(%arg0: i32) -> (i32, i32) {
    %c0_i32 = arith.constant 0 : i32
    %c0_i32_0 = arith.constant 0 : i32
    return %arg0, %c0_i32 : i32, i32
  }
}

module attributes {stable_mosaic.version = 11 : i64} {
  func.func @_gat_attn_kernel(%arg0: i32, %arg1: i32, %arg2: memref<1xi32, #tpu.memory_space<smem>>, %arg3: memref<128x128xi8, #tpu.memory_space<vmem>>, %arg4: memref<128x128xbf16, #tpu.memory_space<vmem>>, %arg5: memref<128x128xf32, #tpu.memory_space<vmem>>, %arg6: memref<2x128xf32, #tpu.memory_space<vmem>>, %arg7: memref<3x128xbf16, #tpu.memory_space<vmem>>, %arg8: memref<1x128xf32, #tpu.memory_space<vmem>>, %arg9: memref<1x128xf32, #tpu.memory_space<vmem>>, %arg10: memref<128x128xf32, #tpu.memory_space<vmem>>, %arg11: memref<128x128xf32, #tpu.memory_space<vmem>>) attributes {dimension_semantics = [#tpu.dimension_semantics<parallel>, #tpu.dimension_semantics<arbitrary>], iteration_bounds = array<i64: 1, 1>, scalar_prefetch = 1 : i64, scratch_operands = 1 : i64, tpu.core_type = #tpu.core_type<tc>, window_params = [{transform_indices = @transform_0, window_bounds = array<i64: 128, 128>}, {transform_indices = @transform_1, window_bounds = array<i64: 128, 128>}, {transform_indices = @transform_2, window_bounds = array<i64: 128, 128>}, {transform_indices = @transform_3, window_bounds = array<i64: 2, 128>}, {pipeline_mode = #tpu.pipeline_mode<synchronous>, transform_indices = @transform_4, window_bounds = array<i64: 3, 128>}, {pipeline_mode = #tpu.pipeline_mode<synchronous>, transform_indices = @transform_5, window_bounds = array<i64: 1, 128>}, {pipeline_mode = #tpu.pipeline_mode<synchronous>, transform_indices = @transform_6, window_bounds = array<i64: 1, 128>}, {transform_indices = @transform_7, window_bounds = array<i64: 128, 128>}]} {
    %c0_i32 = arith.constant 0 : i32
    %0 = arith.cmpi eq, %arg1, %c0_i32 : i32
    %1 = arith.extui %0 : i1 to i32
    %c0_i32_0 = arith.constant 0 : i32
    %2 = arith.cmpi ne, %1, %c0_i32_0 : i32
    scf.if %2 {
      %cst = arith.constant 0.000000e+00 : f32
      %13 = vector.broadcast %cst : f32 to vector<128x128xf32>
      %c0 = arith.constant 0 : index
      %c0_5 = arith.constant 0 : index
      %14 = vector.load %arg11[%c0, %c0_5] : memref<128x128xf32, #tpu.memory_space<vmem>>, vector<128x128xf32>
      tpu.vector_store %arg11[%c0, %c0_5], %13 {strides = array<i32>} : memref<128x128xf32, #tpu.memory_space<vmem>>, vector<128x128xf32>,
    } else {
    }
    %c1_i32 = arith.constant 1 : i32
    %3 = arith.muli %arg0, %c1_i32 : i32
    %4 = arith.addi %3, %arg1 : i32
    %5 = arith.index_cast %4 : i32 to index
    %6 = memref.load %arg2[%5] : memref<1xi32, #tpu.memory_space<smem>>
    %c0_i32_1 = arith.constant 0 : i32
    %7 = arith.cmpi sgt, %6, %c0_i32_1 : i32
    %8 = arith.extui %7 : i1 to i32
    %c0_i32_2 = arith.constant 0 : i32
    %9 = arith.cmpi ne, %8, %c0_i32_2 : i32
    scf.if %9 {
      %c0 = arith.constant 0 : index
      %c0_5 = arith.constant 0 : index
      %13 = vector.load %arg3[%c0, %c0_5] : memref<128x128xi8, #tpu.memory_space<vmem>>, vector<128x128xi8>
      %14 = arith.sitofp %13 : vector<128x128xi8> to vector<128x128xf32>
      %c0_6 = arith.constant 0 : index
      %c0_7 = arith.constant 0 : index
      %15 = vector.load %arg4[%c0_6, %c0_7] : memref<128x128xbf16, #tpu.memory_space<vmem>>, vector<128x128xbf16>
      %c0_8 = arith.constant 0 : index
      %c0_9 = arith.constant 0 : index
      %16 = vector.load %arg5[%c0_8, %c0_9] : memref<128x128xf32, #tpu.memory_space<vmem>>, vector<128x1xf32>
      %c0_10 = arith.constant 0 : index
      %c4 = arith.constant 4 : index
      %17 = vector.load %arg5[%c0_10, %c4] : memref<128x128xf32, #tpu.memory_space<vmem>>, vector<128x1xf32>
      %c0_11 = arith.constant 0 : index
      %c0_12 = arith.constant 0 : index
      %18 = vector.load %arg6[%c0_11, %c0_12] : memref<2x128xf32, #tpu.memory_space<vmem>>, vector<1x128xf32>
      %19 = vector.broadcast %16 : vector<128x1xf32> to vector<128x128xf32>
      %20 = vector.broadcast %18 : vector<1x128xf32> to vector<128x128xf32>
      %21 = arith.addf %19, %20 : vector<128x128xf32>
      %cst = arith.constant 2.000000e-01 : f32
      %22 = vector.broadcast %cst : f32 to vector<128x128xf32>
      %23 = arith.mulf %22, %21 : vector<128x128xf32>
      %24 = arith.maximumf %21, %23 : vector<128x128xf32>
      %25 = vector.broadcast %17 : vector<128x1xf32> to vector<128x128xf32>
      %26 = arith.subf %24, %25 : vector<128x128xf32>
      %27 = math.exp %26 : vector<128x128xf32>
      %28 = arith.mulf %27, %14 : vector<128x128xf32>
      %29 = arith.truncf %28 : vector<128x128xf32> to vector<128x128xbf16>
      %c0_13 = arith.constant 0 : index
      %c0_14 = arith.constant 0 : index
      %30 = vector.load %arg7[%c0_13, %c0_14] : memref<3x128xbf16, #tpu.memory_space<vmem>>, vector<1x128xbf16>
      %31 = vector.broadcast %30 : vector<1x128xbf16> to vector<128x128xbf16>
      %32 = arith.mulf %15, %31 : vector<128x128xbf16>
      %cst_15 = arith.constant dense<0.000000e+00> : vector<128x128xf32>
      %33 = tpu.matmul %29, %32, %cst_15 {dimension_numbers = #tpu.dot_dimension_numbers<[1], [0], [0], [1], [0, 0, 1, 1], [], []>} : vector<128x128xbf16>, vector<128x128xbf16>, vector<128x128xf32> -> vector<128x128xf32>
      %c0_16 = arith.constant 0 : index
      %c1 = arith.constant 1 : index
      %34 = vector.load %arg5[%c0_16, %c1] : memref<128x128xf32, #tpu.memory_space<vmem>>, vector<128x1xf32>
      %c0_17 = arith.constant 0 : index
      %c5 = arith.constant 5 : index
      %35 = vector.load %arg5[%c0_17, %c5] : memref<128x128xf32, #tpu.memory_space<vmem>>, vector<128x1xf32>
      %c1_18 = arith.constant 1 : index
      %c0_19 = arith.constant 0 : index
      %36 = vector.load %arg6[%c1_18, %c0_19] : memref<2x128xf32, #tpu.memory_space<vmem>>, vector<1x128xf32>
      %37 = vector.broadcast %34 : vector<128x1xf32> to vector<128x128xf32>
      %38 = vector.broadcast %36 : vector<1x128xf32> to vector<128x128xf32>
      %39 = arith.addf %37, %38 : vector<128x128xf32>
      %cst_20 = arith.constant 2.000000e-01 : f32
      %40 = vector.broadcast %cst_20 : f32 to vector<128x128xf32>
      %41 = arith.mulf %40, %39 : vector<128x128xf32>
      %42 = arith.maximumf %39, %41 : vector<128x128xf32>
      %43 = vector.broadcast %35 : vector<128x1xf32> to vector<128x128xf32>
      %44 = arith.subf %42, %43 : vector<128x128xf32>
      %45 = math.exp %44 : vector<128x128xf32>
      %46 = arith.mulf %45, %14 : vector<128x128xf32>
      %47 = arith.truncf %46 : vector<128x128xf32> to vector<128x128xbf16>
      %c1_21 = arith.constant 1 : index
      %c0_22 = arith.constant 0 : index
      %48 = vector.load %arg7[%c1_21, %c0_22] : memref<3x128xbf16, #tpu.memory_space<vmem>>, vector<1x128xbf16>
      %49 = vector.broadcast %48 : vector<1x128xbf16> to vector<128x128xbf16>
      %50 = arith.mulf %15, %49 : vector<128x128xbf16>
      %cst_23 = arith.constant dense<0.000000e+00> : vector<128x128xf32>
      %51 = tpu.matmul %47, %50, %cst_23 {dimension_numbers = #tpu.dot_dimension_numbers<[1], [0], [0], [1], [0, 0, 1, 1], [], []>} : vector<128x128xbf16>, vector<128x128xbf16>, vector<128x128xf32> -> vector<128x128xf32>
      %52 = arith.addf %33, %51 : vector<128x128xf32>
      %c0_24 = arith.constant 0 : index
      %c0_25 = arith.constant 0 : index
      %53 = vector.load %arg11[%c0_24, %c0_25] : memref<128x128xf32, #tpu.memory_space<vmem>>, vector<128x128xf32>
      %54 = arith.addf %53, %52 : vector<128x128xf32>
      %c0_26 = arith.constant 0 : index
      %c0_27 = arith.constant 0 : index
      %55 = vector.load %arg11[%c0_26, %c0_27] : memref<128x128xf32, #tpu.memory_space<vmem>>, vector<128x128xf32>
      tpu.vector_store %arg11[%c0_26, %c0_27], %54 {strides = array<i32>} : memref<128x128xf32, #tpu.memory_space<vmem>>, vector<128x128xf32>,
    } else {
    }
    %c0_i32_3 = arith.constant 0 : i32
    %10 = arith.cmpi eq, %arg1, %c0_i32_3 : i32
    %11 = arith.extui %10 : i1 to i32
    %c0_i32_4 = arith.constant 0 : i32
    %12 = arith.cmpi ne, %11, %c0_i32_4 : i32
    scf.if %12 {
      %c0 = arith.constant 0 : index
      %c0_5 = arith.constant 0 : index
      %13 = vector.load %arg11[%c0, %c0_5] : memref<128x128xf32, #tpu.memory_space<vmem>>, vector<128x128xf32>
      %c2 = arith.constant 2 : index
      %c0_6 = arith.constant 0 : index
      %14 = vector.load %arg7[%c2, %c0_6] : memref<3x128xbf16, #tpu.memory_space<vmem>>, vector<1x128xbf16>
      %15 = arith.extf %14 : vector<1x128xbf16> to vector<1x128xf32>
      %16 = vector.extract_strided_slice %13 {offsets = [0, 32], sizes = [128, 1], strides = [1, 1]} : vector<128x128xf32> to vector<128x1xf32>
      %c0_7 = arith.constant 0 : index
      %c0_8 = arith.constant 0 : index
      %17 = vector.load %arg7[%c0_7, %c0_8] : memref<3x128xbf16, #tpu.memory_space<vmem>>, vector<1x128xbf16>
      %18 = arith.extf %17 : vector<1x128xbf16> to vector<1x128xf32>
      %19 = vector.broadcast %16 : vector<128x1xf32> to vector<128x128xf32>
      %20 = vector.broadcast %18 : vector<1x128xf32> to vector<128x128xf32>
      %21 = arith.mulf %19, %20 : vector<128x128xf32>
      %22 = vector.broadcast %15 : vector<1x128xf32> to vector<128x128xf32>
      %23 = arith.addf %22, %21 : vector<128x128xf32>
      %24 = vector.extract_strided_slice %13 {offsets = [0, 33], sizes = [128, 1], strides = [1, 1]} : vector<128x128xf32> to vector<128x1xf32>
      %c1 = arith.constant 1 : index
      %c0_9 = arith.constant 0 : index
      %25 = vector.load %arg7[%c1, %c0_9] : memref<3x128xbf16, #tpu.memory_space<vmem>>, vector<1x128xbf16>
      %26 = arith.extf %25 : vector<1x128xbf16> to vector<1x128xf32>
      %27 = vector.broadcast %24 : vector<128x1xf32> to vector<128x128xf32>
      %28 = vector.broadcast %26 : vector<1x128xf32> to vector<128x128xf32>
      %29 = arith.mulf %27, %28 : vector<128x128xf32>
      %30 = arith.addf %23, %29 : vector<128x128xf32>
      %cst = arith.constant 1.000000e-30 : f32
      %31 = vector.broadcast %cst : f32 to vector<128x128xf32>
      %32 = arith.maximumf %30, %31 : vector<128x128xf32>
      %33 = tpu.reciprocal %32 {approx = true} : vector<128x128xf32> -> vector<128x128xf32>
      %34 = arith.mulf %32, %33 : vector<128x128xf32>
      %cst_10 = arith.constant 2.000000e+00 : f32
      %35 = vector.broadcast %cst_10 : f32 to vector<128x128xf32>
      %36 = arith.subf %35, %34 : vector<128x128xf32>
      %37 = arith.mulf %33, %36 : vector<128x128xf32>
      %38 = arith.mulf %13, %37 : vector<128x128xf32>
      %c0_11 = arith.constant 0 : index
      %c0_12 = arith.constant 0 : index
      %39 = vector.load %arg8[%c0_11, %c0_12] : memref<1x128xf32, #tpu.memory_space<vmem>>, vector<1x128xf32>
      %40 = vector.broadcast %39 : vector<1x128xf32> to vector<128x128xf32>
      %41 = arith.mulf %38, %40 : vector<128x128xf32>
      %c0_13 = arith.constant 0 : index
      %c0_14 = arith.constant 0 : index
      %42 = vector.load %arg9[%c0_13, %c0_14] : memref<1x128xf32, #tpu.memory_space<vmem>>, vector<1x128xf32>
      %43 = vector.broadcast %42 : vector<1x128xf32> to vector<128x128xf32>
      %44 = arith.addf %41, %43 : vector<128x128xf32>
      %cst_15 = arith.constant 2.000000e-01 : f32
      %45 = vector.broadcast %cst_15 : f32 to vector<128x128xf32>
      %46 = arith.mulf %45, %44 : vector<128x128xf32>
      %47 = arith.maximumf %44, %46 : vector<128x128xf32>
      %c0_16 = arith.constant 0 : index
      %c0_17 = arith.constant 0 : index
      %48 = vector.load %arg10[%c0_16, %c0_17] : memref<128x128xf32, #tpu.memory_space<vmem>>, vector<128x128xf32>
      tpu.vector_store %arg10[%c0_16, %c0_17], %47 {strides = array<i32>} : memref<128x128xf32, #tpu.memory_space<vmem>>, vector<128x128xf32>,
    } else {
    }
    return
  }
  func.func @transform_0(%arg0: i32, %arg1: i32, %arg2: memref<1xi32, #tpu.memory_space<smem>>) -> (i32, i32) {
    %c0_i32 = arith.constant 0 : i32
    return %arg0, %arg1 : i32, i32
  }
  func.func @transform_1(%arg0: i32, %arg1: i32, %arg2: memref<1xi32, #tpu.memory_space<smem>>) -> (i32, i32) {
    %c0_i32 = arith.constant 0 : i32
    %c0_i32_0 = arith.constant 0 : i32
    return %arg1, %c0_i32 : i32, i32
  }
  func.func @transform_2(%arg0: i32, %arg1: i32, %arg2: memref<1xi32, #tpu.memory_space<smem>>) -> (i32, i32) {
    %c0_i32 = arith.constant 0 : i32
    %c0_i32_0 = arith.constant 0 : i32
    return %arg0, %c0_i32 : i32, i32
  }
  func.func @transform_3(%arg0: i32, %arg1: i32, %arg2: memref<1xi32, #tpu.memory_space<smem>>) -> (i32, i32) {
    %c0_i32 = arith.constant 0 : i32
    %c0_i32_0 = arith.constant 0 : i32
    return %c0_i32, %arg1 : i32, i32
  }
  func.func @transform_4(%arg0: i32, %arg1: i32, %arg2: memref<1xi32, #tpu.memory_space<smem>>) -> (i32, i32) {
    %c0_i32 = arith.constant 0 : i32
    %c0_i32_0 = arith.constant 0 : i32
    %c0_i32_1 = arith.constant 0 : i32
    return %c0_i32, %c0_i32_0 : i32, i32
  }
  func.func @transform_5(%arg0: i32, %arg1: i32, %arg2: memref<1xi32, #tpu.memory_space<smem>>) -> (i32, i32) {
    %c0_i32 = arith.constant 0 : i32
    %c0_i32_0 = arith.constant 0 : i32
    %c0_i32_1 = arith.constant 0 : i32
    return %c0_i32, %c0_i32_0 : i32, i32
  }
  func.func @transform_6(%arg0: i32, %arg1: i32, %arg2: memref<1xi32, #tpu.memory_space<smem>>) -> (i32, i32) {
    %c0_i32 = arith.constant 0 : i32
    %c0_i32_0 = arith.constant 0 : i32
    %c0_i32_1 = arith.constant 0 : i32
    return %c0_i32, %c0_i32_0 : i32, i32
  }
  func.func @transform_7(%arg0: i32, %arg1: i32, %arg2: memref<1xi32, #tpu.memory_space<smem>>) -> (i32, i32) {
    %c0_i32 = arith.constant 0 : i32
    %c0_i32_0 = arith.constant 0 : i32
    return %arg0, %c0_i32 : i32, i32
  }
}

module attributes {stable_mosaic.version = 11 : i64} {
  func.func @_gat_attn_kernel(%arg0: i32, %arg1: i32, %arg2: memref<1xi32, #tpu.memory_space<smem>>, %arg3: memref<128x128xi8, #tpu.memory_space<vmem>>, %arg4: memref<128x128xbf16, #tpu.memory_space<vmem>>, %arg5: memref<128x128xf32, #tpu.memory_space<vmem>>, %arg6: memref<1x128xf32, #tpu.memory_space<vmem>>, %arg7: memref<2x128xbf16, #tpu.memory_space<vmem>>, %arg8: memref<1x128xf32, #tpu.memory_space<vmem>>, %arg9: memref<1x128xf32, #tpu.memory_space<vmem>>, %arg10: memref<128x128xf32, #tpu.memory_space<vmem>>, %arg11: memref<128x128xf32, #tpu.memory_space<vmem>>) attributes {dimension_semantics = [#tpu.dimension_semantics<parallel>, #tpu.dimension_semantics<arbitrary>], iteration_bounds = array<i64: 1, 1>, scalar_prefetch = 1 : i64, scratch_operands = 1 : i64, tpu.core_type = #tpu.core_type<tc>, window_params = [{transform_indices = @transform_0, window_bounds = array<i64: 128, 128>}, {transform_indices = @transform_1, window_bounds = array<i64: 128, 128>}, {transform_indices = @transform_2, window_bounds = array<i64: 128, 128>}, {transform_indices = @transform_3, window_bounds = array<i64: 1, 128>}, {pipeline_mode = #tpu.pipeline_mode<synchronous>, transform_indices = @transform_4, window_bounds = array<i64: 2, 128>}, {pipeline_mode = #tpu.pipeline_mode<synchronous>, transform_indices = @transform_5, window_bounds = array<i64: 1, 128>}, {pipeline_mode = #tpu.pipeline_mode<synchronous>, transform_indices = @transform_6, window_bounds = array<i64: 1, 128>}, {transform_indices = @transform_7, window_bounds = array<i64: 128, 128>}]} {
    %c0_i32 = arith.constant 0 : i32
    %0 = arith.cmpi eq, %arg1, %c0_i32 : i32
    %1 = arith.extui %0 : i1 to i32
    %c0_i32_0 = arith.constant 0 : i32
    %2 = arith.cmpi ne, %1, %c0_i32_0 : i32
    scf.if %2 {
      %cst = arith.constant 0.000000e+00 : f32
      %13 = vector.broadcast %cst : f32 to vector<128x128xf32>
      %c0 = arith.constant 0 : index
      %c0_5 = arith.constant 0 : index
      %14 = vector.load %arg11[%c0, %c0_5] : memref<128x128xf32, #tpu.memory_space<vmem>>, vector<128x128xf32>
      tpu.vector_store %arg11[%c0, %c0_5], %13 {strides = array<i32>} : memref<128x128xf32, #tpu.memory_space<vmem>>, vector<128x128xf32>,
    } else {
    }
    %c1_i32 = arith.constant 1 : i32
    %3 = arith.muli %arg0, %c1_i32 : i32
    %4 = arith.addi %3, %arg1 : i32
    %5 = arith.index_cast %4 : i32 to index
    %6 = memref.load %arg2[%5] : memref<1xi32, #tpu.memory_space<smem>>
    %c0_i32_1 = arith.constant 0 : i32
    %7 = arith.cmpi sgt, %6, %c0_i32_1 : i32
    %8 = arith.extui %7 : i1 to i32
    %c0_i32_2 = arith.constant 0 : i32
    %9 = arith.cmpi ne, %8, %c0_i32_2 : i32
    scf.if %9 {
      %c0 = arith.constant 0 : index
      %c0_5 = arith.constant 0 : index
      %13 = vector.load %arg3[%c0, %c0_5] : memref<128x128xi8, #tpu.memory_space<vmem>>, vector<128x128xi8>
      %14 = arith.sitofp %13 : vector<128x128xi8> to vector<128x128xf32>
      %c0_6 = arith.constant 0 : index
      %c0_7 = arith.constant 0 : index
      %15 = vector.load %arg4[%c0_6, %c0_7] : memref<128x128xbf16, #tpu.memory_space<vmem>>, vector<128x128xbf16>
      %c0_8 = arith.constant 0 : index
      %c0_9 = arith.constant 0 : index
      %16 = vector.load %arg5[%c0_8, %c0_9] : memref<128x128xf32, #tpu.memory_space<vmem>>, vector<128x1xf32>
      %c0_10 = arith.constant 0 : index
      %c2 = arith.constant 2 : index
      %17 = vector.load %arg5[%c0_10, %c2] : memref<128x128xf32, #tpu.memory_space<vmem>>, vector<128x1xf32>
      %c0_11 = arith.constant 0 : index
      %c0_12 = arith.constant 0 : index
      %18 = vector.load %arg6[%c0_11, %c0_12] : memref<1x128xf32, #tpu.memory_space<vmem>>, vector<1x128xf32>
      %19 = vector.broadcast %16 : vector<128x1xf32> to vector<128x128xf32>
      %20 = vector.broadcast %18 : vector<1x128xf32> to vector<128x128xf32>
      %21 = arith.addf %19, %20 : vector<128x128xf32>
      %cst = arith.constant 2.000000e-01 : f32
      %22 = vector.broadcast %cst : f32 to vector<128x128xf32>
      %23 = arith.mulf %22, %21 : vector<128x128xf32>
      %24 = arith.maximumf %21, %23 : vector<128x128xf32>
      %25 = vector.broadcast %17 : vector<128x1xf32> to vector<128x128xf32>
      %26 = arith.subf %24, %25 : vector<128x128xf32>
      %27 = math.exp %26 : vector<128x128xf32>
      %28 = arith.mulf %27, %14 : vector<128x128xf32>
      %29 = arith.truncf %28 : vector<128x128xf32> to vector<128x128xbf16>
      %cst_13 = arith.constant dense<0.000000e+00> : vector<128x128xf32>
      %30 = tpu.matmul %29, %15, %cst_13 {dimension_numbers = #tpu.dot_dimension_numbers<[1], [0], [0], [1], [0, 0, 1, 1], [], []>} : vector<128x128xbf16>, vector<128x128xbf16>, vector<128x128xf32> -> vector<128x128xf32>
      %c0_14 = arith.constant 0 : index
      %c0_15 = arith.constant 0 : index
      %31 = vector.load %arg11[%c0_14, %c0_15] : memref<128x128xf32, #tpu.memory_space<vmem>>, vector<128x128xf32>
      %32 = arith.addf %31, %30 : vector<128x128xf32>
      %c0_16 = arith.constant 0 : index
      %c0_17 = arith.constant 0 : index
      %33 = vector.load %arg11[%c0_16, %c0_17] : memref<128x128xf32, #tpu.memory_space<vmem>>, vector<128x128xf32>
      tpu.vector_store %arg11[%c0_16, %c0_17], %32 {strides = array<i32>} : memref<128x128xf32, #tpu.memory_space<vmem>>, vector<128x128xf32>,
    } else {
    }
    %c0_i32_3 = arith.constant 0 : i32
    %10 = arith.cmpi eq, %arg1, %c0_i32_3 : i32
    %11 = arith.extui %10 : i1 to i32
    %c0_i32_4 = arith.constant 0 : i32
    %12 = arith.cmpi ne, %11, %c0_i32_4 : i32
    scf.if %12 {
      %c0 = arith.constant 0 : index
      %c0_5 = arith.constant 0 : index
      %13 = vector.load %arg11[%c0, %c0_5] : memref<128x128xf32, #tpu.memory_space<vmem>>, vector<128x128xf32>
      %c1 = arith.constant 1 : index
      %c0_6 = arith.constant 0 : index
      %14 = vector.load %arg7[%c1, %c0_6] : memref<2x128xbf16, #tpu.memory_space<vmem>>, vector<1x128xbf16>
      %15 = arith.extf %14 : vector<1x128xbf16> to vector<1x128xf32>
      %16 = vector.extract_strided_slice %13 {offsets = [0, 16], sizes = [128, 1], strides = [1, 1]} : vector<128x128xf32> to vector<128x1xf32>
      %c0_7 = arith.constant 0 : index
      %c0_8 = arith.constant 0 : index
      %17 = vector.load %arg7[%c0_7, %c0_8] : memref<2x128xbf16, #tpu.memory_space<vmem>>, vector<1x128xbf16>
      %18 = arith.extf %17 : vector<1x128xbf16> to vector<1x128xf32>
      %19 = vector.broadcast %16 : vector<128x1xf32> to vector<128x128xf32>
      %20 = vector.broadcast %18 : vector<1x128xf32> to vector<128x128xf32>
      %21 = arith.mulf %19, %20 : vector<128x128xf32>
      %22 = vector.broadcast %15 : vector<1x128xf32> to vector<128x128xf32>
      %23 = arith.addf %22, %21 : vector<128x128xf32>
      %cst = arith.constant 1.000000e-30 : f32
      %24 = vector.broadcast %cst : f32 to vector<128x128xf32>
      %25 = arith.maximumf %23, %24 : vector<128x128xf32>
      %26 = tpu.reciprocal %25 {approx = true} : vector<128x128xf32> -> vector<128x128xf32>
      %27 = arith.mulf %25, %26 : vector<128x128xf32>
      %cst_9 = arith.constant 2.000000e+00 : f32
      %28 = vector.broadcast %cst_9 : f32 to vector<128x128xf32>
      %29 = arith.subf %28, %27 : vector<128x128xf32>
      %30 = arith.mulf %26, %29 : vector<128x128xf32>
      %31 = arith.mulf %13, %30 : vector<128x128xf32>
      %c0_10 = arith.constant 0 : index
      %c0_11 = arith.constant 0 : index
      %32 = vector.load %arg8[%c0_10, %c0_11] : memref<1x128xf32, #tpu.memory_space<vmem>>, vector<1x128xf32>
      %33 = vector.broadcast %32 : vector<1x128xf32> to vector<128x128xf32>
      %34 = arith.mulf %31, %33 : vector<128x128xf32>
      %c0_12 = arith.constant 0 : index
      %c0_13 = arith.constant 0 : index
      %35 = vector.load %arg9[%c0_12, %c0_13] : memref<1x128xf32, #tpu.memory_space<vmem>>, vector<1x128xf32>
      %36 = vector.broadcast %35 : vector<1x128xf32> to vector<128x128xf32>
      %37 = arith.addf %34, %36 : vector<128x128xf32>
      %cst_14 = arith.constant 2.000000e-01 : f32
      %38 = vector.broadcast %cst_14 : f32 to vector<128x128xf32>
      %39 = arith.mulf %38, %37 : vector<128x128xf32>
      %40 = arith.maximumf %37, %39 : vector<128x128xf32>
      %c0_15 = arith.constant 0 : index
      %c0_16 = arith.constant 0 : index
      %41 = vector.load %arg10[%c0_15, %c0_16] : memref<128x128xf32, #tpu.memory_space<vmem>>, vector<128x128xf32>
      tpu.vector_store %arg10[%c0_15, %c0_16], %40 {strides = array<i32>} : memref<128x128xf32, #tpu.memory_space<vmem>>, vector<128x128xf32>,
    } else {
    }
    return
  }
  func.func @transform_0(%arg0: i32, %arg1: i32, %arg2: memref<1xi32, #tpu.memory_space<smem>>) -> (i32, i32) {
    %c0_i32 = arith.constant 0 : i32
    return %arg0, %arg1 : i32, i32
  }
  func.func @transform_1(%arg0: i32, %arg1: i32, %arg2: memref<1xi32, #tpu.memory_space<smem>>) -> (i32, i32) {
    %c0_i32 = arith.constant 0 : i32
    %c0_i32_0 = arith.constant 0 : i32
    return %arg1, %c0_i32 : i32, i32
  }
  func.func @transform_2(%arg0: i32, %arg1: i32, %arg2: memref<1xi32, #tpu.memory_space<smem>>) -> (i32, i32) {
    %c0_i32 = arith.constant 0 : i32
    %c0_i32_0 = arith.constant 0 : i32
    return %arg0, %c0_i32 : i32, i32
  }
  func.func @transform_3(%arg0: i32, %arg1: i32, %arg2: memref<1xi32, #tpu.memory_space<smem>>) -> (i32, i32) {
    %c0_i32 = arith.constant 0 : i32
    %c0_i32_0 = arith.constant 0 : i32
    return %c0_i32, %arg1 : i32, i32
  }
  func.func @transform_4(%arg0: i32, %arg1: i32, %arg2: memref<1xi32, #tpu.memory_space<smem>>) -> (i32, i32) {
    %c0_i32 = arith.constant 0 : i32
    %c0_i32_0 = arith.constant 0 : i32
    %c0_i32_1 = arith.constant 0 : i32
    return %c0_i32, %c0_i32_0 : i32, i32
  }
  func.func @transform_5(%arg0: i32, %arg1: i32, %arg2: memref<1xi32, #tpu.memory_space<smem>>) -> (i32, i32) {
    %c0_i32 = arith.constant 0 : i32
    %c0_i32_0 = arith.constant 0 : i32
    %c0_i32_1 = arith.constant 0 : i32
    return %c0_i32, %c0_i32_0 : i32, i32
  }
  func.func @transform_6(%arg0: i32, %arg1: i32, %arg2: memref<1xi32, #tpu.memory_space<smem>>) -> (i32, i32) {
    %c0_i32 = arith.constant 0 : i32
    %c0_i32_0 = arith.constant 0 : i32
    %c0_i32_1 = arith.constant 0 : i32
    return %c0_i32, %c0_i32_0 : i32, i32
  }
  func.func @transform_7(%arg0: i32, %arg1: i32, %arg2: memref<1xi32, #tpu.memory_space<smem>>) -> (i32, i32) {
    %c0_i32 = arith.constant 0 : i32
    %c0_i32_0 = arith.constant 0 : i32
    return %arg0, %c0_i32 : i32, i32
  }
}

</mosaic_0001>

<llo_original>
// kernel: _forward_impl.6
$region0: #{_forward_impl.6}
  #allocation0 [shape = 'u32[]', space=smem, size = 0x4, offset = 0x4, fixed_abs, tag = 'smem constant byte address 0x4 - core index']
  #allocation1 [shape = 'u32[144,128]{1,0:T(1,128)}', space=vmem, size = 0x12000, scoped, tag = 'internal scratch']
  %s0 = inlined_call_operand.vmem [shape: f32[128,128], index: 0, kind: input, shape index: {}]
  %s1 = inlined_call_operand.vmem [shape: f32[128,128], index: 1, kind: input, shape index: {}]
  %s2 = inlined_call_operand.vmem [shape: f32[128,128], index: 2, kind: input, shape index: {}]
  %s3 = inlined_call_operand.vmem [shape: f32[1,128], index: 3, kind: input, shape index: {}]
  %s4 = inlined_call_operand.vmem [shape: bf16[128,128], index: 4, kind: output, shape index: {0}]
  %s5 = inlined_call_operand.vmem [shape: f32[128,128], index: 5, kind: output, shape index: {1}]
  %6 = xla_tuple %s4, %s5
  %s7 = sld [smem:[#allocation0]]
  $region34: #{_forward_impl.6} parent=0
    _
  %s9 = ssub.s32 1, %s7
  %s10 = scalar_select 0, %s9, %s7
  // Predicated region
  $region2: #{_forward_impl.6} parent=0 // pred_check
    _
  $region3: #{_forward_impl.6} parent=0 // pred_check_branch
    %12 = sbr.rel (0) target = $region5
  $region4: #{_forward_impl.6} parent=0 // pred_region
    _
  $region5: #{_forward_impl.6} parent=0 // pred_fallthru
    _
  // Predicated region
  $region6: #{_forward_impl.6} parent=0 // pred_check
    _
  $region7: #{_forward_impl.6} parent=0 // pred_check_branch
    %14 = sbr.rel (0) target = $region9
  $region8: #{_forward_impl.6} parent=0 // pred_region
    _
  $region9: #{_forward_impl.6} parent=0 // pred_fallthru
    _
  // Predicated region
  $region10: #{_forward_impl.6} parent=0 // pred_check
    _
  $region11: #{_forward_impl.6} parent=0 // pred_check_branch
    %16 = sbr.rel (0) target = $region13
  $region12: #{_forward_impl.6} parent=0 // pred_region
    _
  $region13: #{_forward_impl.6} parent=0 // pred_fallthru
    _
  // Predicated region
  $region14: #{_forward_impl.6} parent=0 // pred_check
    _
  $region15: #{_forward_impl.6} parent=0 // pred_check_branch
    %18 = sbr.rel (0) target = $region17
  $region16: #{_forward_impl.6} parent=0 // pred_region
    _
  $region17: #{_forward_impl.6} parent=0 // pred_fallthru
    _
  %v19 = vld [vmem:[%s0] sm:$0xff]
  %v20 = vld [vmem:[%s0 + $0x8] sm:$0xff]
  %v21 = vld [vmem:[%s0 + $0x10] sm:$0xff]
  %v22 = vld [vmem:[%s0 + $0x18] sm:$0xff]
  %v23 = vld [vmem:[%s0 + $0x20] sm:$0xff]
  %v24 = vld [vmem:[%s0 + $0x28] sm:$0xff]
  %v25 = vld [vmem:[%s0 + $0x30] sm:$0xff]
  %v26 = vld [vmem:[%s0 + $0x38] sm:$0xff]
  %v27 = vld [vmem:[%s0 + $0x40] sm:$0xff]
  %v28 = vld [vmem:[%s0 + $0x48] sm:$0xff]
  %v29 = vld [vmem:[%s0 + $0x50] sm:$0xff]
  %v30 = vld [vmem:[%s0 + $0x58] sm:$0xff]
  %v31 = vld [vmem:[%s0 + $0x60] sm:$0xff]
  %v32 = vld [vmem:[%s0 + $0x68] sm:$0xff]
  %v33 = vld [vmem:[%s0 + $0x70] sm:$0xff]
  %v34 = vld [vmem:[%s0 + $0x78] sm:$0xff]
  %v35 = vld [vmem:[%s1] sm:$0xff]
  %v36 = vld [vmem:[%s1 + $0x8] sm:$0xff]
  %v37 = vld [vmem:[%s1 + $0x10] sm:$0xff]
  %v38 = vld [vmem:[%s1 + $0x18] sm:$0xff]
  %v39 = vld [vmem:[%s1 + $0x20] sm:$0xff]
  %v40 = vld [vmem:[%s1 + $0x28] sm:$0xff]
  %v41 = vld [vmem:[%s1 + $0x30] sm:$0xff]
  %v42 = vld [vmem:[%s1 + $0x38] sm:$0xff]
  %v43 = vld [vmem:[%s1 + $0x40] sm:$0xff]
  %v44 = vld [vmem:[%s1 + $0x48] sm:$0xff]
  %v45 = vld [vmem:[%s1 + $0x50] sm:$0xff]
  %v46 = vld [vmem:[%s1 + $0x58] sm:$0xff]
  %v47 = vld [vmem:[%s1 + $0x60] sm:$0xff]
  %v48 = vld [vmem:[%s1 + $0x68] sm:$0xff]
  %v49 = vld [vmem:[%s1 + $0x70] sm:$0xff]
  %v50 = vld [vmem:[%s1 + $0x78] sm:$0xff]
  %51 = vmatprep.subr.mxu0 0.0
  %52 = vmatpush1.msra.mxu0 %v35
  %53 = vmatprep.subr.mxu0 0.0
  %54 = vmatpush1.msra.mxu0 %v36
  %55 = vmatprep.subr.mxu0 0.0
  %56 = vmatpush1.msra.mxu0 %v37
  %57 = vmatprep.subr.mxu0 0.0
  %58 = vmatpush1.msra.mxu0 %v38
  %59 = vmatprep.subr.mxu0 0.0
  %60 = vmatpush1.msra.mxu0 %v39
  %61 = vmatprep.subr.mxu0 0.0
  %62 = vmatpush1.msra.mxu0 %v40
  %63 = vmatprep.subr.mxu0 0.0
  %64 = vmatpush1.msra.mxu0 %v41
  %65 = vmatprep.subr.mxu0 0.0
  %66 = vmatpush1.msra.mxu0 %v42
  %67 = vmatprep.subr.mxu0 0.0
  %68 = vmatpush1.msra.mxu0 %v43
  %69 = vmatprep.subr.mxu0 0.0
  %70 = vmatpush1.msra.mxu0 %v44
  %71 = vmatprep.subr.mxu0 0.0
  %72 = vmatpush1.msra.mxu0 %v45
  %73 = vmatprep.subr.mxu0 0.0
  %74 = vmatpush1.msra.mxu0 %v46
  %75 = vmatprep.subr.mxu0 0.0
  %76 = vmatpush1.msra.mxu0 %v47
  %77 = vmatprep.subr.mxu0 0.0
  %78 = vmatpush1.msra.mxu0 %v48
  %79 = vmatprep.subr.mxu0 0.0
  %80 = vmatpush1.msra.mxu0 %v49
  %81 = vmatprep.subr.mxu0 0.0
  %82 = vmatpush1.msra.mxu0 %v50
  %83 = vmatprep.subr.mxu0 0.0
  %84 = vmatpush1.msra.mxu0 0.0
  %85 = vmatprep.subr.mxu0 0.0
  %86 = vmatpush1.msra.mxu0 0.0
  %87 = vmatprep.subr.mxu0 0.0
  %88 = vmatpush1.msra.mxu0 0.0
  %89 = vmatprep.subr.mxu0 0.0
  %90 = vmatpush1.msra.mxu0 0.0
  %91 = vmatprep.subr.mxu0 0.0
  %92 = vmatpush1.msra.mxu0 0.0
  %93 = vmatprep.subr.mxu0 0.0
  %94 = vmatpush1.msra.mxu0 0.0
  %95 = vmatprep.subr.mxu0 0.0
  %96 = vmatpush1.msra.mxu0 0.0
  %97 = vmatprep.subr.mxu0 0.0
  %98 = vmatpush1.msra.mxu0 0.0
  %99 = vmatprep.subr.mxu0 0.0
  %100 = vmatpush1.msra.mxu0 0.0
  %101 = vmatprep.subr.mxu0 0.0
  %102 = vmatpush1.msra.mxu0 0.0
  %103 = vmatprep.subr.mxu0 0.0
  %104 = vmatpush1.msra.mxu0 0.0
  %105 = vmatprep.subr.mxu0 0.0
  %106 = vmatpush1.msra.mxu0 0.0
  %107 = vmatprep.subr.mxu0 0.0
  %108 = vmatpush1.msra.mxu0 0.0
  %109 = vmatprep.subr.mxu0 0.0
  %110 = vmatpush1.msra.mxu0 0.0
  %111 = vmatprep.subr.mxu0 0.0
  %112 = vmatpush1.msra.mxu0 0.0
  %113 = vmatprep.subr.mxu0 0.0
  %114 = vmatpush1.msra.mxu0 0.0
  %115 = vmatprep.mubr.f32.mxu0 0.0
  %116 = vmatmul.mubr.f32.gmra.mrb[0].mxu0 %v19
  %v117 = vpop.f32.mrb[0].mxu0
  %v118 = vadd.f32 0.0, %v117
  %v119 = vpop.f32.mrb[0].mxu0
  %120 = vmatprep.mubr.f32.mxu0 0.0
  %121 = vmatmul.mubr.f32.gmra.mrb[0].mxu0 %v20
  %v122 = vpop.f32.mrb[0].mxu0
  %v123 = vadd.f32 0.0, %v122
  %v124 = vpop.f32.mrb[0].mxu0
  %125 = vmatprep.mubr.f32.mxu0 0.0
  %126 = vmatmul.mubr.f32.gmra.mrb[0].mxu0 %v21
  %v127 = vpop.f32.mrb[0].mxu0
  %v128 = vadd.f32 0.0, %v127
  %v129 = vpop.f32.mrb[0].mxu0
  %130 = vmatprep.mubr.f32.mxu0 0.0
  %131 = vmatmul.mubr.f32.gmra.mrb[0].mxu0 %v22
  %v132 = vpop.f32.mrb[0].mxu0
  %v133 = vadd.f32 0.0, %v132
  %v134 = vpop.f32.mrb[0].mxu0
  %135 = vmatprep.mubr.f32.mxu0 0.0
  %136 = vmatmul.mubr.f32.gmra.mrb[0].mxu0 %v23
  %v137 = vpop.f32.mrb[0].mxu0
  %v138 = vadd.f32 0.0, %v137
  %v139 = vpop.f32.mrb[0].mxu0
  %140 = vmatprep.mubr.f32.mxu0 0.0
  %141 = vmatmul.mubr.f32.gmra.mrb[0].mxu0 %v24
  %v142 = vpop.f32.mrb[0].mxu0
  %v143 = vadd.f32 0.0, %v142
  %v144 = vpop.f32.mrb[0].mxu0
  %145 = vmatprep.mubr.f32.mxu0 0.0
  %146 = vmatmul.mubr.f32.gmra.mrb[0].mxu0 %v25
  %v147 = vpop.f32.mrb[0].mxu0
  %v148 = vadd.f32 0.0, %v147
  %v149 = vpop.f32.mrb[0].mxu0
  %150 = vmatprep.mubr.f32.mxu0 0.0
  %151 = vmatmul.mubr.f32.gmra.mrb[0].mxu0 %v26
  %v152 = vpop.f32.mrb[0].mxu0
  %v153 = vadd.f32 0.0, %v152
  %v154 = vpop.f32.mrb[0].mxu0
  %155 = vmatprep.mubr.f32.mxu0 0.0
  %156 = vmatmul.mubr.f32.gmra.mrb[0].mxu0 %v27
  %v157 = vpop.f32.mrb[0].mxu0
  %v158 = vadd.f32 0.0, %v157
  %v159 = vpop.f32.mrb[0].mxu0
  %160 = vmatprep.mubr.f32.mxu0 0.0
  %161 = vmatmul.mubr.f32.gmra.mrb[0].mxu0 %v28
  %v162 = vpop.f32.mrb[0].mxu0
  %v163 = vadd.f32 0.0, %v162
  %v164 = vpop.f32.mrb[0].mxu0
  %165 = vmatprep.mubr.f32.mxu0 0.0
  %166 = vmatmul.mubr.f32.gmra.mrb[0].mxu0 %v29
  %v167 = vpop.f32.mrb[0].mxu0
  %v168 = vadd.f32 0.0, %v167
  %v169 = vpop.f32.mrb[0].mxu0
  %170 = vmatprep.mubr.f32.mxu0 0.0
  %171 = vmatmul.mubr.f32.gmra.mrb[0].mxu0 %v30
  %v172 = vpop.f32.mrb[0].mxu0
  %v173 = vadd.f32 0.0, %v172
  %v174 = vpop.f32.mrb[0].mxu0
  %175 = vmatprep.mubr.f32.mxu0 0.0
  %176 = vmatmul.mubr.f32.gmra.mrb[0].mxu0 %v31
  %v177 = vpop.f32.mrb[0].mxu0
  %v178 = vadd.f32 0.0, %v177
  %v179 = vpop.f32.mrb[0].mxu0
  %180 = vmatprep.mubr.f32.mxu0 0.0
  %181 = vmatmul.mubr.f32.gmra.mrb[0].mxu0 %v32
  %v182 = vpop.f32.mrb[0].mxu0
  %v183 = vadd.f32 0.0, %v182
  %v184 = vpop.f32.mrb[0].mxu0
  %185 = vmatprep.mubr.f32.mxu0 0.0
  %186 = vmatmul.mubr.f32.gmra.mrb[0].mxu0 %v33
  %v187 = vpop.f32.mrb[0].mxu0
  %v188 = vadd.f32 0.0, %v187
  %v189 = vpop.f32.mrb[0].mxu0
  %190 = vmatprep.mubr.f32.mxu0 0.0
  %191 = vmatmul.mubr.f32.gmra.mrb[0].mxu0 %v34
  %v192 = vpop.f32.mrb[0].mxu0
  %v193 = vadd.f32 0.0, %v192
  %v194 = vpop.f32.mrb[0].mxu0
  %195 = vdwg.mxu0
  %v196 = vld [vmem:[%s2] sm:$0xff]
  %v197 = vld [vmem:[%s2 + $0x8] sm:$0xff]
  %v198 = vld [vmem:[%s2 + $0x10] sm:$0xff]
  %v199 = vld [vmem:[%s2 + $0x18] sm:$0xff]
  %v200 = vld [vmem:[%s2 + $0x20] sm:$0xff]
  %v201 = vld [vmem:[%s2 + $0x28] sm:$0xff]
  %v202 = vld [vmem:[%s2 + $0x30] sm:$0xff]
  %v203 = vld [vmem:[%s2 + $0x38] sm:$0xff]
  %v204 = vld [vmem:[%s2 + $0x40] sm:$0xff]
  %v205 = vld [vmem:[%s2 + $0x48] sm:$0xff]
  %v206 = vld [vmem:[%s2 + $0x50] sm:$0xff]
  %v207 = vld [vmem:[%s2 + $0x58] sm:$0xff]
  %v208 = vld [vmem:[%s2 + $0x60] sm:$0xff]
  %v209 = vld [vmem:[%s2 + $0x68] sm:$0xff]
  %v210 = vld [vmem:[%s2 + $0x70] sm:$0xff]
  %v211 = vld [vmem:[%s2 + $0x78] sm:$0xff]
  %212 = vmatprep.subr.mxu0 0.0
  %213 = vmatpush1.msra.mxu0 %v196
  %214 = vmatprep.subr.mxu0 0.0
  %215 = vmatpush1.msra.mxu0 %v197
  %216 = vmatprep.subr.mxu0 0.0
  %217 = vmatpush1.msra.mxu0 %v198
  %218 = vmatprep.subr.mxu0 0.0
  %219 = vmatpush1.msra.mxu0 %v199
  %220 = vmatprep.subr.mxu0 0.0
  %221 = vmatpush1.msra.mxu0 %v200
  %222 = vmatprep.subr.mxu0 0.0
  %223 = vmatpush1.msra.mxu0 %v201
  %224 = vmatprep.subr.mxu0 0.0
  %225 = vmatpush1.msra.mxu0 %v202
  %226 = vmatprep.subr.mxu0 0.0
  %227 = vmatpush1.msra.mxu0 %v203
  %228 = vmatprep.subr.mxu0 0.0
  %229 = vmatpush1.msra.mxu0 %v204
  %230 = vmatprep.subr.mxu0 0.0
  %231 = vmatpush1.msra.mxu0 %v205
  %232 = vmatprep.subr.mxu0 0.0
  %233 = vmatpush1.msra.mxu0 %v206
  %234 = vmatprep.subr.mxu0 0.0
  %235 = vmatpush1.msra.mxu0 %v207
  %236 = vmatprep.subr.mxu0 0.0
  %237 = vmatpush1.msra.mxu0 %v208
  %238 = vmatprep.subr.mxu0 0.0
  %239 = vmatpush1.msra.mxu0 %v209
  %240 = vmatprep.subr.mxu0 0.0
  %241 = vmatpush1.msra.mxu0 %v210
  %242 = vmatprep.subr.mxu0 0.0
  %243 = vmatpush1.msra.mxu0 %v211
  %244 = vmatprep.subr.mxu0 0.0
  %245 = vmatpush1.msra.mxu0 0.0
  %246 = vmatprep.subr.mxu0 0.0
  %247 = vmatpush1.msra.mxu0 0.0
  %248 = vmatprep.subr.mxu0 0.0
  %249 = vmatpush1.msra.mxu0 0.0
  %250 = vmatprep.subr.mxu0 0.0
  %251 = vmatpush1.msra.mxu0 0.0
  %252 = vmatprep.subr.mxu0 0.0
  %253 = vmatpush1.msra.mxu0 0.0
  %254 = vmatprep.subr.mxu0 0.0
  %255 = vmatpush1.msra.mxu0 0.0
  %256 = vmatprep.subr.mxu0 0.0
  %257 = vmatpush1.msra.mxu0 0.0
  %258 = vmatprep.subr.mxu0 0.0
  %259 = vmatpush1.msra.mxu0 0.0
  %260 = vmatprep.subr.mxu0 0.0
  %261 = vmatpush1.msra.mxu0 0.0
  %262 = vmatprep.subr.mxu0 0.0
  %263 = vmatpush1.msra.mxu0 0.0
  %264 = vmatprep.subr.mxu0 0.0
  %265 = vmatpush1.msra.mxu0 0.0
  %266 = vmatprep.subr.mxu0 0.0
  %267 = vmatpush1.msra.mxu0 0.0
  %268 = vmatprep.subr.mxu0 0.0
  %269 = vmatpush1.msra.mxu0 0.0
  %270 = vmatprep.subr.mxu0 0.0
  %271 = vmatpush1.msra.mxu0 0.0
  %272 = vmatprep.subr.mxu0 0.0
  %273 = vmatpush1.msra.mxu0 0.0
  %274 = vmatprep.subr.mxu0 0.0
  %275 = vmatpush1.msra.mxu0 0.0
  %276 = vmatprep.mubr.f32.mxu0 0.0
  %277 = vmatmul.mubr.f32.gmra.mrb[0].mxu0 %v118
  %v278 = vpop.f32.mrb[0].mxu0
  %v279 = vadd.f32 0.0, %v278
  %v280 = vpop.f32.mrb[0].mxu0
  %281 = vmatprep.mubr.f32.mxu0 0.0
  %282 = vmatmul.mubr.f32.gmra.mrb[0].mxu0 %v123
  %v283 = vpop.f32.mrb[0].mxu0
  %v284 = vadd.f32 0.0, %v283
  %v285 = vpop.f32.mrb[0].mxu0
  %286 = vmatprep.mubr.f32.mxu0 0.0
  %287 = vmatmul.mubr.f32.gmra.mrb[0].mxu0 %v128
  %v288 = vpop.f32.mrb[0].mxu0
  %v289 = vadd.f32 0.0, %v288
  %v290 = vpop.f32.mrb[0].mxu0
  %291 = vmatprep.mubr.f32.mxu0 0.0
  %292 = vmatmul.mubr.f32.gmra.mrb[0].mxu0 %v133
  %v293 = vpop.f32.mrb[0].mxu0
  %v294 = vadd.f32 0.0, %v293
  %v295 = vpop.f32.mrb[0].mxu0
  %296 = vmatprep.mubr.f32.mxu0 0.0
  %297 = vmatmul.mubr.f32.gmra.mrb[0].mxu0 %v138
  %v298 = vpop.f32.mrb[0].mxu0
  %v299 = vadd.f32 0.0, %v298
  %v300 = vpop.f32.mrb[0].mxu0
  %301 = vmatprep.mubr.f32.mxu0 0.0
  %302 = vmatmul.mubr.f32.gmra.mrb[0].mxu0 %v143
  %v303 = vpop.f32.mrb[0].mxu0
  %v304 = vadd.f32 0.0, %v303
  %v305 = vpop.f32.mrb[0].mxu0
  %306 = vmatprep.mubr.f32.mxu0 0.0
  %307 = vmatmul.mubr.f32.gmra.mrb[0].mxu0 %v148
  %v308 = vpop.f32.mrb[0].mxu0
  %v309 = vadd.f32 0.0, %v308
  %v310 = vpop.f32.mrb[0].mxu0
  %311 = vmatprep.mubr.f32.mxu0 0.0
  %312 = vmatmul.mubr.f32.gmra.mrb[0].mxu0 %v153
  %v313 = vpop.f32.mrb[0].mxu0
  %v314 = vadd.f32 0.0, %v313
  %v315 = vpop.f32.mrb[0].mxu0
  %316 = vmatprep.mubr.f32.mxu0 0.0
  %317 = vmatmul.mubr.f32.gmra.mrb[0].mxu0 %v158
  %v318 = vpop.f32.mrb[0].mxu0
  %v319 = vadd.f32 0.0, %v318
  %v320 = vpop.f32.mrb[0].mxu0
  %321 = vmatprep.mubr.f32.mxu0 0.0
  %322 = vmatmul.mubr.f32.gmra.mrb[0].mxu0 %v163
  %v323 = vpop.f32.mrb[0].mxu0
  %v324 = vadd.f32 0.0, %v323
  %v325 = vpop.f32.mrb[0].mxu0
  %326 = vmatprep.mubr.f32.mxu0 0.0
  %327 = vmatmul.mubr.f32.gmra.mrb[0].mxu0 %v168
  %v328 = vpop.f32.mrb[0].mxu0
  %v329 = vadd.f32 0.0, %v328
  %v330 = vpop.f32.mrb[0].mxu0
  %331 = vmatprep.mubr.f32.mxu0 0.0
  %332 = vmatmul.mubr.f32.gmra.mrb[0].mxu0 %v173
  %v333 = vpop.f32.mrb[0].mxu0
  %v334 = vadd.f32 0.0, %v333
  %v335 = vpop.f32.mrb[0].mxu0
  %336 = vmatprep.mubr.f32.mxu0 0.0
  %337 = vmatmul.mubr.f32.gmra.mrb[0].mxu0 %v178
  %v338 = vpop.f32.mrb[0].mxu0
  %v339 = vadd.f32 0.0, %v338
  %v340 = vpop.f32.mrb[0].mxu0
  %341 = vmatprep.mubr.f32.mxu0 0.0
  %342 = vmatmul.mubr.f32.gmra.mrb[0].mxu0 %v183
  %v343 = vpop.f32.mrb[0].mxu0
  %v344 = vadd.f32 0.0, %v343
  %v345 = vpop.f32.mrb[0].mxu0
  %346 = vmatprep.mubr.f32.mxu0 0.0
  %347 = vmatmul.mubr.f32.gmra.mrb[0].mxu0 %v188
  %v348 = vpop.f32.mrb[0].mxu0
  %v349 = vadd.f32 0.0, %v348
  %v350 = vpop.f32.mrb[0].mxu0
  %351 = vmatprep.mubr.f32.mxu0 0.0
  %352 = vmatmul.mubr.f32.gmra.mrb[0].mxu0 %v193
  %v353 = vpop.f32.mrb[0].mxu0
  %v354 = vadd.f32 0.0, %v353
  %v355 = vpop.f32.mrb[0].mxu0
  %356 = vdwg.mxu0
  %357 = vst [vmem:[%s5] sm:$0xff] %v279
  %358 = vst [vmem:[%s5 + $0x8] sm:$0xff] %v284
  %359 = vst [vmem:[%s5 + $0x10] sm:$0xff] %v289
  %360 = vst [vmem:[%s5 + $0x18] sm:$0xff] %v294
  %361 = vst [vmem:[%s5 + $0x20] sm:$0xff] %v299
  %362 = vst [vmem:[%s5 + $0x28] sm:$0xff] %v304
  %363 = vst [vmem:[%s5 + $0x30] sm:$0xff] %v309
  %364 = vst [vmem:[%s5 + $0x38] sm:$0xff] %v314
  %365 = vst [vmem:[%s5 + $0x40] sm:$0xff] %v319
  %366 = vst [vmem:[%s5 + $0x48] sm:$0xff] %v324
  %367 = vst [vmem:[%s5 + $0x50] sm:$0xff] %v329
  %368 = vst [vmem:[%s5 + $0x58] sm:$0xff] %v334
  %369 = vst [vmem:[%s5 + $0x60] sm:$0xff] %v339
  %370 = vst [vmem:[%s5 + $0x68] sm:$0xff] %v344
  %371 = vst [vmem:[%s5 + $0x70] sm:$0xff] %v349
  %372 = vst [vmem:[%s5 + $0x78] sm:$0xff] %v354
  %v373 = vld [vmem:[%s3] sm:$0x1]
  %v375 = vlaneseq
  %v376 = vshrl.u32 %v375, 7
  %v377 = vsub.s32 0, %v376
  %v378 = vrot.slane %v373, %v377
  %v380 = vadd.f32 %v118, %v378
  %v381 = vadd.f32 %v123, %v378
  %v382 = vadd.f32 %v128, %v378
  %v383 = vadd.f32 %v133, %v378
  %v384 = vadd.f32 %v138, %v378
  %v385 = vadd.f32 %v143, %v378
  %v386 = vadd.f32 %v148, %v378
  %v387 = vadd.f32 %v153, %v378
  %v388 = vadd.f32 %v158, %v378
  %v389 = vadd.f32 %v163, %v378
  %v390 = vadd.f32 %v168, %v378
  %v391 = vadd.f32 %v173, %v378
  %v392 = vadd.f32 %v178, %v378
  %v393 = vadd.f32 %v183, %v378
  %v394 = vadd.f32 %v188, %v378
  %v395 = vadd.f32 %v193, %v378
  %v396 = vpack.c.bf16 %v381, %v380
  %v397 = vpack.c.bf16 %v383, %v382
  %v398 = vpack.c.bf16 %v385, %v384
  %v399 = vpack.c.bf16 %v387, %v386
  %v400 = vpack.c.bf16 %v389, %v388
  %v401 = vpack.c.bf16 %v391, %v390
  %v402 = vpack.c.bf16 %v393, %v392
  %v403 = vpack.c.bf16 %v395, %v394
  %v412 = vunpack.c.l.b16 %v396
  %v413 = vunpack.c.h.b16 %v396
  %v414 = vunpack.c.l.b16 %v397
  %v415 = vunpack.c.h.b16 %v397
  %v416 = vunpack.c.l.b16 %v398
  %v417 = vunpack.c.h.b16 %v398
  %v418 = vunpack.c.l.b16 %v399
  %v419 = vunpack.c.h.b16 %v399
  %v420 = vunpack.c.l.b16 %v400
  %v421 = vunpack.c.h.b16 %v400
  %v422 = vunpack.c.l.b16 %v401
  %v423 = vunpack.c.h.b16 %v401
  %v424 = vunpack.c.l.b16 %v402
  %v425 = vunpack.c.h.b16 %v402
  %v426 = vunpack.c.l.b16 %v403
  %v427 = vunpack.c.h.b16 %v403
  %v428 = vpack.c.b16 %v412, %v412
  %v429 = vpack.c.b16 %v413, %v413
  %v430 = vpack.c.b16 %v414, %v414
  %v431 = vpack.c.b16 %v415, %v415
  %v432 = vpack.c.b16 %v416, %v416
  %v433 = vpack.c.b16 %v417, %v417
  %v434 = vpack.c.b16 %v418, %v418
  %v435 = vpack.c.b16 %v419, %v419
  %v436 = vpack.c.b16 %v420, %v420
  %v437 = vpack.c.b16 %v421, %v421
  %v438 = vpack.c.b16 %v422, %v422
  %v439 = vpack.c.b16 %v423, %v423
  %v440 = vpack.c.b16 %v424, %v424
  %v441 = vpack.c.b16 %v425, %v425
  %v442 = vpack.c.b16 %v426, %v426
  %v443 = vpack.c.b16 %v427, %v427
  %460 = vst [vmem:[%s4] sm:$0xf] %v428
  %461 = vst [vmem:[%s4 + $0x4] sm:$0xf] %v429
  %462 = vst [vmem:[%s4 + $0x8] sm:$0xf] %v430
  %463 = vst [vmem:[%s4 + $0xc] sm:$0xf] %v431
  %464 = vst [vmem:[%s4 + $0x10] sm:$0xf] %v432
  %465 = vst [vmem:[%s4 + $0x14] sm:$0xf] %v433
  %466 = vst [vmem:[%s4 + $0x18] sm:$0xf] %v434
  %467 = vst [vmem:[%s4 + $0x1c] sm:$0xf] %v435
  %468 = vst [vmem:[%s4 + $0x20] sm:$0xf] %v436
  %469 = vst [vmem:[%s4 + $0x24] sm:$0xf] %v437
  %470 = vst [vmem:[%s4 + $0x28] sm:$0xf] %v438
  %471 = vst [vmem:[%s4 + $0x2c] sm:$0xf] %v439
  %472 = vst [vmem:[%s4 + $0x30] sm:$0xf] %v440
  %473 = vst [vmem:[%s4 + $0x34] sm:$0xf] %v441
  %474 = vst [vmem:[%s4 + $0x38] sm:$0xf] %v442
  %475 = vst [vmem:[%s4 + $0x3c] sm:$0xf] %v443
  // Predicated region
  $region18: #{_forward_impl.6} parent=0 // pred_check
    _
  $region19: #{_forward_impl.6} parent=0 // pred_check_branch
    %477 = sbr.rel (0) target = $region21
  $region20: #{_forward_impl.6} parent=0 // pred_region
    _
  $region21: #{_forward_impl.6} parent=0 // pred_fallthru
    _
  // Predicated region
  $region22: #{_forward_impl.6} parent=0 // pred_check
    _
  $region23: #{_forward_impl.6} parent=0 // pred_check_branch
    %479 = sbr.rel (0) target = $region25
  $region24: #{_forward_impl.6} parent=0 // pred_region
    _
  $region25: #{_forward_impl.6} parent=0 // pred_fallthru
    _
  // Predicated region
  $region26: #{_forward_impl.6} parent=0 // pred_check
    _
  $region27: #{_forward_impl.6} parent=0 // pred_check_branch
    %481 = sbr.rel (0) target = $region29
  $region28: #{_forward_impl.6} parent=0 // pred_region
    _
  $region29: #{_forward_impl.6} parent=0 // pred_fallthru
    _
  // Predicated region
  $region30: #{_forward_impl.6} parent=0 // pred_check
    _
  $region31: #{_forward_impl.6} parent=0 // pred_check_branch
    %483 = sbr.rel (0) target = $region33
  $region32: #{_forward_impl.6} parent=0 // pred_region
    _
  $region33: #{_forward_impl.6} parent=0 // pred_fallthru
    _

// kernel: _forward_impl.7
$region0: #{_forward_impl.7}
  #allocation0 [shape = 'u32[]', space=smem, size = 0x4, offset = 0x4, fixed_abs, tag = 'smem constant byte address 0x4 - core index']
  #allocation1 [shape = 'u32[144,128]{1,0:T(1,128)}', space=vmem, size = 0x12000, scoped, tag = 'internal scratch']
  #allocation2 [shape = 'f32[128,128]{1,0:T(8,128)}', space=vmem, size = 0x10000, scoped, tag = 'scratch operand']
  #allocation3 [shape = 's32[1]{0}', space=sflag, size = 0x4, scoped, tag = 'scoped memory for _forward_impl.7']
  #allocation4 [shape = 's32[1]{0:T(128)S(6)}', space=smem, size = 0x200, scoped, tag = 'prefetched SMEM operand 0']
  %s0 = inlined_call_operand.<no memory space> [shape: s32[1], index: 0, kind: input, shape index: {}]
  %s1 = inlined_call_operand.vmem [shape: s8[128,128], index: 1, kind: input, shape index: {}]
  %s2 = inlined_call_operand.vmem [shape: bf16[128,128], index: 2, kind: input, shape index: {}]
  %s3 = inlined_call_operand.vmem [shape: f32[128,128], index: 3, kind: input, shape index: {}]
  %s4 = inlined_call_operand.vmem [shape: f32[2,128], index: 4, kind: input, shape index: {}]
  %s5 = inlined_call_operand.vmem [shape: bf16[3,128], index: 5, kind: input, shape index: {}]
  %s6 = inlined_call_operand.vmem [shape: f32[1,128], index: 6, kind: input, shape index: {}]
  %s7 = inlined_call_operand.vmem [shape: f32[1,128], index: 7, kind: input, shape index: {}]
  %s8 = inlined_call_operand.vmem [shape: f32[128,128], index: 8, kind: output, shape index: {}]
  %s9 = sld [smem:[#allocation0]]
  $region50: #{_forward_impl.7} parent=0
    _
  %s11 = ssub.s32 1, %s9
  %s12 = scalar_select 0, %s11, %s9
  %13 = sst [smem:[#allocation4]] %s0
  // Predicated region
  $region2: #{_forward_impl.7} parent=0 // pred_check
    _
  $region3: #{_forward_impl.7} parent=0 // pred_check_branch
    %15 = sbr.rel (0) target = $region5
  $region4: #{_forward_impl.7} parent=0 // pred_region
    _
  $region5: #{_forward_impl.7} parent=0 // pred_fallthru
    _
  // Predicated region
  $region6: #{_forward_impl.7} parent=0 // pred_check
    _
  $region7: #{_forward_impl.7} parent=0 // pred_check_branch
    %17 = sbr.rel (0) target = $region9
  $region8: #{_forward_impl.7} parent=0 // pred_region
    _
  $region9: #{_forward_impl.7} parent=0 // pred_fallthru
    _
  // Predicated region
  $region10: #{_forward_impl.7} parent=0 // pred_check
    _
  $region11: #{_forward_impl.7} parent=0 // pred_check_branch
    %19 = sbr.rel (0) target = $region13
  $region12: #{_forward_impl.7} parent=0 // pred_region
    _
  $region13: #{_forward_impl.7} parent=0 // pred_fallthru
    _
  // Predicated region
  $region14: #{_forward_impl.7} parent=0 // pred_check
    _
  $region15: #{_forward_impl.7} parent=0 // pred_check_branch
    %21 = sbr.rel (0) target = $region17
  $region16: #{_forward_impl.7} parent=0 // pred_region
    _
  $region17: #{_forward_impl.7} parent=0 // pred_fallthru
    _
  // Predicated region
  $region18: #{_forward_impl.7} parent=0 // pred_check
    _
  $region19: #{_forward_impl.7} parent=0 // pred_check_branch
    %23 = sbr.rel (0) target = $region21
  $region20: #{_forward_impl.7} parent=0 // pred_region
    _
  $region21: #{_forward_impl.7} parent=0 // pred_fallthru
    _
  // Predicated region
  $region22: #{_forward_impl.7} parent=0 // pred_check
    _
  $region23: #{_forward_impl.7} parent=0 // pred_check_branch
    %25 = sbr.rel (0) target = $region25
  $region24: #{_forward_impl.7} parent=0 // pred_region
    _
  $region25: #{_forward_impl.7} parent=0 // pred_fallthru
    _
  // Predicated region
  $region26: #{_forward_impl.7} parent=0 // pred_check
    _
  $region27: #{_forward_impl.7} parent=0 // pred_check_branch
    %27 = sbr.rel (0) target = $region29
  $region28: #{_forward_impl.7} parent=0 // pred_region
    _
  $region29: #{_forward_impl.7} parent=0 // pred_fallthru
    _
  %p29 = scmp.eq.s32.totalorder 0, 0
  // Predicated region
  $region30: #{_forward_impl.7} parent=0 // pred_check
    %p30 = pneg %p29
  $region31: #{_forward_impl.7} parent=0 // pred_check_branch
    %32 = sbr.rel (%p30) target = $region33
  $region32: #{_forward_impl.7} parent=0 // pred_region
    %33 = vst [vmem:[#allocation2] sm:$0xff] 0.0
    %34 = vst [vmem:[#allocation2 + $0x8] sm:$0xff] 0.0
    %35 = vst [vmem:[#allocation2 + $0x10] sm:$0xff] 0.0
    %36 = vst [vmem:[#allocation2 + $0x18] sm:$0xff] 0.0
    %37 = vst [vmem:[#allocation2 + $0x20] sm:$0xff] 0.0
    %38 = vst [vmem:[#allocation2 + $0x28] sm:$0xff] 0.0
    %39 = vst [vmem:[#allocation2 + $0x30] sm:$0xff] 0.0
    %40 = vst [vmem:[#allocation2 + $0x38] sm:$0xff] 0.0
    %41 = vst [vmem:[#allocation2 + $0x40] sm:$0xff] 0.0
    %42 = vst [vmem:[#allocation2 + $0x48] sm:$0xff] 0.0
    %43 = vst [vmem:[#allocation2 + $0x50] sm:$0xff] 0.0
    %44 = vst [vmem:[#allocation2 + $0x58] sm:$0xff] 0.0
    %45 = vst [vmem:[#allocation2 + $0x60] sm:$0xff] 0.0
    %46 = vst [vmem:[#allocation2 + $0x68] sm:$0xff] 0.0
    %47 = vst [vmem:[#allocation2 + $0x70] sm:$0xff] 0.0
    %48 = vst [vmem:[#allocation2 + $0x78] sm:$0xff] 0.0
  $region33: #{_forward_impl.7} parent=0 // pred_fallthru
    _
  %s49 = sadd.s32 0, 0
  %s50 = sld [smem:[#allocation4 + %s49]]
  %p51 = scmp.gt.s32.totalorder %s50, 0
  // Predicated region
  $region34: #{_forward_impl.7} parent=0 // pred_check
    %p52 = pneg %p51
  $region35: #{_forward_impl.7} parent=0 // pred_check_branch
    %54 = sbr.rel (%p52) target = $region37
  $region36: #{_forward_impl.7} parent=0 // pred_region
    %v55 = vld [vmem:[%s1] sm:$0x3]
    %v56 = vld [vmem:[%s1 + $0x2] sm:$0x3]
    %v57 = vld [vmem:[%s1 + $0x4] sm:$0x3]
    %v58 = vld [vmem:[%s1 + $0x6] sm:$0x3]
    %v59 = vld [vmem:[%s1 + $0x8] sm:$0x3]
    %v60 = vld [vmem:[%s1 + $0xa] sm:$0x3]
    %v61 = vld [vmem:[%s1 + $0xc] sm:$0x3]
    %v62 = vld [vmem:[%s1 + $0xe] sm:$0x3]
    %v63 = vld [vmem:[%s1 + $0x10] sm:$0x3]
    %v64 = vld [vmem:[%s1 + $0x12] sm:$0x3]
    %v65 = vld [vmem:[%s1 + $0x14] sm:$0x3]
    %v66 = vld [vmem:[%s1 + $0x16] sm:$0x3]
    %v67 = vld [vmem:[%s1 + $0x18] sm:$0x3]
    %v68 = vld [vmem:[%s1 + $0x1a] sm:$0x3]
    %v69 = vld [vmem:[%s1 + $0x1c] sm:$0x3]
    %v70 = vld [vmem:[%s1 + $0x1e] sm:$0x3]
    %v71 = vunpack.c.0.s8 %v55
    %v72 = vunpack.c.0.s8 %v56
    %v73 = vunpack.c.0.s8 %v57
    %v74 = vunpack.c.0.s8 %v58
    %v75 = vunpack.c.0.s8 %v59
    %v76 = vunpack.c.0.s8 %v60
    %v77 = vunpack.c.0.s8 %v61
    %v78 = vunpack.c.0.s8 %v62
    %v79 = vunpack.c.0.s8 %v63
    %v80 = vunpack.c.0.s8 %v64
    %v81 = vunpack.c.0.s8 %v65
    %v82 = vunpack.c.0.s8 %v66
    %v83 = vunpack.c.0.s8 %v67
    %v84 = vunpack.c.0.s8 %v68
    %v85 = vunpack.c.0.s8 %v69
    %v86 = vunpack.c.0.s8 %v70
    %v87 = vcvt.s32.f32 %v71
    %v88 = vcvt.s32.f32 %v72
    %v89 = vcvt.s32.f32 %v73
    %v90 = vcvt.s32.f32 %v74
    %v91 = vcvt.s32.f32 %v75
    %v92 = vcvt.s32.f32 %v76
    %v93 = vcvt.s32.f32 %v77
    %v94 = vcvt.s32.f32 %v78
    %v95 = vcvt.s32.f32 %v79
    %v96 = vcvt.s32.f32 %v80
    %v97 = vcvt.s32.f32 %v81
    %v98 = vcvt.s32.f32 %v82
    %v99 = vcvt.s32.f32 %v83
    %v100 = vcvt.s32.f32 %v84
    %v101 = vcvt.s32.f32 %v85
    %v102 = vcvt.s32.f32 %v86
    %v103 = vld [vmem:[%s2] sm:$0xf]
    %v104 = vld [vmem:[%s2 + $0x4] sm:$0xf]
    %v105 = vld [vmem:[%s2 + $0x8] sm:$0xf]
    %v106 = vld [vmem:[%s2 + $0xc] sm:$0xf]
    %v107 = vld [vmem:[%s2 + $0x10] sm:$0xf]
    %v108 = vld [vmem:[%s2 + $0x14] sm:$0xf]
    %v109 = vld [vmem:[%s2 + $0x18] sm:$0xf]
    %v110 = vld [vmem:[%s2 + $0x1c] sm:$0xf]
    %v111 = vld [vmem:[%s2 + $0x20] sm:$0xf]
    %v112 = vld [vmem:[%s2 + $0x24] sm:$0xf]
    %v113 = vld [vmem:[%s2 + $0x28] sm:$0xf]
    %v114 = vld [vmem:[%s2 + $0x2c] sm:$0xf]
    %v115 = vld [vmem:[%s2 + $0x30] sm:$0xf]
    %v116 = vld [vmem:[%s2 + $0x34] sm:$0xf]
    %v117 = vld [vmem:[%s2 + $0x38] sm:$0xf]
    %v118 = vld [vmem:[%s2 + $0x3c] sm:$0xf]
    %v119 = vld [vmem:[%s3] sm:$0xff]
    %v120 = vld [vmem:[%s3 + $0x8] sm:$0xff]
    %v121 = vld [vmem:[%s3 + $0x10] sm:$0xff]
    %v122 = vld [vmem:[%s3 + $0x18] sm:$0xff]
    %v123 = vld [vmem:[%s3 + $0x20] sm:$0xff]
    %v124 = vld [vmem:[%s3 + $0x28] sm:$0xff]
    %v125 = vld [vmem:[%s3 + $0x30] sm:$0xff]
    %v126 = vld [vmem:[%s3 + $0x38] sm:$0xff]
    %v127 = vld [vmem:[%s3 + $0x40] sm:$0xff]
    %v128 = vld [vmem:[%s3 + $0x48] sm:$0xff]
    %v129 = vld [vmem:[%s3 + $0x50] sm:$0xff]
    %v130 = vld [vmem:[%s3 + $0x58] sm:$0xff]
    %v131 = vld [vmem:[%s3 + $0x60] sm:$0xff]
    %v132 = vld [vmem:[%s3 + $0x68] sm:$0xff]
    %v133 = vld [vmem:[%s3 + $0x70] sm:$0xff]
    %v134 = vld [vmem:[%s3 + $0x78] sm:$0xff]
    %v135 = vld [vmem:[%s4] sm:$0x1]
    %137 = vset.pattern.permute.xlu0 0
    %138 = vperm.xlu0 %137, %v119
    %v139 = vpop.permute.xlu0 %138
    %142 = vset.pattern.permute.xlu0 0
    %143 = vperm.xlu0 %142, %v120
    %v144 = vpop.permute.xlu0 %143
    %147 = vset.pattern.permute.xlu0 0
    %148 = vperm.xlu0 %147, %v121
    %v149 = vpop.permute.xlu0 %148
    %152 = vset.pattern.permute.xlu0 0
    %153 = vperm.xlu0 %152, %v122
    %v154 = vpop.permute.xlu0 %153
    %157 = vset.pattern.permute.xlu0 0
    %158 = vperm.xlu0 %157, %v123
    %v159 = vpop.permute.xlu0 %158
    %162 = vset.pattern.permute.xlu0 0
    %163 = vperm.xlu0 %162, %v124
    %v164 = vpop.permute.xlu0 %163
    %167 = vset.pattern.permute.xlu0 0
    %168 = vperm.xlu0 %167, %v125
    %v169 = vpop.permute.xlu0 %168
    %172 = vset.pattern.permute.xlu0 0
    %173 = vperm.xlu0 %172, %v126
    %v174 = vpop.permute.xlu0 %173
    %177 = vset.pattern.permute.xlu0 0
    %178 = vperm.xlu0 %177, %v127
    %v179 = vpop.permute.xlu0 %178
    %182 = vset.pattern.permute.xlu0 0
    %183 = vperm.xlu0 %182, %v128
    %v184 = vpop.permute.xlu0 %183
    %187 = vset.pattern.permute.xlu0 0
    %188 = vperm.xlu0 %187, %v129
    %v189 = vpop.permute.xlu0 %188
    %192 = vset.pattern.permute.xlu0 0
    %193 = vperm.xlu0 %192, %v130
    %v194 = vpop.permute.xlu0 %193
    %197 = vset.pattern.permute.xlu0 0
    %198 = vperm.xlu0 %197, %v131
    %v199 = vpop.permute.xlu0 %198
    %202 = vset.pattern.permute.xlu0 0
    %203 = vperm.xlu0 %202, %v132
    %v204 = vpop.permute.xlu0 %203
    %207 = vset.pattern.permute.xlu0 0
    %208 = vperm.xlu0 %207, %v133
    %v209 = vpop.permute.xlu0 %208
    %212 = vset.pattern.permute.xlu0 0
    %213 = vperm.xlu0 %212, %v134
    %v214 = vpop.permute.xlu0 %213
    %v216 = vlaneseq
    %v217 = vshrl.u32 %v216, 7
    %v218 = vsub.s32 0, %v217
    %v219 = vrot.slane %v135, %v218
    %v220 = vadd.f32 %v139, %v219
    %v221 = vadd.f32 %v144, %v219
    %v222 = vadd.f32 %v149, %v219
    %v223 = vadd.f32 %v154, %v219
    %v224 = vadd.f32 %v159, %v219
    %v225 = vadd.f32 %v164, %v219
    %v226 = vadd.f32 %v169, %v219
    %v227 = vadd.f32 %v174, %v219
    %v228 = vadd.f32 %v179, %v219
    %v229 = vadd.f32 %v184, %v219
    %v230 = vadd.f32 %v189, %v219
    %v231 = vadd.f32 %v194, %v219
    %v232 = vadd.f32 %v199, %v219
    %v233 = vadd.f32 %v204, %v219
    %v234 = vadd.f32 %v209, %v219
    %v235 = vadd.f32 %v214, %v219
    %v236 = vmul.f32 %v220, 0.2
    %v237 = vmul.f32 %v221, 0.2
    %v238 = vmul.f32 %v222, 0.2
    %v239 = vmul.f32 %v223, 0.2
    %v240 = vmul.f32 %v224, 0.2
    %v241 = vmul.f32 %v225, 0.2
    %v242 = vmul.f32 %v226, 0.2
    %v243 = vmul.f32 %v227, 0.2
    %v244 = vmul.f32 %v228, 0.2
    %v245 = vmul.f32 %v229, 0.2
    %v246 = vmul.f32 %v230, 0.2
    %v247 = vmul.f32 %v231, 0.2
    %v248 = vmul.f32 %v232, 0.2
    %v249 = vmul.f32 %v233, 0.2
    %v250 = vmul.f32 %v234, 0.2
    %v251 = vmul.f32 %v235, 0.2
    %v252 = vmax.f32 %v220, %v236
    %v253 = vmax.f32 %v221, %v237
    %v254 = vmax.f32 %v222, %v238
    %v255 = vmax.f32 %v223, %v239
    %v256 = vmax.f32 %v224, %v240
    %v257 = vmax.f32 %v225, %v241
    %v258 = vmax.f32 %v226, %v242
    %v259 = vmax.f32 %v227, %v243
    %v260 = vmax.f32 %v228, %v244
    %v261 = vmax.f32 %v229, %v245
    %v262 = vmax.f32 %v230, %v246
    %v263 = vmax.f32 %v231, %v247
    %v264 = vmax.f32 %v232, %v248
    %v265 = vmax.f32 %v233, %v249
    %v266 = vmax.f32 %v234, %v250
    %v267 = vmax.f32 %v235, %v251
    %268 = vset.pattern.permute.xlu0 4
    %269 = vperm.xlu0 %268, %v119
    %v270 = vpop.permute.xlu0 %269
    %272 = vset.pattern.permute.xlu0 4
    %273 = vperm.xlu0 %272, %v120
    %v274 = vpop.permute.xlu0 %273
    %276 = vset.pattern.permute.xlu0 4
    %277 = vperm.xlu0 %276, %v121
    %v278 = vpop.permute.xlu0 %277
    %280 = vset.pattern.permute.xlu0 4
    %281 = vperm.xlu0 %280, %v122
    %v282 = vpop.permute.xlu0 %281
    %284 = vset.pattern.permute.xlu0 4
    %285 = vperm.xlu0 %284, %v123
    %v286 = vpop.permute.xlu0 %285
    %288 = vset.pattern.permute.xlu0 4
    %289 = vperm.xlu0 %288, %v124
    %v290 = vpop.permute.xlu0 %289
    %292 = vset.pattern.permute.xlu0 4
    %293 = vperm.xlu0 %292, %v125
    %v294 = vpop.permute.xlu0 %293
    %296 = vset.pattern.permute.xlu0 4
    %297 = vperm.xlu0 %296, %v126
    %v298 = vpop.permute.xlu0 %297
    %300 = vset.pattern.permute.xlu0 4
    %301 = vperm.xlu0 %300, %v127
    %v302 = vpop.permute.xlu0 %301
    %304 = vset.pattern.permute.xlu0 4
    %305 = vperm.xlu0 %304, %v128
    %v306 = vpop.permute.xlu0 %305
    %308 = vset.pattern.permute.xlu0 4
    %309 = vperm.xlu0 %308, %v129
    %v310 = vpop.permute.xlu0 %309
    %312 = vset.pattern.permute.xlu0 4
    %313 = vperm.xlu0 %312, %v130
    %v314 = vpop.permute.xlu0 %313
    %316 = vset.pattern.permute.xlu0 4
    %317 = vperm.xlu0 %316, %v131
    %v318 = vpop.permute.xlu0 %317
    %320 = vset.pattern.permute.xlu0 4
    %321 = vperm.xlu0 %320, %v132
    %v322 = vpop.permute.xlu0 %321
    %324 = vset.pattern.permute.xlu0 4
    %325 = vperm.xlu0 %324, %v133
    %v326 = vpop.permute.xlu0 %325
    %328 = vset.pattern.permute.xlu0 4
    %329 = vperm.xlu0 %328, %v134
    %v330 = vpop.permute.xlu0 %329
    %v332 = vsub.f32 %v252, %v270
    %v333 = vsub.f32 %v253, %v274
    %v334 = vsub.f32 %v254, %v278
    %v335 = vsub.f32 %v255, %v282
    %v336 = vsub.f32 %v256, %v286
    %v337 = vsub.f32 %v257, %v290
    %v338 = vsub.f32 %v258, %v294
    %v339 = vsub.f32 %v259, %v298
    %v340 = vsub.f32 %v260, %v302
    %v341 = vsub.f32 %v261, %v306
    %v342 = vsub.f32 %v262, %v310
    %v343 = vsub.f32 %v263, %v314
    %v344 = vsub.f32 %v264, %v318
    %v345 = vsub.f32 %v265, %v322
    %v346 = vsub.f32 %v266, %v326
    %v347 = vsub.f32 %v267, %v330
    %v348 = vmul.f32 %v332, 1.442695
    %v349 = vpow.pop %v348
    %v350 = vmul.f32 %v333, 1.442695
    %v351 = vpow.pop %v350
    %v352 = vmul.f32 %v334, 1.442695
    %v353 = vpow.pop %v352
    %v354 = vmul.f32 %v335, 1.442695
    %v355 = vpow.pop %v354
    %v356 = vmul.f32 %v336, 1.442695
    %v357 = vpow.pop %v356
    %v358 = vmul.f32 %v337, 1.442695
    %v359 = vpow.pop %v358
    %v360 = vmul.f32 %v338, 1.442695
    %v361 = vpow.pop %v360
    %v362 = vmul.f32 %v339, 1.442695
    %v363 = vpow.pop %v362
    %v364 = vmul.f32 %v340, 1.442695
    %v365 = vpow.pop %v364
    %v366 = vmul.f32 %v341, 1.442695
    %v367 = vpow.pop %v366
    %v368 = vmul.f32 %v342, 1.442695
    %v369 = vpow.pop %v368
    %v370 = vmul.f32 %v343, 1.442695
    %v371 = vpow.pop %v370
    %v372 = vmul.f32 %v344, 1.442695
    %v373 = vpow.pop %v372
    %v374 = vmul.f32 %v345, 1.442695
    %v375 = vpow.pop %v374
    %v376 = vmul.f32 %v346, 1.442695
    %v377 = vpow.pop %v376
    %v378 = vmul.f32 %v347, 1.442695
    %v379 = vpow.pop %v378
    %v380 = vmul.f32 %v349, %v87
    %v381 = vmul.f32 %v351, %v88
    %v382 = vmul.f32 %v353, %v89
    %v383 = vmul.f32 %v355, %v90
    %v384 = vmul.f32 %v357, %v91
    %v385 = vmul.f32 %v359, %v92
    %v386 = vmul.f32 %v361, %v93
    %v387 = vmul.f32 %v363, %v94
    %v388 = vmul.f32 %v365, %v95
    %v389 = vmul.f32 %v367, %v96
    %v390 = vmul.f32 %v369, %v97
    %v391 = vmul.f32 %v371, %v98
    %v392 = vmul.f32 %v373, %v99
    %v393 = vmul.f32 %v375, %v100
    %v394 = vmul.f32 %v377, %v101
    %v395 = vmul.f32 %v379, %v102
    %v396 = vpack.c.bf16 %v381, %v380
    %v397 = vpack.c.bf16 %v383, %v382
    %v398 = vpack.c.bf16 %v385, %v384
    %v399 = vpack.c.bf16 %v387, %v386
    %v400 = vpack.c.bf16 %v389, %v388
    %v401 = vpack.c.bf16 %v391, %v390
    %v402 = vpack.c.bf16 %v393, %v392
    %v403 = vpack.c.bf16 %v395, %v394
    %v404 = vld [vmem:[%s5] sm:$0x1]
    %v406 = vpack.i.b16 %v404, %v404
    %v408 = vlaneseq
    %v409 = vshrl.u32 %v408, 7
    %v410 = vsub.s32 0, %v409
    %v411 = vrot.slane %v406, %v410
    %v413 = vunpack.c.l.b16 %v411
    %v414 = vpack.c.b16 %v413, %v413
    %v416 = vmul.bf16 %v103, %v414
    %v417 = vmul.bf16 %v104, %v414
    %v418 = vmul.bf16 %v105, %v414
    %v419 = vmul.bf16 %v106, %v414
    %v420 = vmul.bf16 %v107, %v414
    %v421 = vmul.bf16 %v108, %v414
    %v422 = vmul.bf16 %v109, %v414
    %v423 = vmul.bf16 %v110, %v414
    %v424 = vmul.bf16 %v111, %v414
    %v425 = vmul.bf16 %v112, %v414
    %v426 = vmul.bf16 %v113, %v414
    %v427 = vmul.bf16 %v114, %v414
    %v428 = vmul.bf16 %v115, %v414
    %v429 = vmul.bf16 %v116, %v414
    %v430 = vmul.bf16 %v117, %v414
    %v431 = vmul.bf16 %v118, %v414
    %v432 = vld [vmem:[%s4 + $0x1] sm:$0x1]
    %433 = vset.pattern.permute.xlu0 1
    %434 = vperm.xlu0 %433, %v119
    %v435 = vpop.permute.xlu0 %434
    %437 = vset.pattern.permute.xlu0 1
    %438 = vperm.xlu0 %437, %v120
    %v439 = vpop.permute.xlu0 %438
    %441 = vset.pattern.permute.xlu0 1
    %442 = vperm.xlu0 %441, %v121
    %v443 = vpop.permute.xlu0 %442
    %445 = vset.pattern.permute.xlu0 1
    %446 = vperm.xlu0 %445, %v122
    %v447 = vpop.permute.xlu0 %446
    %449 = vset.pattern.permute.xlu0 1
    %450 = vperm.xlu0 %449, %v123
    %v451 = vpop.permute.xlu0 %450
    %453 = vset.pattern.permute.xlu0 1
    %454 = vperm.xlu0 %453, %v124
    %v455 = vpop.permute.xlu0 %454
    %457 = vset.pattern.permute.xlu0 1
    %458 = vperm.xlu0 %457, %v125
    %v459 = vpop.permute.xlu0 %458
    %461 = vset.pattern.permute.xlu0 1
    %462 = vperm.xlu0 %461, %v126
    %v463 = vpop.permute.xlu0 %462
    %465 = vset.pattern.permute.xlu0 1
    %466 = vperm.xlu0 %465, %v127
    %v467 = vpop.permute.xlu0 %466
    %469 = vset.pattern.permute.xlu0 1
    %470 = vperm.xlu0 %469, %v128
    %v471 = vpop.permute.xlu0 %470
    %473 = vset.pattern.permute.xlu0 1
    %474 = vperm.xlu0 %473, %v129
    %v475 = vpop.permute.xlu0 %474
    %477 = vset.pattern.permute.xlu0 1
    %478 = vperm.xlu0 %477, %v130
    %v479 = vpop.permute.xlu0 %478
    %481 = vset.pattern.permute.xlu0 1
    %482 = vperm.xlu0 %481, %v131
    %v483 = vpop.permute.xlu0 %482
    %485 = vset.pattern.permute.xlu0 1
    %486 = vperm.xlu0 %485, %v132
    %v487 = vpop.permute.xlu0 %486
    %489 = vset.pattern.permute.xlu0 1
    %490 = vperm.xlu0 %489, %v133
    %v491 = vpop.permute.xlu0 %490
    %493 = vset.pattern.permute.xlu0 1
    %494 = vperm.xlu0 %493, %v134
    %v495 = vpop.permute.xlu0 %494
    %v497 = vlaneseq
    %v498 = vshrl.u32 %v497, 7
    %v499 = vsub.s32 0, %v498
    %v500 = vrot.slane %v432, %v499
    %v501 = vadd.f32 %v435, %v500
    %v502 = vadd.f32 %v439, %v500
    %v503 = vadd.f32 %v443, %v500
    %v504 = vadd.f32 %v447, %v500
    %v505 = vadd.f32 %v451, %v500
    %v506 = vadd.f32 %v455, %v500
    %v507 = vadd.f32 %v459, %v500
    %v508 = vadd.f32 %v463, %v500
    %v509 = vadd.f32 %v467, %v500
    %v510 = vadd.f32 %v471, %v500
    %v511 = vadd.f32 %v475, %v500
    %v512 = vadd.f32 %v479, %v500
    %v513 = vadd.f32 %v483, %v500
    %v514 = vadd.f32 %v487, %v500
    %v515 = vadd.f32 %v491, %v500
    %v516 = vadd.f32 %v495, %v500
    %v517 = vmul.f32 %v501, 0.2
    %v518 = vmul.f32 %v502, 0.2
    %v519 = vmul.f32 %v503, 0.2
    %v520 = vmul.f32 %v504, 0.2
    %v521 = vmul.f32 %v505, 0.2
    %v522 = vmul.f32 %v506, 0.2
    %v523 = vmul.f32 %v507, 0.2
    %v524 = vmul.f32 %v508, 0.2
    %v525 = vmul.f32 %v509, 0.2
    %v526 = vmul.f32 %v510, 0.2
    %v527 = vmul.f32 %v511, 0.2
    %v528 = vmul.f32 %v512, 0.2
    %v529 = vmul.f32 %v513, 0.2
    %v530 = vmul.f32 %v514, 0.2
    %v531 = vmul.f32 %v515, 0.2
    %v532 = vmul.f32 %v516, 0.2
    %v533 = vmax.f32 %v501, %v517
    %v534 = vmax.f32 %v502, %v518
    %v535 = vmax.f32 %v503, %v519
    %v536 = vmax.f32 %v504, %v520
    %v537 = vmax.f32 %v505, %v521
    %v538 = vmax.f32 %v506, %v522
    %v539 = vmax.f32 %v507, %v523
    %v540 = vmax.f32 %v508, %v524
    %v541 = vmax.f32 %v509, %v525
    %v542 = vmax.f32 %v510, %v526
    %v543 = vmax.f32 %v511, %v527
    %v544 = vmax.f32 %v512, %v528
    %v545 = vmax.f32 %v513, %v529
    %v546 = vmax.f32 %v514, %v530
    %v547 = vmax.f32 %v515, %v531
    %v548 = vmax.f32 %v516, %v532
    %549 = vset.pattern.permute.xlu0 5
    %550 = vperm.xlu0 %549, %v119
    %v551 = vpop.permute.xlu0 %550
    %553 = vset.pattern.permute.xlu0 5
    %554 = vperm.xlu0 %553, %v120
    %v555 = vpop.permute.xlu0 %554
    %557 = vset.pattern.permute.xlu0 5
    %558 = vperm.xlu0 %557, %v121
    %v559 = vpop.permute.xlu0 %558
    %561 = vset.pattern.permute.xlu0 5
    %562 = vperm.xlu0 %561, %v122
    %v563 = vpop.permute.xlu0 %562
    %565 = vset.pattern.permute.xlu0 5
    %566 = vperm.xlu0 %565, %v123
    %v567 = vpop.permute.xlu0 %566
    %569 = vset.pattern.permute.xlu0 5
    %570 = vperm.xlu0 %569, %v124
    %v571 = vpop.permute.xlu0 %570
    %573 = vset.pattern.permute.xlu0 5
    %574 = vperm.xlu0 %573, %v125
    %v575 = vpop.permute.xlu0 %574
    %577 = vset.pattern.permute.xlu0 5
    %578 = vperm.xlu0 %577, %v126
    %v579 = vpop.permute.xlu0 %578
    %581 = vset.pattern.permute.xlu0 5
    %582 = vperm.xlu0 %581, %v127
    %v583 = vpop.permute.xlu0 %582
    %585 = vset.pattern.permute.xlu0 5
    %586 = vperm.xlu0 %585, %v128
    %v587 = vpop.permute.xlu0 %586
    %589 = vset.pattern.permute.xlu0 5
    %590 = vperm.xlu0 %589, %v129
    %v591 = vpop.permute.xlu0 %590
    %593 = vset.pattern.permute.xlu0 5
    %594 = vperm.xlu0 %593, %v130
    %v595 = vpop.permute.xlu0 %594
    %597 = vset.pattern.permute.xlu0 5
    %598 = vperm.xlu0 %597, %v131
    %v599 = vpop.permute.xlu0 %598
    %601 = vset.pattern.permute.xlu0 5
    %602 = vperm.xlu0 %601, %v132
    %v603 = vpop.permute.xlu0 %602
    %605 = vset.pattern.permute.xlu0 5
    %606 = vperm.xlu0 %605, %v133
    %v607 = vpop.permute.xlu0 %606
    %609 = vset.pattern.permute.xlu0 5
    %610 = vperm.xlu0 %609, %v134
    %v611 = vpop.permute.xlu0 %610
    %v613 = vsub.f32 %v533, %v551
    %v614 = vsub.f32 %v534, %v555
    %v615 = vsub.f32 %v535, %v559
    %v616 = vsub.f32 %v536, %v563
    %v617 = vsub.f32 %v537, %v567
    %v618 = vsub.f32 %v538, %v571
    %v619 = vsub.f32 %v539, %v575
    %v620 = vsub.f32 %v540, %v579
    %v621 = vsub.f32 %v541, %v583
    %v622 = vsub.f32 %v542, %v587
    %v623 = vsub.f32 %v543, %v591
    %v624 = vsub.f32 %v544, %v595
    %v625 = vsub.f32 %v545, %v599
    %v626 = vsub.f32 %v546, %v603
    %v627 = vsub.f32 %v547, %v607
    %v628 = vsub.f32 %v548, %v611
    %v629 = vmul.f32 %v613, 1.442695
    %v630 = vpow.pop %v629
    %v631 = vmul.f32 %v614, 1.442695
    %v632 = vpow.pop %v631
    %v633 = vmul.f32 %v615, 1.442695
    %v634 = vpow.pop %v633
    %v635 = vmul.f32 %v616, 1.442695
    %v636 = vpow.pop %v635
    %v637 = vmul.f32 %v617, 1.442695
    %v638 = vpow.pop %v637
    %v639 = vmul.f32 %v618, 1.442695
    %v640 = vpow.pop %v639
    %v641 = vmul.f32 %v619, 1.442695
    %v642 = vpow.pop %v641
    %v643 = vmul.f32 %v620, 1.442695
    %v644 = vpow.pop %v643
    %v645 = vmul.f32 %v621, 1.442695
    %v646 = vpow.pop %v645
    %v647 = vmul.f32 %v622, 1.442695
    %v648 = vpow.pop %v647
    %v649 = vmul.f32 %v623, 1.442695
    %v650 = vpow.pop %v649
    %v651 = vmul.f32 %v624, 1.442695
    %v652 = vpow.pop %v651
    %v653 = vmul.f32 %v625, 1.442695
    %v654 = vpow.pop %v653
    %v655 = vmul.f32 %v626, 1.442695
    %v656 = vpow.pop %v655
    %v657 = vmul.f32 %v627, 1.442695
    %v658 = vpow.pop %v657
    %v659 = vmul.f32 %v628, 1.442695
    %v660 = vpow.pop %v659
    %v661 = vmul.f32 %v630, %v87
    %v662 = vmul.f32 %v632, %v88
    %v663 = vmul.f32 %v634, %v89
    %v664 = vmul.f32 %v636, %v90
    %v665 = vmul.f32 %v638, %v91
    %v666 = vmul.f32 %v640, %v92
    %v667 = vmul.f32 %v642, %v93
    %v668 = vmul.f32 %v644, %v94
    %v669 = vmul.f32 %v646, %v95
    %v670 = vmul.f32 %v648, %v96
    %v671 = vmul.f32 %v650, %v97
    %v672 = vmul.f32 %v652, %v98
    %v673 = vmul.f32 %v654, %v99
    %v674 = vmul.f32 %v656, %v100
    %v675 = vmul.f32 %v658, %v101
    %v676 = vmul.f32 %v660, %v102
    %v677 = vpack.c.bf16 %v662, %v661
    %v678 = vpack.c.bf16 %v664, %v663
    %v679 = vpack.c.bf16 %v666, %v665
    %v680 = vpack.c.bf16 %v668, %v667
    %v681 = vpack.c.bf16 %v670, %v669
    %v682 = vpack.c.bf16 %v672, %v671
    %v683 = vpack.c.bf16 %v674, %v673
    %v684 = vpack.c.bf16 %v676, %v675
    %v685 = vshrl.u32 %v404, 16
    %v686 = vpack.i.b16 %v685, %v685
    %v688 = vlaneseq
    %v689 = vshrl.u32 %v688, 7
    %v690 = vsub.s32 0, %v689
    %v691 = vrot.slane %v686, %v690
    %v693 = vunpack.c.l.b16 %v691
    %v694 = vpack.c.b16 %v693, %v693
    %v696 = vmul.bf16 %v103, %v694
    %v697 = vmul.bf16 %v104, %v694
    %v698 = vmul.bf16 %v105, %v694
    %v699 = vmul.bf16 %v106, %v694
    %v700 = vmul.bf16 %v107, %v694
    %v701 = vmul.bf16 %v108, %v694
    %v702 = vmul.bf16 %v109, %v694
    %v703 = vmul.bf16 %v110, %v694
    %v704 = vmul.bf16 %v111, %v694
    %v705 = vmul.bf16 %v112, %v694
    %v706 = vmul.bf16 %v113, %v694
    %v707 = vmul.bf16 %v114, %v694
    %v708 = vmul.bf16 %v115, %v694
    %v709 = vmul.bf16 %v116, %v694
    %v710 = vmul.bf16 %v117, %v694
    %v711 = vmul.bf16 %v118, %v694
    %v728 = vunpack.c.l.b16 %v696
    %v729 = vunpack.c.l.b16 %v697
    %v730 = vunpack.c.l.b16 %v698
    %v731 = vunpack.c.l.b16 %v699
    %v732 = vunpack.c.l.b16 %v700
    %v733 = vunpack.c.l.b16 %v701
    %v734 = vunpack.c.l.b16 %v702
    %v735 = vunpack.c.l.b16 %v703
    %v736 = vunpack.c.l.b16 %v704
    %v737 = vunpack.c.l.b16 %v705
    %v738 = vunpack.c.l.b16 %v706
    %v739 = vunpack.c.l.b16 %v707
    %v740 = vunpack.c.l.b16 %v708
    %v741 = vunpack.c.l.b16 %v709
    %v742 = vunpack.c.l.b16 %v710
    %v743 = vunpack.c.l.b16 %v711
    %v744 = vpack.c.b16 %v729, %v728
    %v745 = vpack.c.b16 %v731, %v730
    %v746 = vpack.c.b16 %v733, %v732
    %v747 = vpack.c.b16 %v735, %v734
    %v748 = vpack.c.b16 %v737, %v736
    %v749 = vpack.c.b16 %v739, %v738
    %v750 = vpack.c.b16 %v741, %v740
    %v751 = vpack.c.b16 %v743, %v742
    %760 = vmatprep.subr.bf16.mxu0 0
    %761 = vmatpush1.bf16.msra.mxu0 %v744
    %762 = vmatprep.subr.bf16.mxu0 0
    %763 = vmatpush1.bf16.msra.mxu0 %v745
    %764 = vmatprep.subr.bf16.mxu0 0
    %765 = vmatpush1.bf16.msra.mxu0 %v746
    %766 = vmatprep.subr.bf16.mxu0 0
    %767 = vmatpush1.bf16.msra.mxu0 %v747
    %768 = vmatprep.subr.bf16.mxu0 0
    %769 = vmatpush1.bf16.msra.mxu0 %v748
    %770 = vmatprep.subr.bf16.mxu0 0
    %771 = vmatpush1.bf16.msra.mxu0 %v749
    %772 = vmatprep.subr.bf16.mxu0 0
    %773 = vmatpush1.bf16.msra.mxu0 %v750
    %774 = vmatprep.subr.bf16.mxu0 0
    %775 = vmatpush1.bf16.msra.mxu0 %v751
    %776 = vmatprep.subr.bf16.mxu0 0
    %777 = vmatpush1.bf16.msra.mxu0 0
    %778 = vmatprep.subr.bf16.mxu0 0
    %779 = vmatpush1.bf16.msra.mxu0 0
    %780 = vmatprep.subr.bf16.mxu0 0
    %781 = vmatpush1.bf16.msra.mxu0 0
    %782 = vmatprep.subr.bf16.mxu0 0
    %783 = vmatpush1.bf16.msra.mxu0 0
    %784 = vmatprep.subr.bf16.mxu0 0
    %785 = vmatpush1.bf16.msra.mxu0 0
    %786 = vmatprep.subr.bf16.mxu0 0
    %787 = vmatpush1.bf16.msra.mxu0 0
    %788 = vmatprep.subr.bf16.mxu0 0
    %789 = vmatpush1.bf16.msra.mxu0 0
    %790 = vmatprep.subr.bf16.mxu0 0
    %791 = vmatpush1.bf16.msra.mxu0 0
    %792 = vmatprep.mubr.bf16.mxu0 0
    %793 = vmatmul.mubr.bf16.gmra.mrb[0].mxu0 %v677
    %v794 = vpop.f32.mrb[0].mxu0
    %v795 = vadd.f32 0.0, %v794
    %v796 = vpop.f32.mrb[0].mxu0
    %v797 = vpop.f32.mrb[0].mxu0
    %v798 = vadd.f32 0.0, %v797
    %v799 = vpop.f32.mrb[0].mxu0
    %800 = vmatprep.mubr.bf16.mxu0 0
    %801 = vmatmul.mubr.bf16.gmra.mrb[0].mxu0 %v678
    %v802 = vpop.f32.mrb[0].mxu0
    %v803 = vadd.f32 0.0, %v802
    %v804 = vpop.f32.mrb[0].mxu0
    %v805 = vpop.f32.mrb[0].mxu0
    %v806 = vadd.f32 0.0, %v805
    %v807 = vpop.f32.mrb[0].mxu0
    %808 = vmatprep.mubr.bf16.mxu0 0
    %809 = vmatmul.mubr.bf16.gmra.mrb[0].mxu0 %v679
    %v810 = vpop.f32.mrb[0].mxu0
    %v811 = vadd.f32 0.0, %v810
    %v812 = vpop.f32.mrb[0].mxu0
    %v813 = vpop.f32.mrb[0].mxu0
    %v814 = vadd.f32 0.0, %v813
    %v815 = vpop.f32.mrb[0].mxu0
    %816 = vmatprep.mubr.bf16.mxu0 0
    %817 = vmatmul.mubr.bf16.gmra.mrb[0].mxu0 %v680
    %v818 = vpop.f32.mrb[0].mxu0
    %v819 = vadd.f32 0.0, %v818
    %v820 = vpop.f32.mrb[0].mxu0
    %v821 = vpop.f32.mrb[0].mxu0
    %v822 = vadd.f32 0.0, %v821
    %v823 = vpop.f32.mrb[0].mxu0
    %824 = vmatprep.mubr.bf16.mxu0 0
    %825 = vmatmul.mubr.bf16.gmra.mrb[0].mxu0 %v681
    %v826 = vpop.f32.mrb[0].mxu0
    %v827 = vadd.f32 0.0, %v826
    %v828 = vpop.f32.mrb[0].mxu0
    %v829 = vpop.f32.mrb[0].mxu0
    %v830 = vadd.f32 0.0, %v829
    %v831 = vpop.f32.mrb[0].mxu0
    %832 = vmatprep.mubr.bf16.mxu0 0
    %833 = vmatmul.mubr.bf16.gmra.mrb[0].mxu0 %v682
    %v834 = vpop.f32.mrb[0].mxu0
    %v835 = vadd.f32 0.0, %v834
    %v836 = vpop.f32.mrb[0].mxu0
    %v837 = vpop.f32.mrb[0].mxu0
    %v838 = vadd.f32 0.0, %v837
    %v839 = vpop.f32.mrb[0].mxu0
    %840 = vmatprep.mubr.bf16.mxu0 0
    %841 = vmatmul.mubr.bf16.gmra.mrb[0].mxu0 %v683
    %v842 = vpop.f32.mrb[0].mxu0
    %v843 = vadd.f32 0.0, %v842
    %v844 = vpop.f32.mrb[0].mxu0
    %v845 = vpop.f32.mrb[0].mxu0
    %v846 = vadd.f32 0.0, %v845
    %v847 = vpop.f32.mrb[0].mxu0
    %848 = vmatprep.mubr.bf16.mxu0 0
    %849 = vmatmul.mubr.bf16.gmra.mrb[0].mxu0 %v684
    %v850 = vpop.f32.mrb[0].mxu0
    %v851 = vadd.f32 0.0, %v850
    %v852 = vpop.f32.mrb[0].mxu0
    %v853 = vpop.f32.mrb[0].mxu0
    %v854 = vadd.f32 0.0, %v853
    %v855 = vpop.f32.mrb[0].mxu0
    %856 = vdwg.mxu0
    %v873 = vunpack.c.l.b16 %v416
    %v874 = vunpack.c.l.b16 %v417
    %v875 = vunpack.c.l.b16 %v418
    %v876 = vunpack.c.l.b16 %v419
    %v877 = vunpack.c.l.b16 %v420
    %v878 = vunpack.c.l.b16 %v421
    %v879 = vunpack.c.l.b16 %v422
    %v880 = vunpack.c.l.b16 %v423
    %v881 = vunpack.c.l.b16 %v424
    %v882 = vunpack.c.l.b16 %v425
    %v883 = vunpack.c.l.b16 %v426
    %v884 = vunpack.c.l.b16 %v427
    %v885 = vunpack.c.l.b16 %v428
    %v886 = vunpack.c.l.b16 %v429
    %v887 = vunpack.c.l.b16 %v430
    %v888 = vunpack.c.l.b16 %v431
    %v889 = vpack.c.b16 %v874, %v873
    %v890 = vpack.c.b16 %v876, %v875
    %v891 = vpack.c.b16 %v878, %v877
    %v892 = vpack.c.b16 %v880, %v879
    %v893 = vpack.c.b16 %v882, %v881
    %v894 = vpack.c.b16 %v884, %v883
    %v895 = vpack.c.b16 %v886, %v885
    %v896 = vpack.c.b16 %v888, %v887
    %905 = vmatprep.subr.bf16.mxu0 0
    %906 = vmatpush1.bf16.msra.mxu0 %v889
    %907 = vmatprep.subr.bf16.mxu0 0
    %908 = vmatpush1.bf16.msra.mxu0 %v890
    %909 = vmatprep.subr.bf16.mxu0 0
    %910 = vmatpush1.bf16.msra.mxu0 %v891
    %911 = vmatprep.subr.bf16.mxu0 0
    %912 = vmatpush1.bf16.msra.mxu0 %v892
    %913 = vmatprep.subr.bf16.mxu0 0
    %914 = vmatpush1.bf16.msra.mxu0 %v893
    %915 = vmatprep.subr.bf16.mxu0 0
    %916 = vmatpush1.bf16.msra.mxu0 %v894
    %917 = vmatprep.subr.bf16.mxu0 0
    %918 = vmatpush1.bf16.msra.mxu0 %v895
    %919 = vmatprep.subr.bf16.mxu0 0
    %920 = vmatpush1.bf16.msra.mxu0 %v896
    %921 = vmatprep.subr.bf16.mxu0 0
    %922 = vmatpush1.bf16.msra.mxu0 0
    %923 = vmatprep.subr.bf16.mxu0 0
    %924 = vmatpush1.bf16.msra.mxu0 0
    %925 = vmatprep.subr.bf16.mxu0 0
    %926 = vmatpush1.bf16.msra.mxu0 0
    %927 = vmatprep.subr.bf16.mxu0 0
    %928 = vmatpush1.bf16.msra.mxu0 0
    %929 = vmatprep.subr.bf16.mxu0 0
    %930 = vmatpush1.bf16.msra.mxu0 0
    %931 = vmatprep.subr.bf16.mxu0 0
    %932 = vmatpush1.bf16.msra.mxu0 0
    %933 = vmatprep.subr.bf16.mxu0 0
    %934 = vmatpush1.bf16.msra.mxu0 0
    %935 = vmatprep.subr.bf16.mxu0 0
    %936 = vmatpush1.bf16.msra.mxu0 0
    %937 = vmatprep.mubr.bf16.mxu0 0
    %938 = vmatmul.mubr.bf16.gmra.mrb[0].mxu0 %v396
    %v939 = vpop.f32.mrb[0].mxu0
    %v940 = vadd.f32 %v795, %v939
    %v941 = vpop.f32.mrb[0].mxu0
    %v942 = vpop.f32.mrb[0].mxu0
    %v943 = vadd.f32 %v798, %v942
    %v944 = vpop.f32.mrb[0].mxu0
    %945 = vmatprep.mubr.bf16.mxu0 0
    %946 = vmatmul.mubr.bf16.gmra.mrb[0].mxu0 %v397
    %v947 = vpop.f32.mrb[0].mxu0
    %v948 = vadd.f32 %v803, %v947
    %v949 = vpop.f32.mrb[0].mxu0
    %v950 = vpop.f32.mrb[0].mxu0
    %v951 = vadd.f32 %v806, %v950
    %v952 = vpop.f32.mrb[0].mxu0
    %953 = vmatprep.mubr.bf16.mxu0 0
    %954 = vmatmul.mubr.bf16.gmra.mrb[0].mxu0 %v398
    %v955 = vpop.f32.mrb[0].mxu0
    %v956 = vadd.f32 %v811, %v955
    %v957 = vpop.f32.mrb[0].mxu0
    %v958 = vpop.f32.mrb[0].mxu0
    %v959 = vadd.f32 %v814, %v958
    %v960 = vpop.f32.mrb[0].mxu0
    %961 = vmatprep.mubr.bf16.mxu0 0
    %962 = vmatmul.mubr.bf16.gmra.mrb[0].mxu0 %v399
    %v963 = vpop.f32.mrb[0].mxu0
    %v964 = vadd.f32 %v819, %v963
    %v965 = vpop.f32.mrb[0].mxu0
    %v966 = vpop.f32.mrb[0].mxu0
    %v967 = vadd.f32 %v822, %v966
    %v968 = vpop.f32.mrb[0].mxu0
    %969 = vmatprep.mubr.bf16.mxu0 0
    %970 = vmatmul.mubr.bf16.gmra.mrb[0].mxu0 %v400
    %v971 = vpop.f32.mrb[0].mxu0
    %v972 = vadd.f32 %v827, %v971
    %v973 = vpop.f32.mrb[0].mxu0
    %v974 = vpop.f32.mrb[0].mxu0
    %v975 = vadd.f32 %v830, %v974
    %v976 = vpop.f32.mrb[0].mxu0
    %977 = vmatprep.mubr.bf16.mxu0 0
    %978 = vmatmul.mubr.bf16.gmra.mrb[0].mxu0 %v401
    %v979 = vpop.f32.mrb[0].mxu0
    %v980 = vadd.f32 %v835, %v979
    %v981 = vpop.f32.mrb[0].mxu0
    %v982 = vpop.f32.mrb[0].mxu0
    %v983 = vadd.f32 %v838, %v982
    %v984 = vpop.f32.mrb[0].mxu0
    %985 = vmatprep.mubr.bf16.mxu0 0
    %986 = vmatmul.mubr.bf16.gmra.mrb[0].mxu0 %v402
    %v987 = vpop.f32.mrb[0].mxu0
    %v988 = vadd.f32 %v843, %v987
    %v989 = vpop.f32.mrb[0].mxu0
    %v990 = vpop.f32.mrb[0].mxu0
    %v991 = vadd.f32 %v846, %v990
    %v992 = vpop.f32.mrb[0].mxu0
    %993 = vmatprep.mubr.bf16.mxu0 0
    %994 = vmatmul.mubr.bf16.gmra.mrb[0].mxu0 %v403
    %v995 = vpop.f32.mrb[0].mxu0
    %v996 = vadd.f32 %v851, %v995
    %v997 = vpop.f32.mrb[0].mxu0
    %v998 = vpop.f32.mrb[0].mxu0
    %v999 = vadd.f32 %v854, %v998
    %v1000 = vpop.f32.mrb[0].mxu0
    %1001 = vdwg.mxu0
    %v1002 = vld [vmem:[#allocation2] sm:$0xff]
    %v1003 = vld [vmem:[#allocation2 + $0x8] sm:$0xff]
    %v1004 = vld [vmem:[#allocation2 + $0x10] sm:$0xff]
    %v1005 = vld [vmem:[#allocation2 + $0x18] sm:$0xff]
    %v1006 = vld [vmem:[#allocation2 + $0x20] sm:$0xff]
    %v1007 = vld [vmem:[#allocation2 + $0x28] sm:$0xff]
    %v1008 = vld [vmem:[#allocation2 + $0x30] sm:$0xff]
    %v1009 = vld [vmem:[#allocation2 + $0x38] sm:$0xff]
    %v1010 = vld [vmem:[#allocation2 + $0x40] sm:$0xff]
    %v1011 = vld [vmem:[#allocation2 + $0x48] sm:$0xff]
    %v1012 = vld [vmem:[#allocation2 + $0x50] sm:$0xff]
    %v1013 = vld [vmem:[#allocation2 + $0x58] sm:$0xff]
    %v1014 = vld [vmem:[#allocation2 + $0x60] sm:$0xff]
    %v1015 = vld [vmem:[#allocation2 + $0x68] sm:$0xff]
    %v1016 = vld [vmem:[#allocation2 + $0x70] sm:$0xff]
    %v1017 = vld [vmem:[#allocation2 + $0x78] sm:$0xff]
    %v1018 = vadd.f32 %v1002, %v940
    %v1019 = vadd.f32 %v1003, %v943
    %v1020 = vadd.f32 %v1004, %v948
    %v1021 = vadd.f32 %v1005, %v951
    %v1022 = vadd.f32 %v1006, %v956
    %v1023 = vadd.f32 %v1007, %v959
    %v1024 = vadd.f32 %v1008, %v964
    %v1025 = vadd.f32 %v1009, %v967
    %v1026 = vadd.f32 %v1010, %v972
    %v1027 = vadd.f32 %v1011, %v975
    %v1028 = vadd.f32 %v1012, %v980
    %v1029 = vadd.f32 %v1013, %v983
    %v1030 = vadd.f32 %v1014, %v988
    %v1031 = vadd.f32 %v1015, %v991
    %v1032 = vadd.f32 %v1016, %v996
    %v1033 = vadd.f32 %v1017, %v999
    %1034 = vst [vmem:[#allocation2] sm:$0xff] %v1018
    %1035 = vst [vmem:[#allocation2 + $0x8] sm:$0xff] %v1019
    %1036 = vst [vmem:[#allocation2 + $0x10] sm:$0xff] %v1020
    %1037 = vst [vmem:[#allocation2 + $0x18] sm:$0xff] %v1021
    %1038 = vst [vmem:[#allocation2 + $0x20] sm:$0xff] %v1022
    %1039 = vst [vmem:[#allocation2 + $0x28] sm:$0xff] %v1023
    %1040 = vst [vmem:[#allocation2 + $0x30] sm:$0xff] %v1024
    %1041 = vst [vmem:[#allocation2 + $0x38] sm:$0xff] %v1025
    %1042 = vst [vmem:[#allocation2 + $0x40] sm:$0xff] %v1026
    %1043 = vst [vmem:[#allocation2 + $0x48] sm:$0xff] %v1027
    %1044 = vst [vmem:[#allocation2 + $0x50] sm:$0xff] %v1028
    %1045 = vst [vmem:[#allocation2 + $0x58] sm:$0xff] %v1029
    %1046 = vst [vmem:[#allocation2 + $0x60] sm:$0xff] %v1030
    %1047 = vst [vmem:[#allocation2 + $0x68] sm:$0xff] %v1031
    %1048 = vst [vmem:[#allocation2 + $0x70] sm:$0xff] %v1032
    %1049 = vst [vmem:[#allocation2 + $0x78] sm:$0xff] %v1033
  $region37: #{_forward_impl.7} parent=0 // pred_fallthru
    _
  // Predicated region
  $region38: #{_forward_impl.7} parent=0 // pred_check
    %p1050 = pneg %p29
  $region39: #{_forward_impl.7} parent=0 // pred_check_branch
    %1052 = sbr.rel (%p1050) target = $region41
  $region40: #{_forward_impl.7} parent=0 // pred_region
    %v1053 = vld [vmem:[#allocation2] sm:$0xff]
    %v1054 = vld [vmem:[#allocation2 + $0x8] sm:$0xff]
    %v1055 = vld [vmem:[#allocation2 + $0x10] sm:$0xff]
    %v1056 = vld [vmem:[#allocation2 + $0x18] sm:$0xff]
    %v1057 = vld [vmem:[#allocation2 + $0x20] sm:$0xff]
    %v1058 = vld [vmem:[#allocation2 + $0x28] sm:$0xff]
    %v1059 = vld [vmem:[#allocation2 + $0x30] sm:$0xff]
    %v1060 = vld [vmem:[#allocation2 + $0x38] sm:$0xff]
    %v1061 = vld [vmem:[#allocation2 + $0x40] sm:$0xff]
    %v1062 = vld [vmem:[#allocation2 + $0x48] sm:$0xff]
    %v1063 = vld [vmem:[#allocation2 + $0x50] sm:$0xff]
    %v1064 = vld [vmem:[#allocation2 + $0x58] sm:$0xff]
    %v1065 = vld [vmem:[#allocation2 + $0x60] sm:$0xff]
    %v1066 = vld [vmem:[#allocation2 + $0x68] sm:$0xff]
    %v1067 = vld [vmem:[#allocation2 + $0x70] sm:$0xff]
    %v1068 = vld [vmem:[#allocation2 + $0x78] sm:$0xff]
    %v1069 = vld [vmem:[%s5] sm:$0x2]
    %v1070 = vunpack.c.l.bf16 %v1069
    %v1071 = vld [vmem:[%s5] sm:$0x1]
    %v1072 = vunpack.c.l.bf16 %v1071
    %1074 = vset.pattern.permute.xlu0 32
    %1075 = vperm.xlu0 %1074, %v1053
    %v1076 = vpop.permute.xlu0 %1075
    %1079 = vset.pattern.permute.xlu0 32
    %1080 = vperm.xlu0 %1079, %v1054
    %v1081 = vpop.permute.xlu0 %1080
    %1084 = vset.pattern.permute.xlu0 32
    %1085 = vperm.xlu0 %1084, %v1055
    %v1086 = vpop.permute.xlu0 %1085
    %1089 = vset.pattern.permute.xlu0 32
    %1090 = vperm.xlu0 %1089, %v1056
    %v1091 = vpop.permute.xlu0 %1090
    %1094 = vset.pattern.permute.xlu0 32
    %1095 = vperm.xlu0 %1094, %v1057
    %v1096 = vpop.permute.xlu0 %1095
    %1099 = vset.pattern.permute.xlu0 32
    %1100 = vperm.xlu0 %1099, %v1058
    %v1101 = vpop.permute.xlu0 %1100
    %1104 = vset.pattern.permute.xlu0 32
    %1105 = vperm.xlu0 %1104, %v1059
    %v1106 = vpop.permute.xlu0 %1105
    %1109 = vset.pattern.permute.xlu0 32
    %1110 = vperm.xlu0 %1109, %v1060
    %v1111 = vpop.permute.xlu0 %1110
    %1114 = vset.pattern.permute.xlu0 32
    %1115 = vperm.xlu0 %1114, %v1061
    %v1116 = vpop.permute.xlu0 %1115
    %1119 = vset.pattern.permute.xlu0 32
    %1120 = vperm.xlu0 %1119, %v1062
    %v1121 = vpop.permute.xlu0 %1120
    %1124 = vset.pattern.permute.xlu0 32
    %1125 = vperm.xlu0 %1124, %v1063
    %v1126 = vpop.permute.xlu0 %1125
    %1129 = vset.pattern.permute.xlu0 32
    %1130 = vperm.xlu0 %1129, %v1064
    %v1131 = vpop.permute.xlu0 %1130
    %1134 = vset.pattern.permute.xlu0 32
    %1135 = vperm.xlu0 %1134, %v1065
    %v1136 = vpop.permute.xlu0 %1135
    %1139 = vset.pattern.permute.xlu0 32
    %1140 = vperm.xlu0 %1139, %v1066
    %v1141 = vpop.permute.xlu0 %1140
    %1144 = vset.pattern.permute.xlu0 32
    %1145 = vperm.xlu0 %1144, %v1067
    %v1146 = vpop.permute.xlu0 %1145
    %1149 = vset.pattern.permute.xlu0 32
    %1150 = vperm.xlu0 %1149, %v1068
    %v1151 = vpop.permute.xlu0 %1150
    %v1153 = vlaneseq
    %v1154 = vshrl.u32 %v1153, 7
    %v1155 = vsub.s32 0, %v1154
    %v1156 = vrot.slane %v1072, %v1155
    %v1157 = vmul.f32 %v1076, %v1156
    %v1158 = vmul.f32 %v1081, %v1156
    %v1159 = vmul.f32 %v1086, %v1156
    %v1160 = vmul.f32 %v1091, %v1156
    %v1161 = vmul.f32 %v1096, %v1156
    %v1162 = vmul.f32 %v1101, %v1156
    %v1163 = vmul.f32 %v1106, %v1156
    %v1164 = vmul.f32 %v1111, %v1156
    %v1165 = vmul.f32 %v1116, %v1156
    %v1166 = vmul.f32 %v1121, %v1156
    %v1167 = vmul.f32 %v1126, %v1156
    %v1168 = vmul.f32 %v1131, %v1156
    %v1169 = vmul.f32 %v1136, %v1156
    %v1170 = vmul.f32 %v1141, %v1156
    %v1171 = vmul.f32 %v1146, %v1156
    %v1172 = vmul.f32 %v1151, %v1156
    %v1173 = vlaneseq
    %v1174 = vshrl.u32 %v1173, 7
    %v1175 = vsub.s32 2, %v1174
    %v1176 = vrot.slane %v1070, %v1175
    %v1177 = vadd.f32 %v1176, %v1157
    %v1178 = vadd.f32 %v1176, %v1158
    %v1179 = vadd.f32 %v1176, %v1159
    %v1180 = vadd.f32 %v1176, %v1160
    %v1181 = vadd.f32 %v1176, %v1161
    %v1182 = vadd.f32 %v1176, %v1162
    %v1183 = vadd.f32 %v1176, %v1163
    %v1184 = vadd.f32 %v1176, %v1164
    %v1185 = vadd.f32 %v1176, %v1165
    %v1186 = vadd.f32 %v1176, %v1166
    %v1187 = vadd.f32 %v1176, %v1167
    %v1188 = vadd.f32 %v1176, %v1168
    %v1189 = vadd.f32 %v1176, %v1169
    %v1190 = vadd.f32 %v1176, %v1170
    %v1191 = vadd.f32 %v1176, %v1171
    %v1192 = vadd.f32 %v1176, %v1172
    %1193 = vset.pattern.permute.xlu0 33
    %1194 = vperm.xlu0 %1193, %v1053
    %v1195 = vpop.permute.xlu0 %1194
    %1197 = vset.pattern.permute.xlu0 33
    %1198 = vperm.xlu0 %1197, %v1054
    %v1199 = vpop.permute.xlu0 %1198
    %1201 = vset.pattern.permute.xlu0 33
    %1202 = vperm.xlu0 %1201, %v1055
    %v1203 = vpop.permute.xlu0 %1202
    %1205 = vset.pattern.permute.xlu0 33
    %1206 = vperm.xlu0 %1205, %v1056
    %v1207 = vpop.permute.xlu0 %1206
    %1209 = vset.pattern.permute.xlu0 33
    %1210 = vperm.xlu0 %1209, %v1057
    %v1211 = vpop.permute.xlu0 %1210
    %1213 = vset.pattern.permute.xlu0 33
    %1214 = vperm.xlu0 %1213, %v1058
    %v1215 = vpop.permute.xlu0 %1214
    %1217 = vset.pattern.permute.xlu0 33
    %1218 = vperm.xlu0 %1217, %v1059
    %v1219 = vpop.permute.xlu0 %1218
    %1221 = vset.pattern.permute.xlu0 33
    %1222 = vperm.xlu0 %1221, %v1060
    %v1223 = vpop.permute.xlu0 %1222
    %1225 = vset.pattern.permute.xlu0 33
    %1226 = vperm.xlu0 %1225, %v1061
    %v1227 = vpop.permute.xlu0 %1226
    %1229 = vset.pattern.permute.xlu0 33
    %1230 = vperm.xlu0 %1229, %v1062
    %v1231 = vpop.permute.xlu0 %1230
    %1233 = vset.pattern.permute.xlu0 33
    %1234 = vperm.xlu0 %1233, %v1063
    %v1235 = vpop.permute.xlu0 %1234
    %1237 = vset.pattern.permute.xlu0 33
    %1238 = vperm.xlu0 %1237, %v1064
    %v1239 = vpop.permute.xlu0 %1238
    %1241 = vset.pattern.permute.xlu0 33
    %1242 = vperm.xlu0 %1241, %v1065
    %v1243 = vpop.permute.xlu0 %1242
    %1245 = vset.pattern.permute.xlu0 33
    %1246 = vperm.xlu0 %1245, %v1066
    %v1247 = vpop.permute.xlu0 %1246
    %1249 = vset.pattern.permute.xlu0 33
    %1250 = vperm.xlu0 %1249, %v1067
    %v1251 = vpop.permute.xlu0 %1250
    %1253 = vset.pattern.permute.xlu0 33
    %1254 = vperm.xlu0 %1253, %v1068
    %v1255 = vpop.permute.xlu0 %1254
    %v1257 = vlaneseq
    %v1258 = vshrl.u32 %v1257, 7
    %v1259 = vsub.s32 1, %v1258
    %v1260 = vrot.slane %v1072, %v1259
    %v1261 = vmul.f32 %v1195, %v1260
    %v1262 = vmul.f32 %v1199, %v1260
    %v1263 = vmul.f32 %v1203, %v1260
    %v1264 = vmul.f32 %v1207, %v1260
    %v1265 = vmul.f32 %v1211, %v1260
    %v1266 = vmul.f32 %v1215, %v1260
    %v1267 = vmul.f32 %v1219, %v1260
    %v1268 = vmul.f32 %v1223, %v1260
    %v1269 = vmul.f32 %v1227, %v1260
    %v1270 = vmul.f32 %v1231, %v1260
    %v1271 = vmul.f32 %v1235, %v1260
    %v1272 = vmul.f32 %v1239, %v1260
    %v1273 = vmul.f32 %v1243, %v1260
    %v1274 = vmul.f32 %v1247, %v1260
    %v1275 = vmul.f32 %v1251, %v1260
    %v1276 = vmul.f32 %v1255, %v1260
    %v1277 = vadd.f32 %v1177, %v1261
    %v1278 = vadd.f32 %v1178, %v1262
    %v1279 = vadd.f32 %v1179, %v1263
    %v1280 = vadd.f32 %v1180, %v1264
    %v1281 = vadd.f32 %v1181, %v1265
    %v1282 = vadd.f32 %v1182, %v1266
    %v1283 = vadd.f32 %v1183, %v1267
    %v1284 = vadd.f32 %v1184, %v1268
    %v1285 = vadd.f32 %v1185, %v1269
    %v1286 = vadd.f32 %v1186, %v1270
    %v1287 = vadd.f32 %v1187, %v1271
    %v1288 = vadd.f32 %v1188, %v1272
    %v1289 = vadd.f32 %v1189, %v1273
    %v1290 = vadd.f32 %v1190, %v1274
    %v1291 = vadd.f32 %v1191, %v1275
    %v1292 = vadd.f32 %v1192, %v1276
    %v1293 = vmax.f32 %v1277, 1e-30
    %v1294 = vmax.f32 %v1278, 1e-30
    %v1295 = vmax.f32 %v1279, 1e-30
    %v1296 = vmax.f32 %v1280, 1e-30
    %v1297 = vmax.f32 %v1281, 1e-30
    %v1298 = vmax.f32 %v1282, 1e-30
    %v1299 = vmax.f32 %v1283, 1e-30
    %v1300 = vmax.f32 %v1284, 1e-30
    %v1301 = vmax.f32 %v1285, 1e-30
    %v1302 = vmax.f32 %v1286, 1e-30
    %v1303 = vmax.f32 %v1287, 1e-30
    %v1304 = vmax.f32 %v1288, 1e-30
    %v1305 = vmax.f32 %v1289, 1e-30
    %v1306 = vmax.f32 %v1290, 1e-30
    %v1307 = vmax.f32 %v1291, 1e-30
    %v1308 = vmax.f32 %v1292, 1e-30
    %v1309 = vrcp.pop %v1293
    %v1310 = vrcp.pop %v1294
    %v1311 = vrcp.pop %v1295
    %v1312 = vrcp.pop %v1296
    %v1313 = vrcp.pop %v1297
    %v1314 = vrcp.pop %v1298
    %v1315 = vrcp.pop %v1299
    %v1316 = vrcp.pop %v1300
    %v1317 = vrcp.pop %v1301
    %v1318 = vrcp.pop %v1302
    %v1319 = vrcp.pop %v1303
    %v1320 = vrcp.pop %v1304
    %v1321 = vrcp.pop %v1305
    %v1322 = vrcp.pop %v1306
    %v1323 = vrcp.pop %v1307
    %v1324 = vrcp.pop %v1308
    %v1325 = vmul.f32 %v1293, %v1309
    %v1326 = vmul.f32 %v1294, %v1310
    %v1327 = vmul.f32 %v1295, %v1311
    %v1328 = vmul.f32 %v1296, %v1312
    %v1329 = vmul.f32 %v1297, %v1313
    %v1330 = vmul.f32 %v1298, %v1314
    %v1331 = vmul.f32 %v1299, %v1315
    %v1332 = vmul.f32 %v1300, %v1316
    %v1333 = vmul.f32 %v1301, %v1317
    %v1334 = vmul.f32 %v1302, %v1318
    %v1335 = vmul.f32 %v1303, %v1319
    %v1336 = vmul.f32 %v1304, %v1320
    %v1337 = vmul.f32 %v1305, %v1321
    %v1338 = vmul.f32 %v1306, %v1322
    %v1339 = vmul.f32 %v1307, %v1323
    %v1340 = vmul.f32 %v1308, %v1324
    %v1341 = vsub.f32 2.0, %v1325
    %v1342 = vsub.f32 2.0, %v1326
    %v1343 = vsub.f32 2.0, %v1327
    %v1344 = vsub.f32 2.0, %v1328
    %v1345 = vsub.f32 2.0, %v1329
    %v1346 = vsub.f32 2.0, %v1330
    %v1347 = vsub.f32 2.0, %v1331
    %v1348 = vsub.f32 2.0, %v1332
    %v1349 = vsub.f32 2.0, %v1333
    %v1350 = vsub.f32 2.0, %v1334
    %v1351 = vsub.f32 2.0, %v1335
    %v1352 = vsub.f32 2.0, %v1336
    %v1353 = vsub.f32 2.0, %v1337
    %v1354 = vsub.f32 2.0, %v1338
    %v1355 = vsub.f32 2.0, %v1339
    %v1356 = vsub.f32 2.0, %v1340
    %v1357 = vmul.f32 %v1309, %v1341
    %v1358 = vmul.f32 %v1310, %v1342
    %v1359 = vmul.f32 %v1311, %v1343
    %v1360 = vmul.f32 %v1312, %v1344
    %v1361 = vmul.f32 %v1313, %v1345
    %v1362 = vmul.f32 %v1314, %v1346
    %v1363 = vmul.f32 %v1315, %v1347
    %v1364 = vmul.f32 %v1316, %v1348
    %v1365 = vmul.f32 %v1317, %v1349
    %v1366 = vmul.f32 %v1318, %v1350
    %v1367 = vmul.f32 %v1319, %v1351
    %v1368 = vmul.f32 %v1320, %v1352
    %v1369 = vmul.f32 %v1321, %v1353
    %v1370 = vmul.f32 %v1322, %v1354
    %v1371 = vmul.f32 %v1323, %v1355
    %v1372 = vmul.f32 %v1324, %v1356
    %v1373 = vmul.f32 %v1053, %v1357
    %v1374 = vmul.f32 %v1054, %v1358
    %v1375 = vmul.f32 %v1055, %v1359
    %v1376 = vmul.f32 %v1056, %v1360
    %v1377 = vmul.f32 %v1057, %v1361
    %v1378 = vmul.f32 %v1058, %v1362
    %v1379 = vmul.f32 %v1059, %v1363
    %v1380 = vmul.f32 %v1060, %v1364
    %v1381 = vmul.f32 %v1061, %v1365
    %v1382 = vmul.f32 %v1062, %v1366
    %v1383 = vmul.f32 %v1063, %v1367
    %v1384 = vmul.f32 %v1064, %v1368
    %v1385 = vmul.f32 %v1065, %v1369
    %v1386 = vmul.f32 %v1066, %v1370
    %v1387 = vmul.f32 %v1067, %v1371
    %v1388 = vmul.f32 %v1068, %v1372
    %v1389 = vld [vmem:[%s6] sm:$0x1]
    %v1391 = vlaneseq
    %v1392 = vshrl.u32 %v1391, 7
    %v1393 = vsub.s32 0, %v1392
    %v1394 = vrot.slane %v1389, %v1393
    %v1396 = vmul.f32 %v1373, %v1394
    %v1397 = vmul.f32 %v1374, %v1394
    %v1398 = vmul.f32 %v1375, %v1394
    %v1399 = vmul.f32 %v1376, %v1394
    %v1400 = vmul.f32 %v1377, %v1394
    %v1401 = vmul.f32 %v1378, %v1394
    %v1402 = vmul.f32 %v1379, %v1394
    %v1403 = vmul.f32 %v1380, %v1394
    %v1404 = vmul.f32 %v1381, %v1394
    %v1405 = vmul.f32 %v1382, %v1394
    %v1406 = vmul.f32 %v1383, %v1394
    %v1407 = vmul.f32 %v1384, %v1394
    %v1408 = vmul.f32 %v1385, %v1394
    %v1409 = vmul.f32 %v1386, %v1394
    %v1410 = vmul.f32 %v1387, %v1394
    %v1411 = vmul.f32 %v1388, %v1394
    %v1412 = vld [vmem:[%s7] sm:$0x1]
    %v1414 = vlaneseq
    %v1415 = vshrl.u32 %v1414, 7
    %v1416 = vsub.s32 0, %v1415
    %v1417 = vrot.slane %v1412, %v1416
    %v1419 = vadd.f32 %v1396, %v1417
    %v1420 = vadd.f32 %v1397, %v1417
    %v1421 = vadd.f32 %v1398, %v1417
    %v1422 = vadd.f32 %v1399, %v1417
    %v1423 = vadd.f32 %v1400, %v1417
    %v1424 = vadd.f32 %v1401, %v1417
    %v1425 = vadd.f32 %v1402, %v1417
    %v1426 = vadd.f32 %v1403, %v1417
    %v1427 = vadd.f32 %v1404, %v1417
    %v1428 = vadd.f32 %v1405, %v1417
    %v1429 = vadd.f32 %v1406, %v1417
    %v1430 = vadd.f32 %v1407, %v1417
    %v1431 = vadd.f32 %v1408, %v1417
    %v1432 = vadd.f32 %v1409, %v1417
    %v1433 = vadd.f32 %v1410, %v1417
    %v1434 = vadd.f32 %v1411, %v1417
    %v1435 = vmul.f32 %v1419, 0.2
    %v1436 = vmul.f32 %v1420, 0.2
    %v1437 = vmul.f32 %v1421, 0.2
    %v1438 = vmul.f32 %v1422, 0.2
    %v1439 = vmul.f32 %v1423, 0.2
    %v1440 = vmul.f32 %v1424, 0.2
    %v1441 = vmul.f32 %v1425, 0.2
    %v1442 = vmul.f32 %v1426, 0.2
    %v1443 = vmul.f32 %v1427, 0.2
    %v1444 = vmul.f32 %v1428, 0.2
    %v1445 = vmul.f32 %v1429, 0.2
    %v1446 = vmul.f32 %v1430, 0.2
    %v1447 = vmul.f32 %v1431, 0.2
    %v1448 = vmul.f32 %v1432, 0.2
    %v1449 = vmul.f32 %v1433, 0.2
    %v1450 = vmul.f32 %v1434, 0.2
    %v1451 = vmax.f32 %v1419, %v1435
    %v1452 = vmax.f32 %v1420, %v1436
    %v1453 = vmax.f32 %v1421, %v1437
    %v1454 = vmax.f32 %v1422, %v1438
    %v1455 = vmax.f32 %v1423, %v1439
    %v1456 = vmax.f32 %v1424, %v1440
    %v1457 = vmax.f32 %v1425, %v1441
    %v1458 = vmax.f32 %v1426, %v1442
    %v1459 = vmax.f32 %v1427, %v1443
    %v1460 = vmax.f32 %v1428, %v1444
    %v1461 = vmax.f32 %v1429, %v1445
    %v1462 = vmax.f32 %v1430, %v1446
    %v1463 = vmax.f32 %v1431, %v1447
    %v1464 = vmax.f32 %v1432, %v1448
    %v1465 = vmax.f32 %v1433, %v1449
    %v1466 = vmax.f32 %v1434, %v1450
    %1467 = vst [vmem:[%s8] sm:$0xff] %v1451
    %1468 = vst [vmem:[%s8 + $0x8] sm:$0xff] %v1452
    %1469 = vst [vmem:[%s8 + $0x10] sm:$0xff] %v1453
    %1470 = vst [vmem:[%s8 + $0x18] sm:$0xff] %v1454
    %1471 = vst [vmem:[%s8 + $0x20] sm:$0xff] %v1455
    %1472 = vst [vmem:[%s8 + $0x28] sm:$0xff] %v1456
    %1473 = vst [vmem:[%s8 + $0x30] sm:$0xff] %v1457
    %1474 = vst [vmem:[%s8 + $0x38] sm:$0xff] %v1458
    %1475 = vst [vmem:[%s8 + $0x40] sm:$0xff] %v1459
    %1476 = vst [vmem:[%s8 + $0x48] sm:$0xff] %v1460
    %1477 = vst [vmem:[%s8 + $0x50] sm:$0xff] %v1461
    %1478 = vst [vmem:[%s8 + $0x58] sm:$0xff] %v1462
    %1479 = vst [vmem:[%s8 + $0x60] sm:$0xff] %v1463
    %1480 = vst [vmem:[%s8 + $0x68] sm:$0xff] %v1464
    %1481 = vst [vmem:[%s8 + $0x70] sm:$0xff] %v1465
    %1482 = vst [vmem:[%s8 + $0x78] sm:$0xff] %v1466
  $region41: #{_forward_impl.7} parent=0 // pred_fallthru
    _
  // Predicated region
  $region42: #{_forward_impl.7} parent=0 // pred_check
    _
  $region43: #{_forward_impl.7} parent=0 // pred_check_branch
    %1484 = sbr.rel (0) target = $region45
  $region44: #{_forward_impl.7} parent=0 // pred_region
    _
  $region45: #{_forward_impl.7} parent=0 // pred_fallthru
    _
  // Predicated region
  $region46: #{_forward_impl.7} parent=0 // pred_check
    _
  $region47: #{_forward_impl.7} parent=0 // pred_check_branch
    %1486 = sbr.rel (0) target = $region49
  $region48: #{_forward_impl.7} parent=0 // pred_region
    _
  $region49: #{_forward_impl.7} parent=0 // pred_fallthru
    _

// kernel: _forward_impl.11
$region0: #{_forward_impl.11}
  #allocation0 [shape = 'u32[]', space=smem, size = 0x4, offset = 0x4, fixed_abs, tag = 'smem constant byte address 0x4 - core index']
  #allocation1 [shape = 'u32[144,128]{1,0:T(1,128)}', space=vmem, size = 0x12000, scoped, tag = 'internal scratch']
  #allocation2 [shape = 'f32[128,128]{1,0:T(8,128)}', space=vmem, size = 0x10000, scoped, tag = 'scratch operand']
  #allocation3 [shape = 's32[1]{0}', space=sflag, size = 0x4, scoped, tag = 'scoped memory for _forward_impl.11']
  #allocation4 [shape = 's32[1]{0:T(128)S(6)}', space=smem, size = 0x200, scoped, tag = 'prefetched SMEM operand 0']
  %s0 = inlined_call_operand.<no memory space> [shape: s32[1], index: 0, kind: input, shape index: {}]
  %s1 = inlined_call_operand.vmem [shape: s8[128,128], index: 1, kind: input, shape index: {}]
  %s2 = inlined_call_operand.vmem [shape: bf16[128,128], index: 2, kind: input, shape index: {}]
  %s3 = inlined_call_operand.vmem [shape: f32[128,128], index: 3, kind: input, shape index: {}]
  %s4 = inlined_call_operand.vmem [shape: f32[1,128], index: 4, kind: input, shape index: {}]
  %s5 = inlined_call_operand.vmem [shape: bf16[2,128], index: 5, kind: input, shape index: {}]
  %s6 = inlined_call_operand.vmem [shape: f32[1,128], index: 6, kind: input, shape index: {}]
  %s7 = inlined_call_operand.vmem [shape: f32[1,128], index: 7, kind: input, shape index: {}]
  %s8 = inlined_call_operand.vmem [shape: f32[128,128], index: 8, kind: output, shape index: {}]
  %s9 = sld [smem:[#allocation0]]
  $region50: #{_forward_impl.11} parent=0
    _
  %s11 = ssub.s32 1, %s9
  %s12 = scalar_select 0, %s11, %s9
  %13 = sst [smem:[#allocation4]] %s0
  // Predicated region
  $region2: #{_forward_impl.11} parent=0 // pred_check
    _
  $region3: #{_forward_impl.11} parent=0 // pred_check_branch
    %15 = sbr.rel (0) target = $region5
  $region4: #{_forward_impl.11} parent=0 // pred_region
    _
  $region5: #{_forward_impl.11} parent=0 // pred_fallthru
    _
  // Predicated region
  $region6: #{_forward_impl.11} parent=0 // pred_check
    _
  $region7: #{_forward_impl.11} parent=0 // pred_check_branch
    %17 = sbr.rel (0) target = $region9
  $region8: #{_forward_impl.11} parent=0 // pred_region
    _
  $region9: #{_forward_impl.11} parent=0 // pred_fallthru
    _
  // Predicated region
  $region10: #{_forward_impl.11} parent=0 // pred_check
    _
  $region11: #{_forward_impl.11} parent=0 // pred_check_branch
    %19 = sbr.rel (0) target = $region13
  $region12: #{_forward_impl.11} parent=0 // pred_region
    _
  $region13: #{_forward_impl.11} parent=0 // pred_fallthru
    _
  // Predicated region
  $region14: #{_forward_impl.11} parent=0 // pred_check
    _
  $region15: #{_forward_impl.11} parent=0 // pred_check_branch
    %21 = sbr.rel (0) target = $region17
  $region16: #{_forward_impl.11} parent=0 // pred_region
    _
  $region17: #{_forward_impl.11} parent=0 // pred_fallthru
    _
  // Predicated region
  $region18: #{_forward_impl.11} parent=0 // pred_check
    _
  $region19: #{_forward_impl.11} parent=0 // pred_check_branch
    %23 = sbr.rel (0) target = $region21
  $region20: #{_forward_impl.11} parent=0 // pred_region
    _
  $region21: #{_forward_impl.11} parent=0 // pred_fallthru
    _
  // Predicated region
  $region22: #{_forward_impl.11} parent=0 // pred_check
    _
  $region23: #{_forward_impl.11} parent=0 // pred_check_branch
    %25 = sbr.rel (0) target = $region25
  $region24: #{_forward_impl.11} parent=0 // pred_region
    _
  $region25: #{_forward_impl.11} parent=0 // pred_fallthru
    _
  // Predicated region
  $region26: #{_forward_impl.11} parent=0 // pred_check
    _
  $region27: #{_forward_impl.11} parent=0 // pred_check_branch
    %27 = sbr.rel (0) target = $region29
  $region28: #{_forward_impl.11} parent=0 // pred_region
    _
  $region29: #{_forward_impl.11} parent=0 // pred_fallthru
    _
  %p29 = scmp.eq.s32.totalorder 0, 0
  // Predicated region
  $region30: #{_forward_impl.11} parent=0 // pred_check
    %p30 = pneg %p29
  $region31: #{_forward_impl.11} parent=0 // pred_check_branch
    %32 = sbr.rel (%p30) target = $region33
  $region32: #{_forward_impl.11} parent=0 // pred_region
    %33 = vst [vmem:[#allocation2] sm:$0xff] 0.0
    %34 = vst [vmem:[#allocation2 + $0x8] sm:$0xff] 0.0
    %35 = vst [vmem:[#allocation2 + $0x10] sm:$0xff] 0.0
    %36 = vst [vmem:[#allocation2 + $0x18] sm:$0xff] 0.0
    %37 = vst [vmem:[#allocation2 + $0x20] sm:$0xff] 0.0
    %38 = vst [vmem:[#allocation2 + $0x28] sm:$0xff] 0.0
    %39 = vst [vmem:[#allocation2 + $0x30] sm:$0xff] 0.0
    %40 = vst [vmem:[#allocation2 + $0x38] sm:$0xff] 0.0
    %41 = vst [vmem:[#allocation2 + $0x40] sm:$0xff] 0.0
    %42 = vst [vmem:[#allocation2 + $0x48] sm:$0xff] 0.0
    %43 = vst [vmem:[#allocation2 + $0x50] sm:$0xff] 0.0
    %44 = vst [vmem:[#allocation2 + $0x58] sm:$0xff] 0.0
    %45 = vst [vmem:[#allocation2 + $0x60] sm:$0xff] 0.0
    %46 = vst [vmem:[#allocation2 + $0x68] sm:$0xff] 0.0
    %47 = vst [vmem:[#allocation2 + $0x70] sm:$0xff] 0.0
    %48 = vst [vmem:[#allocation2 + $0x78] sm:$0xff] 0.0
  $region33: #{_forward_impl.11} parent=0 // pred_fallthru
    _
  %s49 = sadd.s32 0, 0
  %s50 = sld [smem:[#allocation4 + %s49]]
  %p51 = scmp.gt.s32.totalorder %s50, 0
  // Predicated region
  $region34: #{_forward_impl.11} parent=0 // pred_check
    %p52 = pneg %p51
  $region35: #{_forward_impl.11} parent=0 // pred_check_branch
    %54 = sbr.rel (%p52) target = $region37
  $region36: #{_forward_impl.11} parent=0 // pred_region
    %v55 = vld [vmem:[%s1] sm:$0x3]
    %v56 = vld [vmem:[%s1 + $0x2] sm:$0x3]
    %v57 = vld [vmem:[%s1 + $0x4] sm:$0x3]
    %v58 = vld [vmem:[%s1 + $0x6] sm:$0x3]
    %v59 = vld [vmem:[%s1 + $0x8] sm:$0x3]
    %v60 = vld [vmem:[%s1 + $0xa] sm:$0x3]
    %v61 = vld [vmem:[%s1 + $0xc] sm:$0x3]
    %v62 = vld [vmem:[%s1 + $0xe] sm:$0x3]
    %v63 = vld [vmem:[%s1 + $0x10] sm:$0x3]
    %v64 = vld [vmem:[%s1 + $0x12] sm:$0x3]
    %v65 = vld [vmem:[%s1 + $0x14] sm:$0x3]
    %v66 = vld [vmem:[%s1 + $0x16] sm:$0x3]
    %v67 = vld [vmem:[%s1 + $0x18] sm:$0x3]
    %v68 = vld [vmem:[%s1 + $0x1a] sm:$0x3]
    %v69 = vld [vmem:[%s1 + $0x1c] sm:$0x3]
    %v70 = vld [vmem:[%s1 + $0x1e] sm:$0x3]
    %v71 = vunpack.c.0.s8 %v55
    %v72 = vunpack.c.0.s8 %v56
    %v73 = vunpack.c.0.s8 %v57
    %v74 = vunpack.c.0.s8 %v58
    %v75 = vunpack.c.0.s8 %v59
    %v76 = vunpack.c.0.s8 %v60
    %v77 = vunpack.c.0.s8 %v61
    %v78 = vunpack.c.0.s8 %v62
    %v79 = vunpack.c.0.s8 %v63
    %v80 = vunpack.c.0.s8 %v64
    %v81 = vunpack.c.0.s8 %v65
    %v82 = vunpack.c.0.s8 %v66
    %v83 = vunpack.c.0.s8 %v67
    %v84 = vunpack.c.0.s8 %v68
    %v85 = vunpack.c.0.s8 %v69
    %v86 = vunpack.c.0.s8 %v70
    %v87 = vcvt.s32.f32 %v71
    %v88 = vcvt.s32.f32 %v72
    %v89 = vcvt.s32.f32 %v73
    %v90 = vcvt.s32.f32 %v74
    %v91 = vcvt.s32.f32 %v75
    %v92 = vcvt.s32.f32 %v76
    %v93 = vcvt.s32.f32 %v77
    %v94 = vcvt.s32.f32 %v78
    %v95 = vcvt.s32.f32 %v79
    %v96 = vcvt.s32.f32 %v80
    %v97 = vcvt.s32.f32 %v81
    %v98 = vcvt.s32.f32 %v82
    %v99 = vcvt.s32.f32 %v83
    %v100 = vcvt.s32.f32 %v84
    %v101 = vcvt.s32.f32 %v85
    %v102 = vcvt.s32.f32 %v86
    %v103 = vld [vmem:[%s2] sm:$0xf]
    %v104 = vld [vmem:[%s2 + $0x4] sm:$0xf]
    %v105 = vld [vmem:[%s2 + $0x8] sm:$0xf]
    %v106 = vld [vmem:[%s2 + $0xc] sm:$0xf]
    %v107 = vld [vmem:[%s2 + $0x10] sm:$0xf]
    %v108 = vld [vmem:[%s2 + $0x14] sm:$0xf]
    %v109 = vld [vmem:[%s2 + $0x18] sm:$0xf]
    %v110 = vld [vmem:[%s2 + $0x1c] sm:$0xf]
    %v111 = vld [vmem:[%s2 + $0x20] sm:$0xf]
    %v112 = vld [vmem:[%s2 + $0x24] sm:$0xf]
    %v113 = vld [vmem:[%s2 + $0x28] sm:$0xf]
    %v114 = vld [vmem:[%s2 + $0x2c] sm:$0xf]
    %v115 = vld [vmem:[%s2 + $0x30] sm:$0xf]
    %v116 = vld [vmem:[%s2 + $0x34] sm:$0xf]
    %v117 = vld [vmem:[%s2 + $0x38] sm:$0xf]
    %v118 = vld [vmem:[%s2 + $0x3c] sm:$0xf]
    %v119 = vld [vmem:[%s3] sm:$0xff]
    %v120 = vld [vmem:[%s3 + $0x8] sm:$0xff]
    %v121 = vld [vmem:[%s3 + $0x10] sm:$0xff]
    %v122 = vld [vmem:[%s3 + $0x18] sm:$0xff]
    %v123 = vld [vmem:[%s3 + $0x20] sm:$0xff]
    %v124 = vld [vmem:[%s3 + $0x28] sm:$0xff]
    %v125 = vld [vmem:[%s3 + $0x30] sm:$0xff]
    %v126 = vld [vmem:[%s3 + $0x38] sm:$0xff]
    %v127 = vld [vmem:[%s3 + $0x40] sm:$0xff]
    %v128 = vld [vmem:[%s3 + $0x48] sm:$0xff]
    %v129 = vld [vmem:[%s3 + $0x50] sm:$0xff]
    %v130 = vld [vmem:[%s3 + $0x58] sm:$0xff]
    %v131 = vld [vmem:[%s3 + $0x60] sm:$0xff]
    %v132 = vld [vmem:[%s3 + $0x68] sm:$0xff]
    %v133 = vld [vmem:[%s3 + $0x70] sm:$0xff]
    %v134 = vld [vmem:[%s3 + $0x78] sm:$0xff]
    %v135 = vld [vmem:[%s4] sm:$0x1]
    %137 = vset.pattern.permute.xlu0 0
    %138 = vperm.xlu0 %137, %v119
    %v139 = vpop.permute.xlu0 %138
    %142 = vset.pattern.permute.xlu0 0
    %143 = vperm.xlu0 %142, %v120
    %v144 = vpop.permute.xlu0 %143
    %147 = vset.pattern.permute.xlu0 0
    %148 = vperm.xlu0 %147, %v121
    %v149 = vpop.permute.xlu0 %148
    %152 = vset.pattern.permute.xlu0 0
    %153 = vperm.xlu0 %152, %v122
    %v154 = vpop.permute.xlu0 %153
    %157 = vset.pattern.permute.xlu0 0
    %158 = vperm.xlu0 %157, %v123
    %v159 = vpop.permute.xlu0 %158
    %162 = vset.pattern.permute.xlu0 0
    %163 = vperm.xlu0 %162, %v124
    %v164 = vpop.permute.xlu0 %163
    %167 = vset.pattern.permute.xlu0 0
    %168 = vperm.xlu0 %167, %v125
    %v169 = vpop.permute.xlu0 %168
    %172 = vset.pattern.permute.xlu0 0
    %173 = vperm.xlu0 %172, %v126
    %v174 = vpop.permute.xlu0 %173
    %177 = vset.pattern.permute.xlu0 0
    %178 = vperm.xlu0 %177, %v127
    %v179 = vpop.permute.xlu0 %178
    %182 = vset.pattern.permute.xlu0 0
    %183 = vperm.xlu0 %182, %v128
    %v184 = vpop.permute.xlu0 %183
    %187 = vset.pattern.permute.xlu0 0
    %188 = vperm.xlu0 %187, %v129
    %v189 = vpop.permute.xlu0 %188
    %192 = vset.pattern.permute.xlu0 0
    %193 = vperm.xlu0 %192, %v130
    %v194 = vpop.permute.xlu0 %193
    %197 = vset.pattern.permute.xlu0 0
    %198 = vperm.xlu0 %197, %v131
    %v199 = vpop.permute.xlu0 %198
    %202 = vset.pattern.permute.xlu0 0
    %203 = vperm.xlu0 %202, %v132
    %v204 = vpop.permute.xlu0 %203
    %207 = vset.pattern.permute.xlu0 0
    %208 = vperm.xlu0 %207, %v133
    %v209 = vpop.permute.xlu0 %208
    %212 = vset.pattern.permute.xlu0 0
    %213 = vperm.xlu0 %212, %v134
    %v214 = vpop.permute.xlu0 %213
    %v217 = vlaneseq
    %v218 = vshrl.u32 %v217, 7
    %v219 = vsub.s32 0, %v218
    %v220 = vrot.slane %v135, %v219
    %v222 = vadd.f32 %v139, %v220
    %v223 = vadd.f32 %v144, %v220
    %v224 = vadd.f32 %v149, %v220
    %v225 = vadd.f32 %v154, %v220
    %v226 = vadd.f32 %v159, %v220
    %v227 = vadd.f32 %v164, %v220
    %v228 = vadd.f32 %v169, %v220
    %v229 = vadd.f32 %v174, %v220
    %v230 = vadd.f32 %v179, %v220
    %v231 = vadd.f32 %v184, %v220
    %v232 = vadd.f32 %v189, %v220
    %v233 = vadd.f32 %v194, %v220
    %v234 = vadd.f32 %v199, %v220
    %v235 = vadd.f32 %v204, %v220
    %v236 = vadd.f32 %v209, %v220
    %v237 = vadd.f32 %v214, %v220
    %v238 = vmul.f32 %v222, 0.2
    %v239 = vmul.f32 %v223, 0.2
    %v240 = vmul.f32 %v224, 0.2
    %v241 = vmul.f32 %v225, 0.2
    %v242 = vmul.f32 %v226, 0.2
    %v243 = vmul.f32 %v227, 0.2
    %v244 = vmul.f32 %v228, 0.2
    %v245 = vmul.f32 %v229, 0.2
    %v246 = vmul.f32 %v230, 0.2
    %v247 = vmul.f32 %v231, 0.2
    %v248 = vmul.f32 %v232, 0.2
    %v249 = vmul.f32 %v233, 0.2
    %v250 = vmul.f32 %v234, 0.2
    %v251 = vmul.f32 %v235, 0.2
    %v252 = vmul.f32 %v236, 0.2
    %v253 = vmul.f32 %v237, 0.2
    %v254 = vmax.f32 %v222, %v238
    %v255 = vmax.f32 %v223, %v239
    %v256 = vmax.f32 %v224, %v240
    %v257 = vmax.f32 %v225, %v241
    %v258 = vmax.f32 %v226, %v242
    %v259 = vmax.f32 %v227, %v243
    %v260 = vmax.f32 %v228, %v244
    %v261 = vmax.f32 %v229, %v245
    %v262 = vmax.f32 %v230, %v246
    %v263 = vmax.f32 %v231, %v247
    %v264 = vmax.f32 %v232, %v248
    %v265 = vmax.f32 %v233, %v249
    %v266 = vmax.f32 %v234, %v250
    %v267 = vmax.f32 %v235, %v251
    %v268 = vmax.f32 %v236, %v252
    %v269 = vmax.f32 %v237, %v253
    %270 = vset.pattern.permute.xlu0 2
    %271 = vperm.xlu0 %270, %v119
    %v272 = vpop.permute.xlu0 %271
    %274 = vset.pattern.permute.xlu0 2
    %275 = vperm.xlu0 %274, %v120
    %v276 = vpop.permute.xlu0 %275
    %278 = vset.pattern.permute.xlu0 2
    %279 = vperm.xlu0 %278, %v121
    %v280 = vpop.permute.xlu0 %279
    %282 = vset.pattern.permute.xlu0 2
    %283 = vperm.xlu0 %282, %v122
    %v284 = vpop.permute.xlu0 %283
    %286 = vset.pattern.permute.xlu0 2
    %287 = vperm.xlu0 %286, %v123
    %v288 = vpop.permute.xlu0 %287
    %290 = vset.pattern.permute.xlu0 2
    %291 = vperm.xlu0 %290, %v124
    %v292 = vpop.permute.xlu0 %291
    %294 = vset.pattern.permute.xlu0 2
    %295 = vperm.xlu0 %294, %v125
    %v296 = vpop.permute.xlu0 %295
    %298 = vset.pattern.permute.xlu0 2
    %299 = vperm.xlu0 %298, %v126
    %v300 = vpop.permute.xlu0 %299
    %302 = vset.pattern.permute.xlu0 2
    %303 = vperm.xlu0 %302, %v127
    %v304 = vpop.permute.xlu0 %303
    %306 = vset.pattern.permute.xlu0 2
    %307 = vperm.xlu0 %306, %v128
    %v308 = vpop.permute.xlu0 %307
    %310 = vset.pattern.permute.xlu0 2
    %311 = vperm.xlu0 %310, %v129
    %v312 = vpop.permute.xlu0 %311
    %314 = vset.pattern.permute.xlu0 2
    %315 = vperm.xlu0 %314, %v130
    %v316 = vpop.permute.xlu0 %315
    %318 = vset.pattern.permute.xlu0 2
    %319 = vperm.xlu0 %318, %v131
    %v320 = vpop.permute.xlu0 %319
    %322 = vset.pattern.permute.xlu0 2
    %323 = vperm.xlu0 %322, %v132
    %v324 = vpop.permute.xlu0 %323
    %326 = vset.pattern.permute.xlu0 2
    %327 = vperm.xlu0 %326, %v133
    %v328 = vpop.permute.xlu0 %327
    %330 = vset.pattern.permute.xlu0 2
    %331 = vperm.xlu0 %330, %v134
    %v332 = vpop.permute.xlu0 %331
    %v334 = vsub.f32 %v254, %v272
    %v335 = vsub.f32 %v255, %v276
    %v336 = vsub.f32 %v256, %v280
    %v337 = vsub.f32 %v257, %v284
    %v338 = vsub.f32 %v258, %v288
    %v339 = vsub.f32 %v259, %v292
    %v340 = vsub.f32 %v260, %v296
    %v341 = vsub.f32 %v261, %v300
    %v342 = vsub.f32 %v262, %v304
    %v343 = vsub.f32 %v263, %v308
    %v344 = vsub.f32 %v264, %v312
    %v345 = vsub.f32 %v265, %v316
    %v346 = vsub.f32 %v266, %v320
    %v347 = vsub.f32 %v267, %v324
    %v348 = vsub.f32 %v268, %v328
    %v349 = vsub.f32 %v269, %v332
    %v350 = vmul.f32 %v334, 1.442695
    %v351 = vpow.pop %v350
    %v352 = vmul.f32 %v335, 1.442695
    %v353 = vpow.pop %v352
    %v354 = vmul.f32 %v336, 1.442695
    %v355 = vpow.pop %v354
    %v356 = vmul.f32 %v337, 1.442695
    %v357 = vpow.pop %v356
    %v358 = vmul.f32 %v338, 1.442695
    %v359 = vpow.pop %v358
    %v360 = vmul.f32 %v339, 1.442695
    %v361 = vpow.pop %v360
    %v362 = vmul.f32 %v340, 1.442695
    %v363 = vpow.pop %v362
    %v364 = vmul.f32 %v341, 1.442695
    %v365 = vpow.pop %v364
    %v366 = vmul.f32 %v342, 1.442695
    %v367 = vpow.pop %v366
    %v368 = vmul.f32 %v343, 1.442695
    %v369 = vpow.pop %v368
    %v370 = vmul.f32 %v344, 1.442695
    %v371 = vpow.pop %v370
    %v372 = vmul.f32 %v345, 1.442695
    %v373 = vpow.pop %v372
    %v374 = vmul.f32 %v346, 1.442695
    %v375 = vpow.pop %v374
    %v376 = vmul.f32 %v347, 1.442695
    %v377 = vpow.pop %v376
    %v378 = vmul.f32 %v348, 1.442695
    %v379 = vpow.pop %v378
    %v380 = vmul.f32 %v349, 1.442695
    %v381 = vpow.pop %v380
    %v382 = vmul.f32 %v351, %v87
    %v383 = vmul.f32 %v353, %v88
    %v384 = vmul.f32 %v355, %v89
    %v385 = vmul.f32 %v357, %v90
    %v386 = vmul.f32 %v359, %v91
    %v387 = vmul.f32 %v361, %v92
    %v388 = vmul.f32 %v363, %v93
    %v389 = vmul.f32 %v365, %v94
    %v390 = vmul.f32 %v367, %v95
    %v391 = vmul.f32 %v369, %v96
    %v392 = vmul.f32 %v371, %v97
    %v393 = vmul.f32 %v373, %v98
    %v394 = vmul.f32 %v375, %v99
    %v395 = vmul.f32 %v377, %v100
    %v396 = vmul.f32 %v379, %v101
    %v397 = vmul.f32 %v381, %v102
    %v398 = vpack.c.bf16 %v383, %v382
    %v399 = vpack.c.bf16 %v385, %v384
    %v400 = vpack.c.bf16 %v387, %v386
    %v401 = vpack.c.bf16 %v389, %v388
    %v402 = vpack.c.bf16 %v391, %v390
    %v403 = vpack.c.bf16 %v393, %v392
    %v404 = vpack.c.bf16 %v395, %v394
    %v405 = vpack.c.bf16 %v397, %v396
    %v422 = vunpack.c.l.b16 %v103
    %v423 = vunpack.c.l.b16 %v104
    %v424 = vunpack.c.l.b16 %v105
    %v425 = vunpack.c.l.b16 %v106
    %v426 = vunpack.c.l.b16 %v107
    %v427 = vunpack.c.l.b16 %v108
    %v428 = vunpack.c.l.b16 %v109
    %v429 = vunpack.c.l.b16 %v110
    %v430 = vunpack.c.l.b16 %v111
    %v431 = vunpack.c.l.b16 %v112
    %v432 = vunpack.c.l.b16 %v113
    %v433 = vunpack.c.l.b16 %v114
    %v434 = vunpack.c.l.b16 %v115
    %v435 = vunpack.c.l.b16 %v116
    %v436 = vunpack.c.l.b16 %v117
    %v437 = vunpack.c.l.b16 %v118
    %v438 = vpack.c.b16 %v423, %v422
    %v439 = vpack.c.b16 %v425, %v424
    %v440 = vpack.c.b16 %v427, %v426
    %v441 = vpack.c.b16 %v429, %v428
    %v442 = vpack.c.b16 %v431, %v430
    %v443 = vpack.c.b16 %v433, %v432
    %v444 = vpack.c.b16 %v435, %v434
    %v445 = vpack.c.b16 %v437, %v436
    %454 = vmatprep.subr.bf16.mxu0 0
    %455 = vmatpush1.bf16.msra.mxu0 %v438
    %456 = vmatprep.subr.bf16.mxu0 0
    %457 = vmatpush1.bf16.msra.mxu0 %v439
    %458 = vmatprep.subr.bf16.mxu0 0
    %459 = vmatpush1.bf16.msra.mxu0 %v440
    %460 = vmatprep.subr.bf16.mxu0 0
    %461 = vmatpush1.bf16.msra.mxu0 %v441
    %462 = vmatprep.subr.bf16.mxu0 0
    %463 = vmatpush1.bf16.msra.mxu0 %v442
    %464 = vmatprep.subr.bf16.mxu0 0
    %465 = vmatpush1.bf16.msra.mxu0 %v443
    %466 = vmatprep.subr.bf16.mxu0 0
    %467 = vmatpush1.bf16.msra.mxu0 %v444
    %468 = vmatprep.subr.bf16.mxu0 0
    %469 = vmatpush1.bf16.msra.mxu0 %v445
    %470 = vmatprep.subr.bf16.mxu0 0
    %471 = vmatpush1.bf16.msra.mxu0 0
    %472 = vmatprep.subr.bf16.mxu0 0
    %473 = vmatpush1.bf16.msra.mxu0 0
    %474 = vmatprep.subr.bf16.mxu0 0
    %475 = vmatpush1.bf16.msra.mxu0 0
    %476 = vmatprep.subr.bf16.mxu0 0
    %477 = vmatpush1.bf16.msra.mxu0 0
    %478 = vmatprep.subr.bf16.mxu0 0
    %479 = vmatpush1.bf16.msra.mxu0 0
    %480 = vmatprep.subr.bf16.mxu0 0
    %481 = vmatpush1.bf16.msra.mxu0 0
    %482 = vmatprep.subr.bf16.mxu0 0
    %483 = vmatpush1.bf16.msra.mxu0 0
    %484 = vmatprep.subr.bf16.mxu0 0
    %485 = vmatpush1.bf16.msra.mxu0 0
    %486 = vmatprep.mubr.bf16.mxu0 0
    %487 = vmatmul.mubr.bf16.gmra.mrb[0].mxu0 %v398
    %v488 = vpop.f32.mrb[0].mxu0
    %v489 = vadd.f32 0.0, %v488
    %v490 = vpop.f32.mrb[0].mxu0
    %v491 = vpop.f32.mrb[0].mxu0
    %v492 = vadd.f32 0.0, %v491
    %v493 = vpop.f32.mrb[0].mxu0
    %494 = vmatprep.mubr.bf16.mxu0 0
    %495 = vmatmul.mubr.bf16.gmra.mrb[0].mxu0 %v399
    %v496 = vpop.f32.mrb[0].mxu0
    %v497 = vadd.f32 0.0, %v496
    %v498 = vpop.f32.mrb[0].mxu0
    %v499 = vpop.f32.mrb[0].mxu0
    %v500 = vadd.f32 0.0, %v499
    %v501 = vpop.f32.mrb[0].mxu0
    %502 = vmatprep.mubr.bf16.mxu0 0
    %503 = vmatmul.mubr.bf16.gmra.mrb[0].mxu0 %v400
    %v504 = vpop.f32.mrb[0].mxu0
    %v505 = vadd.f32 0.0, %v504
    %v506 = vpop.f32.mrb[0].mxu0
    %v507 = vpop.f32.mrb[0].mxu0
    %v508 = vadd.f32 0.0, %v507
    %v509 = vpop.f32.mrb[0].mxu0
    %510 = vmatprep.mubr.bf16.mxu0 0
    %511 = vmatmul.mubr.bf16.gmra.mrb[0].mxu0 %v401
    %v512 = vpop.f32.mrb[0].mxu0
    %v513 = vadd.f32 0.0, %v512
    %v514 = vpop.f32.mrb[0].mxu0
    %v515 = vpop.f32.mrb[0].mxu0
    %v516 = vadd.f32 0.0, %v515
    %v517 = vpop.f32.mrb[0].mxu0
    %518 = vmatprep.mubr.bf16.mxu0 0
    %519 = vmatmul.mubr.bf16.gmra.mrb[0].mxu0 %v402
    %v520 = vpop.f32.mrb[0].mxu0
    %v521 = vadd.f32 0.0, %v520
    %v522 = vpop.f32.mrb[0].mxu0
    %v523 = vpop.f32.mrb[0].mxu0
    %v524 = vadd.f32 0.0, %v523
    %v525 = vpop.f32.mrb[0].mxu0
    %526 = vmatprep.mubr.bf16.mxu0 0
    %527 = vmatmul.mubr.bf16.gmra.mrb[0].mxu0 %v403
    %v528 = vpop.f32.mrb[0].mxu0
    %v529 = vadd.f32 0.0, %v528
    %v530 = vpop.f32.mrb[0].mxu0
    %v531 = vpop.f32.mrb[0].mxu0
    %v532 = vadd.f32 0.0, %v531
    %v533 = vpop.f32.mrb[0].mxu0
    %534 = vmatprep.mubr.bf16.mxu0 0
    %535 = vmatmul.mubr.bf16.gmra.mrb[0].mxu0 %v404
    %v536 = vpop.f32.mrb[0].mxu0
    %v537 = vadd.f32 0.0, %v536
    %v538 = vpop.f32.mrb[0].mxu0
    %v539 = vpop.f32.mrb[0].mxu0
    %v540 = vadd.f32 0.0, %v539
    %v541 = vpop.f32.mrb[0].mxu0
    %542 = vmatprep.mubr.bf16.mxu0 0
    %543 = vmatmul.mubr.bf16.gmra.mrb[0].mxu0 %v405
    %v544 = vpop.f32.mrb[0].mxu0
    %v545 = vadd.f32 0.0, %v544
    %v546 = vpop.f32.mrb[0].mxu0
    %v547 = vpop.f32.mrb[0].mxu0
    %v548 = vadd.f32 0.0, %v547
    %v549 = vpop.f32.mrb[0].mxu0
    %550 = vdwg.mxu0
    %v551 = vld [vmem:[#allocation2] sm:$0xff]
    %v552 = vld [vmem:[#allocation2 + $0x8] sm:$0xff]
    %v553 = vld [vmem:[#allocation2 + $0x10] sm:$0xff]
    %v554 = vld [vmem:[#allocation2 + $0x18] sm:$0xff]
    %v555 = vld [vmem:[#allocation2 + $0x20] sm:$0xff]
    %v556 = vld [vmem:[#allocation2 + $0x28] sm:$0xff]
    %v557 = vld [vmem:[#allocation2 + $0x30] sm:$0xff]
    %v558 = vld [vmem:[#allocation2 + $0x38] sm:$0xff]
    %v559 = vld [vmem:[#allocation2 + $0x40] sm:$0xff]
    %v560 = vld [vmem:[#allocation2 + $0x48] sm:$0xff]
    %v561 = vld [vmem:[#allocation2 + $0x50] sm:$0xff]
    %v562 = vld [vmem:[#allocation2 + $0x58] sm:$0xff]
    %v563 = vld [vmem:[#allocation2 + $0x60] sm:$0xff]
    %v564 = vld [vmem:[#allocation2 + $0x68] sm:$0xff]
    %v565 = vld [vmem:[#allocation2 + $0x70] sm:$0xff]
    %v566 = vld [vmem:[#allocation2 + $0x78] sm:$0xff]
    %v567 = vadd.f32 %v551, %v489
    %v568 = vadd.f32 %v552, %v492
    %v569 = vadd.f32 %v553, %v497
    %v570 = vadd.f32 %v554, %v500
    %v571 = vadd.f32 %v555, %v505
    %v572 = vadd.f32 %v556, %v508
    %v573 = vadd.f32 %v557, %v513
    %v574 = vadd.f32 %v558, %v516
    %v575 = vadd.f32 %v559, %v521
    %v576 = vadd.f32 %v560, %v524
    %v577 = vadd.f32 %v561, %v529
    %v578 = vadd.f32 %v562, %v532
    %v579 = vadd.f32 %v563, %v537
    %v580 = vadd.f32 %v564, %v540
    %v581 = vadd.f32 %v565, %v545
    %v582 = vadd.f32 %v566, %v548
    %583 = vst [vmem:[#allocation2] sm:$0xff] %v567
    %584 = vst [vmem:[#allocation2 + $0x8] sm:$0xff] %v568
    %585 = vst [vmem:[#allocation2 + $0x10] sm:$0xff] %v569
    %586 = vst [vmem:[#allocation2 + $0x18] sm:$0xff] %v570
    %587 = vst [vmem:[#allocation2 + $0x20] sm:$0xff] %v571
    %588 = vst [vmem:[#allocation2 + $0x28] sm:$0xff] %v572
    %589 = vst [vmem:[#allocation2 + $0x30] sm:$0xff] %v573
    %590 = vst [vmem:[#allocation2 + $0x38] sm:$0xff] %v574
    %591 = vst [vmem:[#allocation2 + $0x40] sm:$0xff] %v575
    %592 = vst [vmem:[#allocation2 + $0x48] sm:$0xff] %v576
    %593 = vst [vmem:[#allocation2 + $0x50] sm:$0xff] %v577
    %594 = vst [vmem:[#allocation2 + $0x58] sm:$0xff] %v578
    %595 = vst [vmem:[#allocation2 + $0x60] sm:$0xff] %v579
    %596 = vst [vmem:[#allocation2 + $0x68] sm:$0xff] %v580
    %597 = vst [vmem:[#allocation2 + $0x70] sm:$0xff] %v581
    %598 = vst [vmem:[#allocation2 + $0x78] sm:$0xff] %v582
  $region37: #{_forward_impl.11} parent=0 // pred_fallthru
    _
  // Predicated region
  $region38: #{_forward_impl.11} parent=0 // pred_check
    %p599 = pneg %p29
  $region39: #{_forward_impl.11} parent=0 // pred_check_branch
    %601 = sbr.rel (%p599) target = $region41
  $region40: #{_forward_impl.11} parent=0 // pred_region
    %v602 = vld [vmem:[#allocation2] sm:$0xff]
    %v603 = vld [vmem:[#allocation2 + $0x8] sm:$0xff]
    %v604 = vld [vmem:[#allocation2 + $0x10] sm:$0xff]
    %v605 = vld [vmem:[#allocation2 + $0x18] sm:$0xff]
    %v606 = vld [vmem:[#allocation2 + $0x20] sm:$0xff]
    %v607 = vld [vmem:[#allocation2 + $0x28] sm:$0xff]
    %v608 = vld [vmem:[#allocation2 + $0x30] sm:$0xff]
    %v609 = vld [vmem:[#allocation2 + $0x38] sm:$0xff]
    %v610 = vld [vmem:[#allocation2 + $0x40] sm:$0xff]
    %v611 = vld [vmem:[#allocation2 + $0x48] sm:$0xff]
    %v612 = vld [vmem:[#allocation2 + $0x50] sm:$0xff]
    %v613 = vld [vmem:[#allocation2 + $0x58] sm:$0xff]
    %v614 = vld [vmem:[#allocation2 + $0x60] sm:$0xff]
    %v615 = vld [vmem:[#allocation2 + $0x68] sm:$0xff]
    %v616 = vld [vmem:[#allocation2 + $0x70] sm:$0xff]
    %v617 = vld [vmem:[#allocation2 + $0x78] sm:$0xff]
    %v618 = vld [vmem:[%s5] sm:$0x1]
    %v619 = vunpack.c.l.bf16 %v618
    %621 = vset.pattern.permute.xlu0 16
    %622 = vperm.xlu0 %621, %v602
    %v623 = vpop.permute.xlu0 %622
    %626 = vset.pattern.permute.xlu0 16
    %627 = vperm.xlu0 %626, %v603
    %v628 = vpop.permute.xlu0 %627
    %631 = vset.pattern.permute.xlu0 16
    %632 = vperm.xlu0 %631, %v604
    %v633 = vpop.permute.xlu0 %632
    %636 = vset.pattern.permute.xlu0 16
    %637 = vperm.xlu0 %636, %v605
    %v638 = vpop.permute.xlu0 %637
    %641 = vset.pattern.permute.xlu0 16
    %642 = vperm.xlu0 %641, %v606
    %v643 = vpop.permute.xlu0 %642
    %646 = vset.pattern.permute.xlu0 16
    %647 = vperm.xlu0 %646, %v607
    %v648 = vpop.permute.xlu0 %647
    %651 = vset.pattern.permute.xlu0 16
    %652 = vperm.xlu0 %651, %v608
    %v653 = vpop.permute.xlu0 %652
    %656 = vset.pattern.permute.xlu0 16
    %657 = vperm.xlu0 %656, %v609
    %v658 = vpop.permute.xlu0 %657
    %661 = vset.pattern.permute.xlu0 16
    %662 = vperm.xlu0 %661, %v610
    %v663 = vpop.permute.xlu0 %662
    %666 = vset.pattern.permute.xlu0 16
    %667 = vperm.xlu0 %666, %v611
    %v668 = vpop.permute.xlu0 %667
    %671 = vset.pattern.permute.xlu0 16
    %672 = vperm.xlu0 %671, %v612
    %v673 = vpop.permute.xlu0 %672
    %676 = vset.pattern.permute.xlu0 16
    %677 = vperm.xlu0 %676, %v613
    %v678 = vpop.permute.xlu0 %677
    %681 = vset.pattern.permute.xlu0 16
    %682 = vperm.xlu0 %681, %v614
    %v683 = vpop.permute.xlu0 %682
    %686 = vset.pattern.permute.xlu0 16
    %687 = vperm.xlu0 %686, %v615
    %v688 = vpop.permute.xlu0 %687
    %691 = vset.pattern.permute.xlu0 16
    %692 = vperm.xlu0 %691, %v616
    %v693 = vpop.permute.xlu0 %692
    %696 = vset.pattern.permute.xlu0 16
    %697 = vperm.xlu0 %696, %v617
    %v698 = vpop.permute.xlu0 %697
    %v700 = vlaneseq
    %v701 = vshrl.u32 %v700, 7
    %v702 = vsub.s32 0, %v701
    %v703 = vrot.slane %v619, %v702
    %v704 = vmul.f32 %v623, %v703
    %v705 = vmul.f32 %v628, %v703
    %v706 = vmul.f32 %v633, %v703
    %v707 = vmul.f32 %v638, %v703
    %v708 = vmul.f32 %v643, %v703
    %v709 = vmul.f32 %v648, %v703
    %v710 = vmul.f32 %v653, %v703
    %v711 = vmul.f32 %v658, %v703
    %v712 = vmul.f32 %v663, %v703
    %v713 = vmul.f32 %v668, %v703
    %v714 = vmul.f32 %v673, %v703
    %v715 = vmul.f32 %v678, %v703
    %v716 = vmul.f32 %v683, %v703
    %v717 = vmul.f32 %v688, %v703
    %v718 = vmul.f32 %v693, %v703
    %v719 = vmul.f32 %v698, %v703
    %v720 = vlaneseq
    %v721 = vshrl.u32 %v720, 7
    %v722 = vsub.s32 1, %v721
    %v723 = vrot.slane %v619, %v722
    %v724 = vadd.f32 %v723, %v704
    %v725 = vadd.f32 %v723, %v705
    %v726 = vadd.f32 %v723, %v706
    %v727 = vadd.f32 %v723, %v707
    %v728 = vadd.f32 %v723, %v708
    %v729 = vadd.f32 %v723, %v709
    %v730 = vadd.f32 %v723, %v710
    %v731 = vadd.f32 %v723, %v711
    %v732 = vadd.f32 %v723, %v712
    %v733 = vadd.f32 %v723, %v713
    %v734 = vadd.f32 %v723, %v714
    %v735 = vadd.f32 %v723, %v715
    %v736 = vadd.f32 %v723, %v716
    %v737 = vadd.f32 %v723, %v717
    %v738 = vadd.f32 %v723, %v718
    %v739 = vadd.f32 %v723, %v719
    %v740 = vmax.f32 %v724, 1e-30
    %v741 = vmax.f32 %v725, 1e-30
    %v742 = vmax.f32 %v726, 1e-30
    %v743 = vmax.f32 %v727, 1e-30
    %v744 = vmax.f32 %v728, 1e-30
    %v745 = vmax.f32 %v729, 1e-30
    %v746 = vmax.f32 %v730, 1e-30
    %v747 = vmax.f32 %v731, 1e-30
    %v748 = vmax.f32 %v732, 1e-30
    %v749 = vmax.f32 %v733, 1e-30
    %v750 = vmax.f32 %v734, 1e-30
    %v751 = vmax.f32 %v735, 1e-30
    %v752 = vmax.f32 %v736, 1e-30
    %v753 = vmax.f32 %v737, 1e-30
    %v754 = vmax.f32 %v738, 1e-30
    %v755 = vmax.f32 %v739, 1e-30
    %v756 = vrcp.pop %v740
    %v757 = vrcp.pop %v741
    %v758 = vrcp.pop %v742
    %v759 = vrcp.pop %v743
    %v760 = vrcp.pop %v744
    %v761 = vrcp.pop %v745
    %v762 = vrcp.pop %v746
    %v763 = vrcp.pop %v747
    %v764 = vrcp.pop %v748
    %v765 = vrcp.pop %v749
    %v766 = vrcp.pop %v750
    %v767 = vrcp.pop %v751
    %v768 = vrcp.pop %v752
    %v769 = vrcp.pop %v753
    %v770 = vrcp.pop %v754
    %v771 = vrcp.pop %v755
    %v772 = vmul.f32 %v740, %v756
    %v773 = vmul.f32 %v741, %v757
    %v774 = vmul.f32 %v742, %v758
    %v775 = vmul.f32 %v743, %v759
    %v776 = vmul.f32 %v744, %v760
    %v777 = vmul.f32 %v745, %v761
    %v778 = vmul.f32 %v746, %v762
    %v779 = vmul.f32 %v747, %v763
    %v780 = vmul.f32 %v748, %v764
    %v781 = vmul.f32 %v749, %v765
    %v782 = vmul.f32 %v750, %v766
    %v783 = vmul.f32 %v751, %v767
    %v784 = vmul.f32 %v752, %v768
    %v785 = vmul.f32 %v753, %v769
    %v786 = vmul.f32 %v754, %v770
    %v787 = vmul.f32 %v755, %v771
    %v788 = vsub.f32 2.0, %v772
    %v789 = vsub.f32 2.0, %v773
    %v790 = vsub.f32 2.0, %v774
    %v791 = vsub.f32 2.0, %v775
    %v792 = vsub.f32 2.0, %v776
    %v793 = vsub.f32 2.0, %v777
    %v794 = vsub.f32 2.0, %v778
    %v795 = vsub.f32 2.0, %v779
    %v796 = vsub.f32 2.0, %v780
    %v797 = vsub.f32 2.0, %v781
    %v798 = vsub.f32 2.0, %v782
    %v799 = vsub.f32 2.0, %v783
    %v800 = vsub.f32 2.0, %v784
    %v801 = vsub.f32 2.0, %v785
    %v802 = vsub.f32 2.0, %v786
    %v803 = vsub.f32 2.0, %v787
    %v804 = vmul.f32 %v756, %v788
    %v805 = vmul.f32 %v757, %v789
    %v806 = vmul.f32 %v758, %v790
    %v807 = vmul.f32 %v759, %v791
    %v808 = vmul.f32 %v760, %v792
    %v809 = vmul.f32 %v761, %v793
    %v810 = vmul.f32 %v762, %v794
    %v811 = vmul.f32 %v763, %v795
    %v812 = vmul.f32 %v764, %v796
    %v813 = vmul.f32 %v765, %v797
    %v814 = vmul.f32 %v766, %v798
    %v815 = vmul.f32 %v767, %v799
    %v816 = vmul.f32 %v768, %v800
    %v817 = vmul.f32 %v769, %v801
    %v818 = vmul.f32 %v770, %v802
    %v819 = vmul.f32 %v771, %v803
    %v820 = vmul.f32 %v602, %v804
    %v821 = vmul.f32 %v603, %v805
    %v822 = vmul.f32 %v604, %v806
    %v823 = vmul.f32 %v605, %v807
    %v824 = vmul.f32 %v606, %v808
    %v825 = vmul.f32 %v607, %v809
    %v826 = vmul.f32 %v608, %v810
    %v827 = vmul.f32 %v609, %v811
    %v828 = vmul.f32 %v610, %v812
    %v829 = vmul.f32 %v611, %v813
    %v830 = vmul.f32 %v612, %v814
    %v831 = vmul.f32 %v613, %v815
    %v832 = vmul.f32 %v614, %v816
    %v833 = vmul.f32 %v615, %v817
    %v834 = vmul.f32 %v616, %v818
    %v835 = vmul.f32 %v617, %v819
    %v836 = vld [vmem:[%s6] sm:$0x1]
    %v838 = vlaneseq
    %v839 = vshrl.u32 %v838, 7
    %v840 = vsub.s32 0, %v839
    %v841 = vrot.slane %v836, %v840
    %v843 = vmul.f32 %v820, %v841
    %v844 = vmul.f32 %v821, %v841
    %v845 = vmul.f32 %v822, %v841
    %v846 = vmul.f32 %v823, %v841
    %v847 = vmul.f32 %v824, %v841
    %v848 = vmul.f32 %v825, %v841
    %v849 = vmul.f32 %v826, %v841
    %v850 = vmul.f32 %v827, %v841
    %v851 = vmul.f32 %v828, %v841
    %v852 = vmul.f32 %v829, %v841
    %v853 = vmul.f32 %v830, %v841
    %v854 = vmul.f32 %v831, %v841
    %v855 = vmul.f32 %v832, %v841
    %v856 = vmul.f32 %v833, %v841
    %v857 = vmul.f32 %v834, %v841
    %v858 = vmul.f32 %v835, %v841
    %v859 = vld [vmem:[%s7] sm:$0x1]
    %v861 = vlaneseq
    %v862 = vshrl.u32 %v861, 7
    %v863 = vsub.s32 0, %v862
    %v864 = vrot.slane %v859, %v863
    %v866 = vadd.f32 %v843, %v864
    %v867 = vadd.f32 %v844, %v864
    %v868 = vadd.f32 %v845, %v864
    %v869 = vadd.f32 %v846, %v864
    %v870 = vadd.f32 %v847, %v864
    %v871 = vadd.f32 %v848, %v864
    %v872 = vadd.f32 %v849, %v864
    %v873 = vadd.f32 %v850, %v864
    %v874 = vadd.f32 %v851, %v864
    %v875 = vadd.f32 %v852, %v864
    %v876 = vadd.f32 %v853, %v864
    %v877 = vadd.f32 %v854, %v864
    %v878 = vadd.f32 %v855, %v864
    %v879 = vadd.f32 %v856, %v864
    %v880 = vadd.f32 %v857, %v864
    %v881 = vadd.f32 %v858, %v864
    %v882 = vmul.f32 %v866, 0.2
    %v883 = vmul.f32 %v867, 0.2
    %v884 = vmul.f32 %v868, 0.2
    %v885 = vmul.f32 %v869, 0.2
    %v886 = vmul.f32 %v870, 0.2
    %v887 = vmul.f32 %v871, 0.2
    %v888 = vmul.f32 %v872, 0.2
    %v889 = vmul.f32 %v873, 0.2
    %v890 = vmul.f32 %v874, 0.2
    %v891 = vmul.f32 %v875, 0.2
    %v892 = vmul.f32 %v876, 0.2
    %v893 = vmul.f32 %v877, 0.2
    %v894 = vmul.f32 %v878, 0.2
    %v895 = vmul.f32 %v879, 0.2
    %v896 = vmul.f32 %v880, 0.2
    %v897 = vmul.f32 %v881, 0.2
    %v898 = vmax.f32 %v866, %v882
    %v899 = vmax.f32 %v867, %v883
    %v900 = vmax.f32 %v868, %v884
    %v901 = vmax.f32 %v869, %v885
    %v902 = vmax.f32 %v870, %v886
    %v903 = vmax.f32 %v871, %v887
    %v904 = vmax.f32 %v872, %v888
    %v905 = vmax.f32 %v873, %v889
    %v906 = vmax.f32 %v874, %v890
    %v907 = vmax.f32 %v875, %v891
    %v908 = vmax.f32 %v876, %v892
    %v909 = vmax.f32 %v877, %v893
    %v910 = vmax.f32 %v878, %v894
    %v911 = vmax.f32 %v879, %v895
    %v912 = vmax.f32 %v880, %v896
    %v913 = vmax.f32 %v881, %v897
    %914 = vst [vmem:[%s8] sm:$0xff] %v898
    %915 = vst [vmem:[%s8 + $0x8] sm:$0xff] %v899
    %916 = vst [vmem:[%s8 + $0x10] sm:$0xff] %v900
    %917 = vst [vmem:[%s8 + $0x18] sm:$0xff] %v901
    %918 = vst [vmem:[%s8 + $0x20] sm:$0xff] %v902
    %919 = vst [vmem:[%s8 + $0x28] sm:$0xff] %v903
    %920 = vst [vmem:[%s8 + $0x30] sm:$0xff] %v904
    %921 = vst [vmem:[%s8 + $0x38] sm:$0xff] %v905
    %922 = vst [vmem:[%s8 + $0x40] sm:$0xff] %v906
    %923 = vst [vmem:[%s8 + $0x48] sm:$0xff] %v907
    %924 = vst [vmem:[%s8 + $0x50] sm:$0xff] %v908
    %925 = vst [vmem:[%s8 + $0x58] sm:$0xff] %v909
    %926 = vst [vmem:[%s8 + $0x60] sm:$0xff] %v910
    %927 = vst [vmem:[%s8 + $0x68] sm:$0xff] %v911
    %928 = vst [vmem:[%s8 + $0x70] sm:$0xff] %v912
    %929 = vst [vmem:[%s8 + $0x78] sm:$0xff] %v913
  $region41: #{_forward_impl.11} parent=0 // pred_fallthru
    _
  // Predicated region
  $region42: #{_forward_impl.11} parent=0 // pred_check
    _
  $region43: #{_forward_impl.11} parent=0 // pred_check_branch
    %931 = sbr.rel (0) target = $region45
  $region44: #{_forward_impl.11} parent=0 // pred_region
    _
  $region45: #{_forward_impl.11} parent=0 // pred_fallthru
    _
  // Predicated region
  $region46: #{_forward_impl.11} parent=0 // pred_check
    _
  $region47: #{_forward_impl.11} parent=0 // pred_check_branch
    %933 = sbr.rel (0) target = $region49
  $region48: #{_forward_impl.11} parent=0 // pred_region
    _
  $region49: #{_forward_impl.11} parent=0 // pred_fallthru
    _

</llo_original>
